<compile_context>
chip_gen: v6e
topology: v6e:2x2x1
jax: 0.10.0
libtpu: 0.0.40
codegen_flags: <defaults>
</compile_context>

<pallas_src>
import functools

import numpy as np
import jax
import jax.numpy as jnp
from jax import lax
from jax.experimental import pallas as pl
from jax.experimental.pallas import tpu as pltpu

EPS = 1e-5
TM_DEFAULT = 512       # flattened-activation rows per pass-1 grid step (multiple of 8)
TCOUT_DEFAULT = 256    # out-channel tile (multiple of 128)


def _round_up(x, m):
    return (x + m - 1) // m * m


def conv_stats_kernel(xa_ref, xb_ref, wmask_ref, w_ref, y_ref, stat_ref,
                      *, tap_offsets, tile_m):
    """Streamed-tap conv for one (cout-tile, M-tile) grid step + masked BN partials.

    xa_ref/xb_ref: [TM, Cin] bf16 -- current / next block of the flattened NHWC input.
    wmask_ref:     [TM, 1]  f32  -- (1 / valid_count_of_this_tile) on valid rows, else 0.
    w_ref:         [KH*KW, Cin, TCout] bf16 -- per-tap weight slabs.
    y_ref:         [TM, TCout] bf16 conv output tile (lane-dense).
    stat_ref:      [8, TCout] f32 -- row0 = masked tile mean, row1 = tile M2 / count.
    """
    # Upcast once so the KH*KW static row-shifted slices are plain 32-bit relayouts
    # (no packed-bf16 sublane shifts); slices stay in VMEM/vregs -- im2col never hits HBM.
    x2 = jnp.concatenate([xa_ref[...].astype(jnp.float32),
                          xb_ref[...].astype(jnp.float32)], axis=0)       # [2*TM, Cin]
    acc = None
    for t, d in enumerate(tap_offsets):                  # static, unrolled (KH*KW taps)
        xs = x2[d:d + tile_m, :].astype(jnp.bfloat16)    # shifted window -> bf16 for MXU
        p = jnp.dot(xs, w_ref[t], preferred_element_type=jnp.float32)     # f32 accumulate
        acc = p if acc is None else acc + p
    y_ref[...] = acc.astype(y_ref.dtype)                 # bf16 store

    # Masked per-tile statistics from the f32 accumulator (Chan-combine partials).
    wm = wmask_ref[...]                                               # [TM, 1]
    mu = jnp.sum(acc * wm, axis=0, keepdims=True)                     # tile mean [1, TCout]
    m2n = jnp.sum(wm * (acc - mu) ** 2, axis=0, keepdims=True)        # tile M2 / count
    pad = jnp.zeros((6, mu.shape[1]), jnp.float32)
    stat_ref[...] = jnp.concatenate([mu, m2n, pad], axis=0)           # [8, TCout]


def bn_relu_kernel(y_ref, a_ref, b_ref, o_ref):
    """Folded BatchNorm affine + ReLU: out = max(a*y + b, 0), written back in place."""
    y = y_ref[...].astype(jnp.float32)
    o_ref[...] = jnp.maximum(y * a_ref[...] + b_ref[...], 0.0).astype(o_ref.dtype)


@functools.partial(jax.jit, static_argnames=("stride", "tile_m", "tile_cout"))
def conv2d_bn_relu(x_nchw, weight, gamma, beta, stride=1,
                   tile_m=TM_DEFAULT, tile_cout=TCOUT_DEFAULT):
    """x_nchw: [N, Cin, H, W]; weight: [Cout, Cin, KH, KW] (PyTorch layout); VALID conv."""
    n, cin, h, w = x_nchw.shape
    cout, _, kh, kw = weight.shape
    oh = (h - kh) // stride + 1
    ow = (w - kw) // stride + 1
    assert oh > 0 and ow > 0

    # ---- static tiling -------------------------------------------------------------
    m_total = n * h * w                              # flattened (n, h, w) positions
    d_max = (kh - 1) * w + (kw - 1)                  # largest tap shift; need tile_m >= d_max
    tile_m = max(_round_up(d_max, 8), tile_m)
    if _round_up(m_total, tile_m) // tile_m < 2:     # prefer >= 2 parallel M steps (v7x megacore)
        tile_m = max(_round_up(d_max, 8), _round_up((m_total + 1) // 2, 8))
    num_m = _round_up(m_total, tile_m) // tile_m
    mp = num_m * tile_m

    cp = _round_up(cout, 128)                        # lane-dense channel axis
    tile_cout = min(_round_up(tile_cout, 128), cp)
    while cp % tile_cout:
        tile_cout -= 128
    num_c = cp // tile_cout
    # NOTE: per-step VMEM ~= 2 x-blocks + weight tile + y tile + f32 acc; for realistic
    # Cin*KH*KW shrink tile_m / tile_cout (and set vmem_limit_bytes) to fit v7x / v5e budgets.

    # ---- layout-only host prep (no im2col expansion is ever materialized) -----------
    x_flat = jnp.transpose(x_nchw, (0, 2, 3, 1)).reshape(m_total, cin).astype(jnp.bfloat16)
    x_flat = jnp.pad(x_flat, ((0, (num_m + 1) * tile_m - m_total), (0, 0)))  # extra "next" block

    # weight -> per-tap [Cin, Cout] slabs, stacked [KH*KW, Cin, Cp] (tap order = kernel loop)
    w_taps = jnp.transpose(weight, (2, 3, 1, 0)).reshape(kh * kw, cin, cout)
    w_taps = jnp.pad(w_taps.astype(jnp.bfloat16), ((0, 0), (0, 0), (0, cp - cout)))

    # Static validity mask over flattened rows: row r=(n,hh,ww) is a real conv output
    # top-left iff (hh, ww) sits on the stride grid inside the valid output range.
    r = np.arange(mp)
    hh, ww = (r // w) % h, r % w
    valid = ((r < m_total) & (hh % stride == 0) & (hh // stride < oh)
             & (ww % stride == 0) & (ww // stride < ow))
    counts = valid.reshape(num_m, tile_m).sum(axis=1).astype(np.float32)   # per-tile counts
    wmask_np = valid.reshape(num_m, tile_m) / np.maximum(counts, 1.0)[:, None]
    wmask = jnp.asarray(wmask_np.reshape(mp, 1).astype(np.float32))

    tap_offsets = tuple(int(i * w + j) for i in range(kh) for j in range(kw))
    kernel1 = functools.partial(conv_stats_kernel, tap_offsets=tap_offsets, tile_m=tile_m)

    # ---- pass 1: streamed-tap conv (pipelined M blocks) + fused masked BN partials ---
    y_p, stats = pl.pallas_call(
        kernel1,
        out_shape=(jax.ShapeDtypeStruct((mp, cp), jnp.bfloat16),
                   jax.ShapeDtypeStruct((num_m * 8, cp), jnp.float32)),
        grid=(num_c, num_m),                  # cout tiles outer -> weight tile reused over M
        in_specs=[
            pl.BlockSpec((tile_m, cin), lambda c, i: (i, 0)),        # current M window
            pl.BlockSpec((tile_m, cin), lambda c, i: (i + 1, 0)),    # next M window (tap shifts)
            pl.BlockSpec((tile_m, 1), lambda c, i: (i, 0)),          # weighted validity mask
            pl.BlockSpec((kh * kw, cin, tile_cout), lambda c, i: (0, 0, c)),  # weight tile
        ],
        out_specs=(pl.BlockSpec((tile_m, tile_cout), lambda c, i: (i, c)),
                   pl.BlockSpec((8, tile_cout), lambda c, i: (i, c))),
        compiler_params=pltpu.CompilerParams(
            dimension_semantics=("parallel", "parallel")),
    )(x_flat, x_flat, wmask, w_taps)
    # TODO(synk): single-buffer the per-c-constant weight block (pipeline_mode) once it is
    #             load-bearing for the VMEM budget at large Cin*KH*KW.

    # ---- tiny [Cout]-sized Chan combine + folded BN affine ---------------------------
    cnt = jnp.asarray(counts).reshape(num_m, 1)
    stats3 = stats.reshape(num_m, 8, cp)
    mean_t = stats3[:, 0, :]                                   # per-tile means      [T, Cp]
    m2n_t = stats3[:, 1, :]                                    # per-tile M2/count   [T, Cp]
    total = jnp.float32(n * oh * ow)
    mean = jnp.sum(cnt * mean_t, axis=0) / total
    m2 = jnp.sum(cnt * m2n_t, axis=0) + jnp.sum(cnt * (mean_t - mean[None, :]) ** 2, axis=0)
    var = jnp.maximum(m2 / total, 0.0)                         # biased (training-mode) variance
    gamma_p = jnp.pad(gamma.astype(jnp.float32), (0, cp - cout))
    beta_p = jnp.pad(beta.astype(jnp.float32), (0, cp - cout))
    a = gamma_p * lax.rsqrt(var + EPS)
    b = beta_p - mean * a

    # ---- pass 2: in-place (aliased) normalize + ReLU with decoupled, larger tiles ----
    k2 = 1
    for cand in range(min(num_m, max(1, 2048 // tile_m)), 0, -1):
        if num_m % cand == 0 and (num_m // cand) >= min(2, num_m):
            k2 = cand
            break
    tile_m2, num_m2 = tile_m * k2, num_m // k2

    out_p = pl.pallas_call(
        bn_relu_kernel,
        out_shape=jax.ShapeDtypeStruct((mp, cp), jnp.bfloat16),
        grid=(num_m2,),
        in_specs=[pl.BlockSpec((tile_m2, cp), lambda i: (i, 0)),
                  pl.BlockSpec((1, cp), lambda i: (0, 0)),
                  pl.BlockSpec((1, cp), lambda i: (0, 0))],
        out_specs=pl.BlockSpec((tile_m2, cp), lambda i: (i, 0)),
        input_output_aliases={0: 0},              # write back over y_p: no 2nd HBM buffer
        compiler_params=pltpu.CompilerParams(dimension_semantics=("parallel",)),
    )(y_p, a.reshape(1, cp), b.reshape(1, cp))

    # ---- extract valid positions, back to NCHW ----------------------------------------
    out = out_p[:m_total].reshape(n, h, w, cp)
    out = out[:, ::stride, ::stride, :][:, :oh, :ow, :cout]
    # TODO(synk): fuse this NHWC->NCHW layout change into pass 2 (transposed output blocks)
    #             or keep NHWC end-to-end when the consumer allows it.
    return jnp.transpose(out, (0, 3, 1, 2)).astype(jnp.float32)


def _reference(x, weight, gamma, beta, stride):
    """Pure-JAX f32 reference: conv -> training-mode BN -> ReLU."""
    y = lax.conv_general_dilated(
        x.astype(jnp.float32), weight.astype(jnp.float32),
        window_strides=(stride, stride), padding="VALID",
        dimension_numbers=("NCHW", "OIHW", "NCHW"))
    mean = y.mean(axis=(0, 2, 3), keepdims=True)
    var = ((y - mean) ** 2).mean(axis=(0, 2, 3), keepdims=True)
    y_hat = (y - mean) * lax.rsqrt(var + EPS)
    z = gamma.reshape(1, -1, 1, 1) * y_hat + beta.reshape(1, -1, 1, 1)
    return jnp.maximum(z, 0.0)


if __name__ == "__main__":
    key = jax.random.PRNGKey(0)
    k_x, k_w = jax.random.split(key)

    # small, conv-shaped inputs: batch=2, in_channels=4, spatial=16x16
    N, CIN, H, W = 2, 4, 16, 16
    COUT, KH, KW, STRIDE = 8, 3, 3, 1

    x = jax.random.normal(k_x, (N, CIN, H, W), dtype=jnp.float32)

    # deterministic xavier-uniform-style conv weight (bias=False since bn=True)
    fan_in = CIN * KH * KW
    fan_out = COUT * KH * KW
    bound = (6.0 / (fan_in + fan_out)) ** 0.5
    weight = jax.random.uniform(k_w, (COUT, CIN, KH, KW),
                                minval=-bound, maxval=bound, dtype=jnp.float32)

    # BatchNorm2d params per init_bn: weight=1, bias=0
    gamma = jnp.ones((COUT,), dtype=jnp.float32)
    beta = jnp.zeros((COUT,), dtype=jnp.float32)

    y = conv2d_bn_relu(x, weight, gamma, beta, stride=STRIDE)
    y = jax.block_until_ready(y)
    assert y.shape == (N, COUT, H - KH + 1, W - KW + 1), y.shape

    # correctness vs f32 reference (bf16 MXU operands / bf16 y intermediate -> loose tol)
    ref = jax.block_until_ready(_reference(x, weight, gamma, beta, STRIDE))
    max_err = float(jnp.max(jnp.abs(y - ref)))
    assert max_err < 5e-2, f"max abs err {max_err}"

    print("KERNEL_OK")
</pallas_src>

<mosaic_0001>
module attributes {stable_mosaic.version = 11 : i64} {
  func.func @conv_stats_kernel(%arg0: i32, %arg1: i32, %arg2: memref<256x4xbf16, #tpu.memory_space<vmem>>, %arg3: memref<256x4xbf16, #tpu.memory_space<vmem>>, %arg4: memref<256x1xf32, #tpu.memory_space<vmem>>, %arg5: memref<9x4x128xbf16, #tpu.memory_space<vmem>>, %arg6: memref<256x128xbf16, #tpu.memory_space<vmem>>, %arg7: memref<8x128xf32, #tpu.memory_space<vmem>>) attributes {dimension_semantics = [#tpu.dimension_semantics<parallel>, #tpu.dimension_semantics<parallel>], iteration_bounds = array<i64: 1, 2>, scalar_prefetch = 0 : i64, scratch_operands = 0 : i64, tpu.core_type = #tpu.core_type<tc>, window_params = [{transform_indices = @transform_0, window_bounds = array<i64: 256, 4>}, {transform_indices = @transform_1, window_bounds = array<i64: 256, 4>}, {transform_indices = @transform_2, window_bounds = array<i64: 256, 1>}, {transform_indices = @transform_3, window_bounds = array<i64: 9, 4, 128>}, {transform_indices = @transform_4, window_bounds = array<i64: 256, 128>}, {transform_indices = @transform_5, window_bounds = array<i64: 8, 128>}]} {
    %c0 = arith.constant 0 : index
    %c0_0 = arith.constant 0 : index
    %0 = vector.load %arg2[%c0, %c0_0] : memref<256x4xbf16, #tpu.memory_space<vmem>>, vector<256x4xbf16>
    %1 = arith.extf %0 : vector<256x4xbf16> to vector<256x4xf32>
    %c0_1 = arith.constant 0 : index
    %c0_2 = arith.constant 0 : index
    %2 = vector.load %arg3[%c0_1, %c0_2] : memref<256x4xbf16, #tpu.memory_space<vmem>>, vector<256x4xbf16>
    %3 = arith.extf %2 : vector<256x4xbf16> to vector<256x4xf32>
    %4 = tpu.concatenate %1, %3 in 0 : vector<256x4xf32>, vector<256x4xf32> -> vector<512x4xf32>
    %5 = vector.extract_strided_slice %4 {offsets = [0, 0], sizes = [256, 4], strides = [1, 1]} : vector<512x4xf32> to vector<256x4xf32>
    %6 = arith.truncf %5 : vector<256x4xf32> to vector<256x4xbf16>
    %c0_3 = arith.constant 0 : index
    %c0_4 = arith.constant 0 : index
    %c0_5 = arith.constant 0 : index
    %7 = vector.load %arg5[%c0_3, %c0_4, %c0_5] : memref<9x4x128xbf16, #tpu.memory_space<vmem>>, vector<1x4x128xbf16>
    %8 = vector.shape_cast %7 : vector<1x4x128xbf16> to vector<4x128xbf16>
    %cst = arith.constant dense<0.000000e+00> : vector<256x128xf32>
    %9 = tpu.matmul %6, %8, %cst {dimension_numbers = #tpu.dot_dimension_numbers<[1], [0], [0], [1], [0, 0, 1, 1], [], []>} : vector<256x4xbf16>, vector<4x128xbf16>, vector<256x128xf32> -> vector<256x128xf32>
    %10 = vector.extract_strided_slice %4 {offsets = [1, 0], sizes = [256, 4], strides = [1, 1]} : vector<512x4xf32> to vector<256x4xf32>
    %11 = arith.truncf %10 : vector<256x4xf32> to vector<256x4xbf16>
    %c1 = arith.constant 1 : index
    %c0_6 = arith.constant 0 : index
    %c0_7 = arith.constant 0 : index
    %12 = vector.load %arg5[%c1, %c0_6, %c0_7] : memref<9x4x128xbf16, #tpu.memory_space<vmem>>, vector<1x4x128xbf16>
    %13 = vector.shape_cast %12 : vector<1x4x128xbf16> to vector<4x128xbf16>
    %cst_8 = arith.constant dense<0.000000e+00> : vector<256x128xf32>
    %14 = tpu.matmul %11, %13, %cst_8 {dimension_numbers = #tpu.dot_dimension_numbers<[1], [0], [0], [1], [0, 0, 1, 1], [], []>} : vector<256x4xbf16>, vector<4x128xbf16>, vector<256x128xf32> -> vector<256x128xf32>
    %15 = arith.addf %9, %14 : vector<256x128xf32>
    %16 = vector.extract_strided_slice %4 {offsets = [2, 0], sizes = [256, 4], strides = [1, 1]} : vector<512x4xf32> to vector<256x4xf32>
    %17 = arith.truncf %16 : vector<256x4xf32> to vector<256x4xbf16>
    %c2 = arith.constant 2 : index
    %c0_9 = arith.constant 0 : index
    %c0_10 = arith.constant 0 : index
    %18 = vector.load %arg5[%c2, %c0_9, %c0_10] : memref<9x4x128xbf16, #tpu.memory_space<vmem>>, vector<1x4x128xbf16>
    %19 = vector.shape_cast %18 : vector<1x4x128xbf16> to vector<4x128xbf16>
    %cst_11 = arith.constant dense<0.000000e+00> : vector<256x128xf32>
    %20 = tpu.matmul %17, %19, %cst_11 {dimension_numbers = #tpu.dot_dimension_numbers<[1], [0], [0], [1], [0, 0, 1, 1], [], []>} : vector<256x4xbf16>, vector<4x128xbf16>, vector<256x128xf32> -> vector<256x128xf32>
    %21 = arith.addf %15, %20 : vector<256x128xf32>
    %22 = vector.extract_strided_slice %4 {offsets = [16, 0], sizes = [256, 4], strides = [1, 1]} : vector<512x4xf32> to vector<256x4xf32>
    %23 = arith.truncf %22 : vector<256x4xf32> to vector<256x4xbf16>
    %c3 = arith.constant 3 : index
    %c0_12 = arith.constant 0 : index
    %c0_13 = arith.constant 0 : index
    %24 = vector.load %arg5[%c3, %c0_12, %c0_13] : memref<9x4x128xbf16, #tpu.memory_space<vmem>>, vector<1x4x128xbf16>
    %25 = vector.shape_cast %24 : vector<1x4x128xbf16> to vector<4x128xbf16>
    %cst_14 = arith.constant dense<0.000000e+00> : vector<256x128xf32>
    %26 = tpu.matmul %23, %25, %cst_14 {dimension_numbers = #tpu.dot_dimension_numbers<[1], [0], [0], [1], [0, 0, 1, 1], [], []>} : vector<256x4xbf16>, vector<4x128xbf16>, vector<256x128xf32> -> vector<256x128xf32>
    %27 = arith.addf %21, %26 : vector<256x128xf32>
    %28 = vector.extract_strided_slice %4 {offsets = [17, 0], sizes = [256, 4], strides = [1, 1]} : vector<512x4xf32> to vector<256x4xf32>
    %29 = arith.truncf %28 : vector<256x4xf32> to vector<256x4xbf16>
    %c4 = arith.constant 4 : index
    %c0_15 = arith.constant 0 : index
    %c0_16 = arith.constant 0 : index
    %30 = vector.load %arg5[%c4, %c0_15, %c0_16] : memref<9x4x128xbf16, #tpu.memory_space<vmem>>, vector<1x4x128xbf16>
    %31 = vector.shape_cast %30 : vector<1x4x128xbf16> to vector<4x128xbf16>
    %cst_17 = arith.constant dense<0.000000e+00> : vector<256x128xf32>
    %32 = tpu.matmul %29, %31, %cst_17 {dimension_numbers = #tpu.dot_dimension_numbers<[1], [0], [0], [1], [0, 0, 1, 1], [], []>} : vector<256x4xbf16>, vector<4x128xbf16>, vector<256x128xf32> -> vector<256x128xf32>
    %33 = arith.addf %27, %32 : vector<256x128xf32>
    %34 = vector.extract_strided_slice %4 {offsets = [18, 0], sizes = [256, 4], strides = [1, 1]} : vector<512x4xf32> to vector<256x4xf32>
    %35 = arith.truncf %34 : vector<256x4xf32> to vector<256x4xbf16>
    %c5 = arith.constant 5 : index
    %c0_18 = arith.constant 0 : index
    %c0_19 = arith.constant 0 : index
    %36 = vector.load %arg5[%c5, %c0_18, %c0_19] : memref<9x4x128xbf16, #tpu.memory_space<vmem>>, vector<1x4x128xbf16>
    %37 = vector.shape_cast %36 : vector<1x4x128xbf16> to vector<4x128xbf16>
    %cst_20 = arith.constant dense<0.000000e+00> : vector<256x128xf32>
    %38 = tpu.matmul %35, %37, %cst_20 {dimension_numbers = #tpu.dot_dimension_numbers<[1], [0], [0], [1], [0, 0, 1, 1], [], []>} : vector<256x4xbf16>, vector<4x128xbf16>, vector<256x128xf32> -> vector<256x128xf32>
    %39 = arith.addf %33, %38 : vector<256x128xf32>
    %40 = vector.extract_strided_slice %4 {offsets = [32, 0], sizes = [256, 4], strides = [1, 1]} : vector<512x4xf32> to vector<256x4xf32>
    %41 = arith.truncf %40 : vector<256x4xf32> to vector<256x4xbf16>
    %c6 = arith.constant 6 : index
    %c0_21 = arith.constant 0 : index
    %c0_22 = arith.constant 0 : index
    %42 = vector.load %arg5[%c6, %c0_21, %c0_22] : memref<9x4x128xbf16, #tpu.memory_space<vmem>>, vector<1x4x128xbf16>
    %43 = vector.shape_cast %42 : vector<1x4x128xbf16> to vector<4x128xbf16>
    %cst_23 = arith.constant dense<0.000000e+00> : vector<256x128xf32>
    %44 = tpu.matmul %41, %43, %cst_23 {dimension_numbers = #tpu.dot_dimension_numbers<[1], [0], [0], [1], [0, 0, 1, 1], [], []>} : vector<256x4xbf16>, vector<4x128xbf16>, vector<256x128xf32> -> vector<256x128xf32>
    %45 = arith.addf %39, %44 : vector<256x128xf32>
    %46 = vector.extract_strided_slice %4 {offsets = [33, 0], sizes = [256, 4], strides = [1, 1]} : vector<512x4xf32> to vector<256x4xf32>
    %47 = arith.truncf %46 : vector<256x4xf32> to vector<256x4xbf16>
    %c7 = arith.constant 7 : index
    %c0_24 = arith.constant 0 : index
    %c0_25 = arith.constant 0 : index
    %48 = vector.load %arg5[%c7, %c0_24, %c0_25] : memref<9x4x128xbf16, #tpu.memory_space<vmem>>, vector<1x4x128xbf16>
    %49 = vector.shape_cast %48 : vector<1x4x128xbf16> to vector<4x128xbf16>
    %cst_26 = arith.constant dense<0.000000e+00> : vector<256x128xf32>
    %50 = tpu.matmul %47, %49, %cst_26 {dimension_numbers = #tpu.dot_dimension_numbers<[1], [0], [0], [1], [0, 0, 1, 1], [], []>} : vector<256x4xbf16>, vector<4x128xbf16>, vector<256x128xf32> -> vector<256x128xf32>
    %51 = arith.addf %45, %50 : vector<256x128xf32>
    %52 = vector.extract_strided_slice %4 {offsets = [34, 0], sizes = [256, 4], strides = [1, 1]} : vector<512x4xf32> to vector<256x4xf32>
    %53 = arith.truncf %52 : vector<256x4xf32> to vector<256x4xbf16>
    %c8 = arith.constant 8 : index
    %c0_27 = arith.constant 0 : index
    %c0_28 = arith.constant 0 : index
    %54 = vector.load %arg5[%c8, %c0_27, %c0_28] : memref<9x4x128xbf16, #tpu.memory_space<vmem>>, vector<1x4x128xbf16>
    %55 = vector.shape_cast %54 : vector<1x4x128xbf16> to vector<4x128xbf16>
    %cst_29 = arith.constant dense<0.000000e+00> : vector<256x128xf32>
    %56 = tpu.matmul %53, %55, %cst_29 {dimension_numbers = #tpu.dot_dimension_numbers<[1], [0], [0], [1], [0, 0, 1, 1], [], []>} : vector<256x4xbf16>, vector<4x128xbf16>, vector<256x128xf32> -> vector<256x128xf32>
    %57 = arith.addf %51, %56 : vector<256x128xf32>
    %58 = arith.truncf %57 : vector<256x128xf32> to vector<256x128xbf16>
    %c0_30 = arith.constant 0 : index
    %c0_31 = arith.constant 0 : index
    %59 = vector.load %arg6[%c0_30, %c0_31] : memref<256x128xbf16, #tpu.memory_space<vmem>>, vector<256x128xbf16>
    tpu.vector_store %arg6[%c0_30, %c0_31], %58 {strides = array<i32>} : memref<256x128xbf16, #tpu.memory_space<vmem>>, vector<256x128xbf16>,
    %c0_32 = arith.constant 0 : index
    %c0_33 = arith.constant 0 : index
    %60 = vector.load %arg4[%c0_32, %c0_33] : memref<256x1xf32, #tpu.memory_space<vmem>>, vector<256x1xf32>
    %61 = vector.broadcast %60 : vector<256x1xf32> to vector<256x128xf32>
    %62 = arith.mulf %57, %61 : vector<256x128xf32>
    %cst_34 = arith.constant dense<0.000000e+00> : vector<128xf32>
    %63 = vector.multi_reduction <add>, %62, %cst_34 [0] : vector<256x128xf32> to vector<128xf32>
    %64 = vector.shape_cast %63 : vector<128xf32> to vector<1x128xf32>
    %65 = vector.broadcast %64 : vector<1x128xf32> to vector<256x128xf32>
    %66 = arith.subf %57, %65 : vector<256x128xf32>
    %67 = arith.mulf %66, %66 : vector<256x128xf32>
    %68 = vector.broadcast %60 : vector<256x1xf32> to vector<256x128xf32>
    %69 = arith.mulf %68, %67 : vector<256x128xf32>
    %cst_35 = arith.constant dense<0.000000e+00> : vector<128xf32>
    %70 = vector.multi_reduction <add>, %69, %cst_35 [0] : vector<256x128xf32> to vector<128xf32>
    %71 = vector.shape_cast %70 : vector<128xf32> to vector<1x128xf32>
    %cst_36 = arith.constant 0.000000e+00 : f32
    %72 = vector.broadcast %cst_36 : f32 to vector<6x128xf32>
    %73 = tpu.concatenate %64, %71, %72 in 0 : vector<1x128xf32>, vector<1x128xf32>, vector<6x128xf32> -> vector<8x128xf32>
    %c0_37 = arith.constant 0 : index
    %c0_38 = arith.constant 0 : index
    %74 = vector.load %arg7[%c0_37, %c0_38] : memref<8x128xf32, #tpu.memory_space<vmem>>, vector<8x128xf32>
    tpu.vector_store %arg7[%c0_37, %c0_38], %73 {strides = array<i32>} : memref<8x128xf32, #tpu.memory_space<vmem>>, vector<8x128xf32>,
    return
  }
  func.func @transform_0(%arg0: i32, %arg1: i32) -> (i32, i32) {
    %c0_i32 = arith.constant 0 : i32
    %c0_i32_0 = arith.constant 0 : i32
    return %arg1, %c0_i32 : i32, i32
  }
  func.func @transform_1(%arg0: i32, %arg1: i32) -> (i32, i32) {
    %c1_i32 = arith.constant 1 : i32
    %0 = arith.addi %arg1, %c1_i32 : i32
    %c0_i32 = arith.constant 0 : i32
    %c0_i32_0 = arith.constant 0 : i32
    return %0, %c0_i32 : i32, i32
  }
  func.func @transform_2(%arg0: i32, %arg1: i32) -> (i32, i32) {
    %c0_i32 = arith.constant 0 : i32
    %c0_i32_0 = arith.constant 0 : i32
    return %arg1, %c0_i32 : i32, i32
  }
  func.func @transform_3(%arg0: i32, %arg1: i32) -> (i32, i32, i32) {
    %c0_i32 = arith.constant 0 : i32
    %c0_i32_0 = arith.constant 0 : i32
    %c0_i32_1 = arith.constant 0 : i32
    return %c0_i32, %c0_i32_0, %arg0 : i32, i32, i32
  }
  func.func @transform_4(%arg0: i32, %arg1: i32) -> (i32, i32) {
    %c0_i32 = arith.constant 0 : i32
    return %arg1, %arg0 : i32, i32
  }
  func.func @transform_5(%arg0: i32, %arg1: i32) -> (i32, i32) {
    %c0_i32 = arith.constant 0 : i32
    return %arg1, %arg0 : i32, i32
  }
}

module attributes {stable_mosaic.version = 11 : i64} {
  func.func @bn_relu_kernel(%arg0: i32, %arg1: memref<256x128xbf16, #tpu.memory_space<vmem>>, %arg2: memref<1x128xf32, #tpu.memory_space<vmem>>, %arg3: memref<1x128xf32, #tpu.memory_space<vmem>>, %arg4: memref<256x128xbf16, #tpu.memory_space<vmem>>) attributes {dimension_semantics = [#tpu.dimension_semantics<parallel>], iteration_bounds = array<i64: 2>, scalar_prefetch = 0 : i64, scratch_operands = 0 : i64, tpu.core_type = #tpu.core_type<tc>, window_params = [{transform_indices = @transform_0, window_bounds = array<i64: 256, 128>}, {pipeline_mode = #tpu.pipeline_mode<synchronous>, transform_indices = @transform_1, window_bounds = array<i64: 1, 128>}, {pipeline_mode = #tpu.pipeline_mode<synchronous>, transform_indices = @transform_2, window_bounds = array<i64: 1, 128>}, {transform_indices = @transform_3, window_bounds = array<i64: 256, 128>}]} {
    %c0 = arith.constant 0 : index
    %c0_0 = arith.constant 0 : index
    %0 = vector.load %arg1[%c0, %c0_0] : memref<256x128xbf16, #tpu.memory_space<vmem>>, vector<256x128xbf16>
    %1 = arith.extf %0 : vector<256x128xbf16> to vector<256x128xf32>
    %c0_1 = arith.constant 0 : index
    %c0_2 = arith.constant 0 : index
    %2 = vector.load %arg2[%c0_1, %c0_2] : memref<1x128xf32, #tpu.memory_space<vmem>>, vector<1x128xf32>
    %3 = vector.broadcast %2 : vector<1x128xf32> to vector<256x128xf32>
    %4 = arith.mulf %1, %3 : vector<256x128xf32>
    %c0_3 = arith.constant 0 : index
    %c0_4 = arith.constant 0 : index
    %5 = vector.load %arg3[%c0_3, %c0_4] : memref<1x128xf32, #tpu.memory_space<vmem>>, vector<1x128xf32>
    %6 = vector.broadcast %5 : vector<1x128xf32> to vector<256x128xf32>
    %7 = arith.addf %4, %6 : vector<256x128xf32>
    %cst = arith.constant 0.000000e+00 : f32
    %8 = vector.broadcast %cst : f32 to vector<256x128xf32>
    %9 = arith.maximumf %7, %8 : vector<256x128xf32>
    %10 = arith.truncf %9 : vector<256x128xf32> to vector<256x128xbf16>
    %c0_5 = arith.constant 0 : index
    %c0_6 = arith.constant 0 : index
    %11 = vector.load %arg4[%c0_5, %c0_6] : memref<256x128xbf16, #tpu.memory_space<vmem>>, vector<256x128xbf16>
    tpu.vector_store %arg4[%c0_5, %c0_6], %10 {strides = array<i32>} : memref<256x128xbf16, #tpu.memory_space<vmem>>, vector<256x128xbf16>,
    return
  }
  func.func @transform_0(%arg0: i32) -> (i32, i32) {
    %c0_i32 = arith.constant 0 : i32
    %c0_i32_0 = arith.constant 0 : i32
    return %arg0, %c0_i32 : i32, i32
  }
  func.func @transform_1(%arg0: i32) -> (i32, i32) {
    %c0_i32 = arith.constant 0 : i32
    %c0_i32_0 = arith.constant 0 : i32
    %c0_i32_1 = arith.constant 0 : i32
    return %c0_i32, %c0_i32_0 : i32, i32
  }
  func.func @transform_2(%arg0: i32) -> (i32, i32) {
    %c0_i32 = arith.constant 0 : i32
    %c0_i32_0 = arith.constant 0 : i32
    %c0_i32_1 = arith.constant 0 : i32
    return %c0_i32, %c0_i32_0 : i32, i32
  }
  func.func @transform_3(%arg0: i32) -> (i32, i32) {
    %c0_i32 = arith.constant 0 : i32
    %c0_i32_0 = arith.constant 0 : i32
    return %arg0, %c0_i32 : i32, i32
  }
}

</mosaic_0001>

<llo_original>
// kernel: conv2d_bn_relu.3
$region0: #{conv2d_bn_relu.3}
  #allocation0 [shape = 'u32[]', space=smem, size = 0x4, offset = 0x4, fixed_abs, tag = 'smem constant byte address 0x4 - core index']
  #allocation1 [shape = 'u32[144,128]{1,0:T(1,128)}', space=vmem, size = 0x12000, scoped, tag = 'internal scratch']
  %s0 = inlined_call_operand.vmem [shape: bf16[512,128], index: 0, kind: input, shape index: {}, may-alias: {0,3}]
  %s1 = inlined_call_operand.vmem [shape: f32[1,128], index: 1, kind: input, shape index: {}]
  %s2 = inlined_call_operand.vmem [shape: f32[1,128], index: 2, kind: input, shape index: {}]
  %s3 = inlined_call_operand.vmem [shape: bf16[512,128], index: 3, kind: output, shape index: {}, may-alias: {0,3}]
  %s4 = sld [smem:[#allocation0]]
  $region45: #{conv2d_bn_relu.3} parent=0
    _
  %s6 = ssub.s32 1, %s4
  %s7 = scalar_select 0, %s6, %s4
  loop: start=0, step=1, limit=4
  $region2: #{conv2d_bn_relu.3} parent=0 // loop_pre_header
    _
  $region3: #{conv2d_bn_relu.3} parent=0 // loop_header
    %s9 = sphi 0, %s13
    %p10 = scmp.ge.s32.totalorder %s9, 4
    %s19 = sphi 0, %s21
    %s22 = sphi 0, %s19
    %s23 = sphi 0, %s22
    %s39 = sphi 0, %s23
    %s43 = sphi 0, %s43
    %s45 = sphi 0, %s43
    %s46 = sphi 0, %s45
    %s60 = sphi 0, %s46
    %s64 = sphi 0, %s64
    %s66 = sphi 0, %s64
    %s67 = sphi 0, %s66
    %s81 = sphi 0, %s67
    %s87 = sphi 0, %s89
    %s90 = sphi 0, %s87
    %s91 = sphi 0, %s90
    %s107 = sphi 0, %s91
  $region4: #{conv2d_bn_relu.3} parent=0 // loop_header_branch
    %12 = sbr.rel (%p10) target = $region8
  $region5: #{conv2d_bn_relu.3} parent=0 // loop_body
    %s14 = ssub.s32 %s9, 1
    %s15 = ssub.s32 %s9, 2
    %s16 = sadd.s32 %s9, 1
    %s17 = ssub.s32 %s9, %s16
    %p18 = scmp.eq.s32.totalorder %s17, 0
    %s20 = sadd.s32 %s19, 1
    %s21 = scalar_select %p18, %s19, %s20
    %p24 = pneg %p18
    %p25 = scmp.eq.s32.totalorder %s9, 1
    %p26 = por %p24, %p25
    %p27 = scmp.ne.s32.totalorder %s19, %s22
    %p28 = scmp.eq.s32.totalorder %s9, 0
    %p29 = por %p27, %p28
    %p30 = scmp.ne.s32.totalorder %s19, %s22
    %p31 = scmp.eq.s32.totalorder %s14, 1
    %p32 = por %p30, %p31
    %p33 = scmp.ne.s32.totalorder %s22, %s23
    %p34 = scmp.eq.s32.totalorder %s14, 0
    %p35 = por %p33, %p34
    %p36 = scmp.ne.s32.totalorder %s22, %s23
    %p37 = scmp.eq.s32.totalorder %s15, 1
    %p38 = por %p36, %p37
    %p40 = scmp.ne.s32.totalorder %s23, %s39
    %p41 = scmp.eq.s32.totalorder %s15, 0
    %p42 = por %p40, %p41
    %s44 = sadd.s32 %s43, 1
    %p47 = scmp.eq.s32.totalorder %s9, 1
    %p48 = scmp.ne.s32.totalorder %s43, %s45
    %p49 = scmp.eq.s32.totalorder %s9, 0
    %p50 = por %p48, %p49
    %p51 = scmp.ne.s32.totalorder %s43, %s45
    %p52 = scmp.eq.s32.totalorder %s14, 1
    %p53 = por %p51, %p52
    %p54 = scmp.ne.s32.totalorder %s45, %s46
    %p55 = scmp.eq.s32.totalorder %s14, 0
    %p56 = por %p54, %p55
    %p57 = scmp.ne.s32.totalorder %s45, %s46
    %p58 = scmp.eq.s32.totalorder %s15, 1
    %p59 = por %p57, %p58
    %p61 = scmp.ne.s32.totalorder %s46, %s60
    %p62 = scmp.eq.s32.totalorder %s15, 0
    %p63 = por %p61, %p62
    %s65 = sadd.s32 %s64, 1
    %p68 = scmp.eq.s32.totalorder %s9, 1
    %p69 = scmp.ne.s32.totalorder %s64, %s66
    %p70 = scmp.eq.s32.totalorder %s9, 0
    %p71 = por %p69, %p70
    %p72 = scmp.ne.s32.totalorder %s64, %s66
    %p73 = scmp.eq.s32.totalorder %s14, 1
    %p74 = por %p72, %p73
    %p75 = scmp.ne.s32.totalorder %s66, %s67
    %p76 = scmp.eq.s32.totalorder %s14, 0
    %p77 = por %p75, %p76
    %p78 = scmp.ne.s32.totalorder %s66, %s67
    %p79 = scmp.eq.s32.totalorder %s15, 1
    %p80 = por %p78, %p79
    %p82 = scmp.ne.s32.totalorder %s67, %s81
    %p83 = scmp.eq.s32.totalorder %s15, 0
    %p84 = por %p82, %p83
    %s85 = ssub.s32 %s9, %s16
    %p86 = scmp.eq.s32.totalorder %s85, 0
    %s88 = sadd.s32 %s87, 1
    %s89 = scalar_select %p86, %s87, %s88
    %p92 = pneg %p86
    %p93 = scmp.eq.s32.totalorder %s9, 1
    %p94 = por %p92, %p93
    %p95 = scmp.ne.s32.totalorder %s87, %s90
    %p96 = scmp.eq.s32.totalorder %s9, 0
    %p97 = por %p95, %p96
    %p98 = scmp.ne.s32.totalorder %s87, %s90
    %p99 = scmp.eq.s32.totalorder %s14, 1
    %p100 = por %p98, %p99
    %p101 = scmp.ne.s32.totalorder %s90, %s91
    %p102 = scmp.eq.s32.totalorder %s14, 0
    %p103 = por %p101, %p102
    %p104 = scmp.ne.s32.totalorder %s90, %s91
    %p105 = scmp.eq.s32.totalorder %s15, 1
    %p106 = por %p104, %p105
    %p108 = scmp.ne.s32.totalorder %s91, %s107
    %p109 = scmp.eq.s32.totalorder %s15, 0
    %p110 = por %p108, %p109
    %p111 = scmp.le.s32.totalorder 1, %s9
    %p112 = scmp.lt.s32.totalorder %s9, 3
    %p113 = pnand %p111, %p112
    %p114 = pneg %p113
    // Predicated region
    $region9: #{conv2d_bn_relu.3} parent=5 // pred_check
      _
    $region10: #{conv2d_bn_relu.3} parent=5 // pred_check_branch
      %116 = sbr.rel (%p113) target = $region12
    $region11: #{conv2d_bn_relu.3} parent=5 // pred_region
      %s117 = ssub.s32 %s9, 1
      // Predicated region
      $region13: #{conv2d_bn_relu.3} parent=11 // pred_check
        %p118 = pneg %p56
      $region14: #{conv2d_bn_relu.3} parent=11 // pred_check_branch
        %120 = sbr.rel (%p118) target = $region16
      $region15: #{conv2d_bn_relu.3} parent=11 // pred_region
        _
      $region16: #{conv2d_bn_relu.3} parent=11 // pred_fallthru
        _
      // Predicated region
      $region17: #{conv2d_bn_relu.3} parent=11 // pred_check
        %p121 = pneg %p77
      $region18: #{conv2d_bn_relu.3} parent=11 // pred_check_branch
        %123 = sbr.rel (%p121) target = $region20
      $region19: #{conv2d_bn_relu.3} parent=11 // pred_region
        _
      $region20: #{conv2d_bn_relu.3} parent=11 // pred_fallthru
        _
    $region12: #{conv2d_bn_relu.3} parent=5 // pred_fallthru
      _
    %p124 = scmp.lt.s32.totalorder %s9, 2
    // Predicated region
    $region21: #{conv2d_bn_relu.3} parent=5 // pred_check
      %p125 = pneg %p124
    $region22: #{conv2d_bn_relu.3} parent=5 // pred_check_branch
      %127 = sbr.rel (%p125) target = $region24
    $region23: #{conv2d_bn_relu.3} parent=5 // pred_region
      // Predicated region
      $region25: #{conv2d_bn_relu.3} parent=23 // pred_check
        %p128 = pneg %p29
      $region26: #{conv2d_bn_relu.3} parent=23 // pred_check_branch
        %130 = sbr.rel (%p128) target = $region28
      $region27: #{conv2d_bn_relu.3} parent=23 // pred_region
        %s131 = smul.u32 32, %s9
        %p132 = scmp.lt.s32.totalorder %s131, 63
        %s133 = scalar_select %p132, %s131, 63
        %s134 = smul.addr %s133, 4
        %s135 = scalar_lea.vmem %s0, %s134
        %s136 = smul.u32 32, %s9
      $region28: #{conv2d_bn_relu.3} parent=23 // pred_fallthru
        _
    $region24: #{conv2d_bn_relu.3} parent=5 // pred_fallthru
      _
    %p137 = scmp.le.s32.totalorder 1, %s9
    %p138 = scmp.lt.s32.totalorder %s9, 3
    %p139 = pnand %p137, %p138
    %p140 = pneg %p139
    // Predicated region
    $region29: #{conv2d_bn_relu.3} parent=5 // pred_check
      _
    $region30: #{conv2d_bn_relu.3} parent=5 // pred_check_branch
      %142 = sbr.rel (%p139) target = $region32
    $region31: #{conv2d_bn_relu.3} parent=5 // pred_region
      %s143 = ssub.s32 %s9, 1
      %s144 = smul.u32 32, %s14
      %p145 = scmp.lt.s32.totalorder %s144, 63
      %s146 = scalar_select %p145, %s144, 63
      %s147 = smul.addr %s146, 4
      %s148 = scalar_lea.vmem %s0, %s147
      %p149 = pneg %p35
      %p150 = pneg %p32
      %p151 = pneg %p56
      %p152 = pneg %p53
      %p153 = pneg %p77
      %p154 = pneg %p74
      %p155 = pneg %p103
      %p156 = pneg %p100
      %s157 = smul.u32 32, %s14
      %p158 = scmp.lt.s32.totalorder %s157, 63
      %s159 = scalar_select %p158, %s157, 63
      %s160 = smul.addr %s159, 4
      %s161 = scalar_lea.vmem %s3, %s160
      %s162 = smul.u32 32, %s14
      %p163 = scmp.lt.s32.totalorder %s162, 63
      %s164 = scalar_select %p163, %s162, 63
      %s165 = smul.addr %s164, 4
      %s166 = scalar_lea.vmem %s0, %s165
      %s167 = smul.u32 32, %s14
      %s168 = smul.u32 32, %s14
      %p169 = scmp.lt.s32.totalorder %s168, 63
      %s170 = scalar_select %p169, %s168, 63
      %s171 = smul.addr %s170, 4
      %s172 = scalar_lea.vmem %s3, %s171
      %s173 = smul.u32 32, %s14
      %v174 = vld [vmem:[%s166] sm:$0xf]
      %v175 = vld [vmem:[%s166 + $0x4] sm:$0xf]
      %v176 = vld [vmem:[%s166 + $0x8] sm:$0xf]
      %v177 = vld [vmem:[%s166 + $0xc] sm:$0xf]
      %v178 = vld [vmem:[%s166 + $0x10] sm:$0xf]
      %v179 = vld [vmem:[%s166 + $0x14] sm:$0xf]
      %v180 = vld [vmem:[%s166 + $0x18] sm:$0xf]
      %v181 = vld [vmem:[%s166 + $0x1c] sm:$0xf]
      %v182 = vld [vmem:[%s166 + $0x20] sm:$0xf]
      %v183 = vld [vmem:[%s166 + $0x24] sm:$0xf]
      %v184 = vld [vmem:[%s166 + $0x28] sm:$0xf]
      %v185 = vld [vmem:[%s166 + $0x2c] sm:$0xf]
      %v186 = vld [vmem:[%s166 + $0x30] sm:$0xf]
      %v187 = vld [vmem:[%s166 + $0x34] sm:$0xf]
      %v188 = vld [vmem:[%s166 + $0x38] sm:$0xf]
      %v189 = vld [vmem:[%s166 + $0x3c] sm:$0xf]
      %v190 = vld [vmem:[%s166 + $0x40] sm:$0xf]
      %v191 = vld [vmem:[%s166 + $0x44] sm:$0xf]
      %v192 = vld [vmem:[%s166 + $0x48] sm:$0xf]
      %v193 = vld [vmem:[%s166 + $0x4c] sm:$0xf]
      %v194 = vld [vmem:[%s166 + $0x50] sm:$0xf]
      %v195 = vld [vmem:[%s166 + $0x54] sm:$0xf]
      %v196 = vld [vmem:[%s166 + $0x58] sm:$0xf]
      %v197 = vld [vmem:[%s166 + $0x5c] sm:$0xf]
      %v198 = vld [vmem:[%s166 + $0x60] sm:$0xf]
      %v199 = vld [vmem:[%s166 + $0x64] sm:$0xf]
      %v200 = vld [vmem:[%s166 + $0x68] sm:$0xf]
      %v201 = vld [vmem:[%s166 + $0x6c] sm:$0xf]
      %v202 = vld [vmem:[%s166 + $0x70] sm:$0xf]
      %v203 = vld [vmem:[%s166 + $0x74] sm:$0xf]
      %v204 = vld [vmem:[%s166 + $0x78] sm:$0xf]
      %v205 = vld [vmem:[%s166 + $0x7c] sm:$0xf]
      %v206 = vunpack.c.l.bf16 %v174
      %v207 = vunpack.c.l.bf16 %v175
      %v208 = vunpack.c.l.bf16 %v176
      %v209 = vunpack.c.l.bf16 %v177
      %v210 = vunpack.c.l.bf16 %v178
      %v211 = vunpack.c.l.bf16 %v179
      %v212 = vunpack.c.l.bf16 %v180
      %v213 = vunpack.c.l.bf16 %v181
      %v214 = vunpack.c.l.bf16 %v182
      %v215 = vunpack.c.l.bf16 %v183
      %v216 = vunpack.c.l.bf16 %v184
      %v217 = vunpack.c.l.bf16 %v185
      %v218 = vunpack.c.l.bf16 %v186
      %v219 = vunpack.c.l.bf16 %v187
      %v220 = vunpack.c.l.bf16 %v188
      %v221 = vunpack.c.l.bf16 %v189
      %v222 = vunpack.c.l.bf16 %v190
      %v223 = vunpack.c.l.bf16 %v191
      %v224 = vunpack.c.l.bf16 %v192
      %v225 = vunpack.c.l.bf16 %v193
      %v226 = vunpack.c.l.bf16 %v194
      %v227 = vunpack.c.l.bf16 %v195
      %v228 = vunpack.c.l.bf16 %v196
      %v229 = vunpack.c.l.bf16 %v197
      %v230 = vunpack.c.l.bf16 %v198
      %v231 = vunpack.c.l.bf16 %v199
      %v232 = vunpack.c.l.bf16 %v200
      %v233 = vunpack.c.l.bf16 %v201
      %v234 = vunpack.c.l.bf16 %v202
      %v235 = vunpack.c.l.bf16 %v203
      %v236 = vunpack.c.l.bf16 %v204
      %v237 = vunpack.c.l.bf16 %v205
      %v238 = vld [vmem:[%s1] sm:$0x1]
      %v240 = vlaneseq
      %v241 = vshrl.u32 %v240, 7
      %v242 = vsub.s32 0, %v241
      %v243 = vrot.slane %v238, %v242
      %v245 = vmul.f32 %v206, %v243
      %v246 = vmul.f32 %v207, %v243
      %v247 = vmul.f32 %v208, %v243
      %v248 = vmul.f32 %v209, %v243
      %v249 = vmul.f32 %v210, %v243
      %v250 = vmul.f32 %v211, %v243
      %v251 = vmul.f32 %v212, %v243
      %v252 = vmul.f32 %v213, %v243
      %v253 = vmul.f32 %v214, %v243
      %v254 = vmul.f32 %v215, %v243
      %v255 = vmul.f32 %v216, %v243
      %v256 = vmul.f32 %v217, %v243
      %v257 = vmul.f32 %v218, %v243
      %v258 = vmul.f32 %v219, %v243
      %v259 = vmul.f32 %v220, %v243
      %v260 = vmul.f32 %v221, %v243
      %v261 = vmul.f32 %v222, %v243
      %v262 = vmul.f32 %v223, %v243
      %v263 = vmul.f32 %v224, %v243
      %v264 = vmul.f32 %v225, %v243
      %v265 = vmul.f32 %v226, %v243
      %v266 = vmul.f32 %v227, %v243
      %v267 = vmul.f32 %v228, %v243
      %v268 = vmul.f32 %v229, %v243
      %v269 = vmul.f32 %v230, %v243
      %v270 = vmul.f32 %v231, %v243
      %v271 = vmul.f32 %v232, %v243
      %v272 = vmul.f32 %v233, %v243
      %v273 = vmul.f32 %v234, %v243
      %v274 = vmul.f32 %v235, %v243
      %v275 = vmul.f32 %v236, %v243
      %v276 = vmul.f32 %v237, %v243
      %v277 = vld [vmem:[%s2] sm:$0x1]
      %v279 = vlaneseq
      %v280 = vshrl.u32 %v279, 7
      %v281 = vsub.s32 0, %v280
      %v282 = vrot.slane %v277, %v281
      %v284 = vadd.f32 %v245, %v282
      %v285 = vadd.f32 %v246, %v282
      %v286 = vadd.f32 %v247, %v282
      %v287 = vadd.f32 %v248, %v282
      %v288 = vadd.f32 %v249, %v282
      %v289 = vadd.f32 %v250, %v282
      %v290 = vadd.f32 %v251, %v282
      %v291 = vadd.f32 %v252, %v282
      %v292 = vadd.f32 %v253, %v282
      %v293 = vadd.f32 %v254, %v282
      %v294 = vadd.f32 %v255, %v282
      %v295 = vadd.f32 %v256, %v282
      %v296 = vadd.f32 %v257, %v282
      %v297 = vadd.f32 %v258, %v282
      %v298 = vadd.f32 %v259, %v282
      %v299 = vadd.f32 %v260, %v282
      %v300 = vadd.f32 %v261, %v282
      %v301 = vadd.f32 %v262, %v282
      %v302 = vadd.f32 %v263, %v282
      %v303 = vadd.f32 %v264, %v282
      %v304 = vadd.f32 %v265, %v282
      %v305 = vadd.f32 %v266, %v282
      %v306 = vadd.f32 %v267, %v282
      %v307 = vadd.f32 %v268, %v282
      %v308 = vadd.f32 %v269, %v282
      %v309 = vadd.f32 %v270, %v282
      %v310 = vadd.f32 %v271, %v282
      %v311 = vadd.f32 %v272, %v282
      %v312 = vadd.f32 %v273, %v282
      %v313 = vadd.f32 %v274, %v282
      %v314 = vadd.f32 %v275, %v282
      %v315 = vadd.f32 %v276, %v282
      %v316 = vmax.f32 %v284, 0.0
      %v317 = vmax.f32 %v285, 0.0
      %v318 = vmax.f32 %v286, 0.0
      %v319 = vmax.f32 %v287, 0.0
      %v320 = vmax.f32 %v288, 0.0
      %v321 = vmax.f32 %v289, 0.0
      %v322 = vmax.f32 %v290, 0.0
      %v323 = vmax.f32 %v291, 0.0
      %v324 = vmax.f32 %v292, 0.0
      %v325 = vmax.f32 %v293, 0.0
      %v326 = vmax.f32 %v294, 0.0
      %v327 = vmax.f32 %v295, 0.0
      %v328 = vmax.f32 %v296, 0.0
      %v329 = vmax.f32 %v297, 0.0
      %v330 = vmax.f32 %v298, 0.0
      %v331 = vmax.f32 %v299, 0.0
      %v332 = vmax.f32 %v300, 0.0
      %v333 = vmax.f32 %v301, 0.0
      %v334 = vmax.f32 %v302, 0.0
      %v335 = vmax.f32 %v303, 0.0
      %v336 = vmax.f32 %v304, 0.0
      %v337 = vmax.f32 %v305, 0.0
      %v338 = vmax.f32 %v306, 0.0
      %v339 = vmax.f32 %v307, 0.0
      %v340 = vmax.f32 %v308, 0.0
      %v341 = vmax.f32 %v309, 0.0
      %v342 = vmax.f32 %v310, 0.0
      %v343 = vmax.f32 %v311, 0.0
      %v344 = vmax.f32 %v312, 0.0
      %v345 = vmax.f32 %v313, 0.0
      %v346 = vmax.f32 %v314, 0.0
      %v347 = vmax.f32 %v315, 0.0
      %v348 = vpack.c.bf16 %v317, %v316
      %v349 = vpack.c.bf16 %v319, %v318
      %v350 = vpack.c.bf16 %v321, %v320
      %v351 = vpack.c.bf16 %v323, %v322
      %v352 = vpack.c.bf16 %v325, %v324
      %v353 = vpack.c.bf16 %v327, %v326
      %v354 = vpack.c.bf16 %v329, %v328
      %v355 = vpack.c.bf16 %v331, %v330
      %v356 = vpack.c.bf16 %v333, %v332
      %v357 = vpack.c.bf16 %v335, %v334
      %v358 = vpack.c.bf16 %v337, %v336
      %v359 = vpack.c.bf16 %v339, %v338
      %v360 = vpack.c.bf16 %v341, %v340
      %v361 = vpack.c.bf16 %v343, %v342
      %v362 = vpack.c.bf16 %v345, %v344
      %v363 = vpack.c.bf16 %v347, %v346
      %v380 = vunpack.c.l.b16 %v348
      %v381 = vunpack.c.h.b16 %v348
      %v382 = vunpack.c.l.b16 %v349
      %v383 = vunpack.c.h.b16 %v349
      %v384 = vunpack.c.l.b16 %v350
      %v385 = vunpack.c.h.b16 %v350
      %v386 = vunpack.c.l.b16 %v351
      %v387 = vunpack.c.h.b16 %v351
      %v388 = vunpack.c.l.b16 %v352
      %v389 = vunpack.c.h.b16 %v352
      %v390 = vunpack.c.l.b16 %v353
      %v391 = vunpack.c.h.b16 %v353
      %v392 = vunpack.c.l.b16 %v354
      %v393 = vunpack.c.h.b16 %v354
      %v394 = vunpack.c.l.b16 %v355
      %v395 = vunpack.c.h.b16 %v355
      %v396 = vunpack.c.l.b16 %v356
      %v397 = vunpack.c.h.b16 %v356
      %v398 = vunpack.c.l.b16 %v357
      %v399 = vunpack.c.h.b16 %v357
      %v400 = vunpack.c.l.b16 %v358
      %v401 = vunpack.c.h.b16 %v358
      %v402 = vunpack.c.l.b16 %v359
      %v403 = vunpack.c.h.b16 %v359
      %v404 = vunpack.c.l.b16 %v360
      %v405 = vunpack.c.h.b16 %v360
      %v406 = vunpack.c.l.b16 %v361
      %v407 = vunpack.c.h.b16 %v361
      %v408 = vunpack.c.l.b16 %v362
      %v409 = vunpack.c.h.b16 %v362
      %v410 = vunpack.c.l.b16 %v363
      %v411 = vunpack.c.h.b16 %v363
      %v412 = vpack.c.b16 %v380, %v380
      %v413 = vpack.c.b16 %v381, %v381
      %v414 = vpack.c.b16 %v382, %v382
      %v415 = vpack.c.b16 %v383, %v383
      %v416 = vpack.c.b16 %v384, %v384
      %v417 = vpack.c.b16 %v385, %v385
      %v418 = vpack.c.b16 %v386, %v386
      %v419 = vpack.c.b16 %v387, %v387
      %v420 = vpack.c.b16 %v388, %v388
      %v421 = vpack.c.b16 %v389, %v389
      %v422 = vpack.c.b16 %v390, %v390
      %v423 = vpack.c.b16 %v391, %v391
      %v424 = vpack.c.b16 %v392, %v392
      %v425 = vpack.c.b16 %v393, %v393
      %v426 = vpack.c.b16 %v394, %v394
      %v427 = vpack.c.b16 %v395, %v395
      %v428 = vpack.c.b16 %v396, %v396
      %v429 = vpack.c.b16 %v397, %v397
      %v430 = vpack.c.b16 %v398, %v398
      %v431 = vpack.c.b16 %v399, %v399
      %v432 = vpack.c.b16 %v400, %v400
      %v433 = vpack.c.b16 %v401, %v401
      %v434 = vpack.c.b16 %v402, %v402
      %v435 = vpack.c.b16 %v403, %v403
      %v436 = vpack.c.b16 %v404, %v404
      %v437 = vpack.c.b16 %v405, %v405
      %v438 = vpack.c.b16 %v406, %v406
      %v439 = vpack.c.b16 %v407, %v407
      %v440 = vpack.c.b16 %v408, %v408
      %v441 = vpack.c.b16 %v409, %v409
      %v442 = vpack.c.b16 %v410, %v410
      %v443 = vpack.c.b16 %v411, %v411
      %476 = vst [vmem:[%s172] sm:$0xf] %v412
      %477 = vst [vmem:[%s172 + $0x4] sm:$0xf] %v413
      %478 = vst [vmem:[%s172 + $0x8] sm:$0xf] %v414
      %479 = vst [vmem:[%s172 + $0xc] sm:$0xf] %v415
      %480 = vst [vmem:[%s172 + $0x10] sm:$0xf] %v416
      %481 = vst [vmem:[%s172 + $0x14] sm:$0xf] %v417
      %482 = vst [vmem:[%s172 + $0x18] sm:$0xf] %v418
      %483 = vst [vmem:[%s172 + $0x1c] sm:$0xf] %v419
      %484 = vst [vmem:[%s172 + $0x20] sm:$0xf] %v420
      %485 = vst [vmem:[%s172 + $0x24] sm:$0xf] %v421
      %486 = vst [vmem:[%s172 + $0x28] sm:$0xf] %v422
      %487 = vst [vmem:[%s172 + $0x2c] sm:$0xf] %v423
      %488 = vst [vmem:[%s172 + $0x30] sm:$0xf] %v424
      %489 = vst [vmem:[%s172 + $0x34] sm:$0xf] %v425
      %490 = vst [vmem:[%s172 + $0x38] sm:$0xf] %v426
      %491 = vst [vmem:[%s172 + $0x3c] sm:$0xf] %v427
      %492 = vst [vmem:[%s172 + $0x40] sm:$0xf] %v428
      %493 = vst [vmem:[%s172 + $0x44] sm:$0xf] %v429
      %494 = vst [vmem:[%s172 + $0x48] sm:$0xf] %v430
      %495 = vst [vmem:[%s172 + $0x4c] sm:$0xf] %v431
      %496 = vst [vmem:[%s172 + $0x50] sm:$0xf] %v432
      %497 = vst [vmem:[%s172 + $0x54] sm:$0xf] %v433
      %498 = vst [vmem:[%s172 + $0x58] sm:$0xf] %v434
      %499 = vst [vmem:[%s172 + $0x5c] sm:$0xf] %v435
      %500 = vst [vmem:[%s172 + $0x60] sm:$0xf] %v436
      %501 = vst [vmem:[%s172 + $0x64] sm:$0xf] %v437
      %502 = vst [vmem:[%s172 + $0x68] sm:$0xf] %v438
      %503 = vst [vmem:[%s172 + $0x6c] sm:$0xf] %v439
      %504 = vst [vmem:[%s172 + $0x70] sm:$0xf] %v440
      %505 = vst [vmem:[%s172 + $0x74] sm:$0xf] %v441
      %506 = vst [vmem:[%s172 + $0x78] sm:$0xf] %v442
      %507 = vst [vmem:[%s172 + $0x7c] sm:$0xf] %v443
      %s508 = smul.u32 32, %s14
      %p509 = scmp.lt.s32.totalorder %s508, 63
      %s510 = scalar_select %p509, %s508, 63
      %s511 = smul.addr %s510, 4
      %s512 = scalar_lea.vmem %s3, %s511
      // Predicated region
      $region33: #{conv2d_bn_relu.3} parent=31 // pred_check
        %p513 = pneg %p100
      $region34: #{conv2d_bn_relu.3} parent=31 // pred_check_branch
        %515 = sbr.rel (%p513) target = $region36
      $region35: #{conv2d_bn_relu.3} parent=31 // pred_region
        %s516 = smul.u32 32, %s14
      $region36: #{conv2d_bn_relu.3} parent=31 // pred_fallthru
        _
    $region32: #{conv2d_bn_relu.3} parent=5 // pred_fallthru
      _
    %p517 = scmp.le.s32.totalorder 2, %s9
    // Predicated region
    $region37: #{conv2d_bn_relu.3} parent=5 // pred_check
      %p518 = pneg %p517
    $region38: #{conv2d_bn_relu.3} parent=5 // pred_check_branch
      %520 = sbr.rel (%p518) target = $region40
    $region39: #{conv2d_bn_relu.3} parent=5 // pred_region
      %s521 = ssub.s32 %s9, 2
      // Predicated region
      $region41: #{conv2d_bn_relu.3} parent=39 // pred_check
        %p522 = pneg %p106
      $region42: #{conv2d_bn_relu.3} parent=39 // pred_check_branch
        %524 = sbr.rel (%p522) target = $region44
      $region43: #{conv2d_bn_relu.3} parent=39 // pred_region
        %s525 = smul.u32 32, %s15
        %p526 = scmp.lt.s32.totalorder %s525, 63
        %s527 = scalar_select %p526, %s525, 63
        %s528 = smul.addr %s527, 4
        %s529 = scalar_lea.vmem %s3, %s528
      $region44: #{conv2d_bn_relu.3} parent=39 // pred_fallthru
        _
    $region40: #{conv2d_bn_relu.3} parent=5 // pred_fallthru
      _
  $region6: #{conv2d_bn_relu.3} parent=0 // loop_footer
    %s13 = sadd.s32 1, %s9
  $region7: #{conv2d_bn_relu.3} parent=0 // loop_footer_branch
    %8 = sbr.rel target = $region3
  $region8: #{conv2d_bn_relu.3} parent=0 // loop_exit
    _

// kernel: conv2d_bn_relu.2
$region0: #{conv2d_bn_relu.2}
  #allocation0 [shape = 'u32[]', space=smem, size = 0x4, offset = 0x4, fixed_abs, tag = 'smem constant byte address 0x4 - core index']
  #allocation1 [shape = 'u32[144,128]{1,0:T(1,128)}', space=vmem, size = 0x12000, scoped, tag = 'internal scratch']
  %s0 = inlined_call_operand.vmem [shape: bf16[768,4], index: 0, kind: input, shape index: {}, may-alias: {0,1}]
  %s1 = inlined_call_operand.vmem [shape: bf16[768,4], index: 1, kind: input, shape index: {}, may-alias: {0,1}]
  %s2 = inlined_call_operand.vmem [shape: f32[512,1], index: 2, kind: input, shape index: {}]
  %s3 = inlined_call_operand.vmem [shape: bf16[9,4,128], index: 3, kind: input, shape index: {}]
  %s4 = inlined_call_operand.vmem [shape: bf16[512,128], index: 4, kind: output, shape index: {0}]
  %s5 = inlined_call_operand.vmem [shape: f32[16,128], index: 5, kind: output, shape index: {1}]
  %6 = xla_tuple %s4, %s5
  %s7 = sld [smem:[#allocation0]]
  $region57: #{conv2d_bn_relu.2} parent=0
    _
  %s9 = ssub.s32 1, %s7
  %s10 = scalar_select 0, %s9, %s7
  loop: start=0, step=1, limit=4
  $region2: #{conv2d_bn_relu.2} parent=0 // loop_pre_header
    _
  $region3: #{conv2d_bn_relu.2} parent=0 // loop_header
    %s12 = sphi 0, %s16
    %p13 = scmp.ge.s32.totalorder %s12, 4
    %s19 = sphi 0, %s31
    %s20 = sphi 0, %s27
    %s21 = sphi 0, %s19
    %s22 = sphi 0, %s20
    %s23 = sphi 0, %s21
    %s24 = sphi 0, %s22
    %s34 = sphi 0, %s36
    %s37 = sphi 0, %s34
    %s38 = sphi 0, %s37
    %s54 = sphi 0, %s38
    %s62 = sphi 0, %s64
    %s65 = sphi 0, %s62
    %s66 = sphi 0, %s65
    %s82 = sphi 0, %s66
    %s88 = sphi 0, %s90
    %s91 = sphi 0, %s88
    %s92 = sphi 0, %s91
    %s108 = sphi 0, %s92
    %s114 = sphi 0, %s116
    %s117 = sphi 0, %s114
    %s118 = sphi 0, %s117
    %s134 = sphi 0, %s118
    %s142 = sphi 0, %s144
    %s145 = sphi 0, %s142
    %s146 = sphi 0, %s145
    %s162 = sphi 0, %s146
    %s170 = sphi 0, %s172
    %s173 = sphi 0, %s170
    %s174 = sphi 0, %s173
    %s190 = sphi 0, %s174
  $region4: #{conv2d_bn_relu.2} parent=0 // loop_header_branch
    %15 = sbr.rel (%p13) target = $region8
  $region5: #{conv2d_bn_relu.2} parent=0 // loop_body
    %s17 = ssub.s32 %s12, 1
    %s18 = ssub.s32 %s12, 2
    %s25 = sadd.s32 1, %s20
    %p26 = scmp.ge.s32.totalorder %s25, 2
    %s27 = scalar_select %p26, 0, %s25
    %s28 = sadd.s32 1, %s19
    %s29 = scalar_select %p26, %s28, %s19
    %p30 = scmp.ge.s32.totalorder %s29, 1
    %s31 = scalar_select %p30, 0, %s29
    %s32 = ssub.s32 %s20, %s27
    %p33 = scmp.eq.s32.totalorder %s32, 0
    %s35 = sadd.s32 %s34, 1
    %s36 = scalar_select %p33, %s34, %s35
    %p39 = pneg %p33
    %p40 = scmp.eq.s32.totalorder %s12, 1
    %p41 = por %p39, %p40
    %p42 = scmp.ne.s32.totalorder %s34, %s37
    %p43 = scmp.eq.s32.totalorder %s12, 0
    %p44 = por %p42, %p43
    %p45 = scmp.ne.s32.totalorder %s34, %s37
    %p46 = scmp.eq.s32.totalorder %s17, 1
    %p47 = por %p45, %p46
    %p48 = scmp.ne.s32.totalorder %s37, %s38
    %p49 = scmp.eq.s32.totalorder %s17, 0
    %p50 = por %p48, %p49
    %p51 = scmp.ne.s32.totalorder %s37, %s38
    %p52 = scmp.eq.s32.totalorder %s18, 1
    %p53 = por %p51, %p52
    %p55 = scmp.ne.s32.totalorder %s38, %s54
    %p56 = scmp.eq.s32.totalorder %s18, 0
    %p57 = por %p55, %p56
    %s58 = sadd.s32 %s20, 1
    %s59 = sadd.s32 %s27, 1
    %s60 = ssub.s32 %s58, %s59
    %p61 = scmp.eq.s32.totalorder %s60, 0
    %s63 = sadd.s32 %s62, 1
    %s64 = scalar_select %p61, %s62, %s63
    %p67 = pneg %p61
    %p68 = scmp.eq.s32.totalorder %s12, 1
    %p69 = por %p67, %p68
    %p70 = scmp.ne.s32.totalorder %s62, %s65
    %p71 = scmp.eq.s32.totalorder %s12, 0
    %p72 = por %p70, %p71
    %p73 = scmp.ne.s32.totalorder %s62, %s65
    %p74 = scmp.eq.s32.totalorder %s17, 1
    %p75 = por %p73, %p74
    %p76 = scmp.ne.s32.totalorder %s65, %s66
    %p77 = scmp.eq.s32.totalorder %s17, 0
    %p78 = por %p76, %p77
    %p79 = scmp.ne.s32.totalorder %s65, %s66
    %p80 = scmp.eq.s32.totalorder %s18, 1
    %p81 = por %p79, %p80
    %p83 = scmp.ne.s32.totalorder %s66, %s82
    %p84 = scmp.eq.s32.totalorder %s18, 0
    %p85 = por %p83, %p84
    %s86 = ssub.s32 %s20, %s27
    %p87 = scmp.eq.s32.totalorder %s86, 0
    %s89 = sadd.s32 %s88, 1
    %s90 = scalar_select %p87, %s88, %s89
    %p93 = pneg %p87
    %p94 = scmp.eq.s32.totalorder %s12, 1
    %p95 = por %p93, %p94
    %p96 = scmp.ne.s32.totalorder %s88, %s91
    %p97 = scmp.eq.s32.totalorder %s12, 0
    %p98 = por %p96, %p97
    %p99 = scmp.ne.s32.totalorder %s88, %s91
    %p100 = scmp.eq.s32.totalorder %s17, 1
    %p101 = por %p99, %p100
    %p102 = scmp.ne.s32.totalorder %s91, %s92
    %p103 = scmp.eq.s32.totalorder %s17, 0
    %p104 = por %p102, %p103
    %p105 = scmp.ne.s32.totalorder %s91, %s92
    %p106 = scmp.eq.s32.totalorder %s18, 1
    %p107 = por %p105, %p106
    %p109 = scmp.ne.s32.totalorder %s92, %s108
    %p110 = scmp.eq.s32.totalorder %s18, 0
    %p111 = por %p109, %p110
    %s112 = ssub.s32 %s19, %s31
    %p113 = scmp.eq.s32.totalorder %s112, 0
    %s115 = sadd.s32 %s114, 1
    %s116 = scalar_select %p113, %s114, %s115
    %p119 = pneg %p113
    %p120 = scmp.eq.s32.totalorder %s12, 1
    %p121 = por %p119, %p120
    %p122 = scmp.ne.s32.totalorder %s114, %s117
    %p123 = scmp.eq.s32.totalorder %s12, 0
    %p124 = por %p122, %p123
    %p125 = scmp.ne.s32.totalorder %s114, %s117
    %p126 = scmp.eq.s32.totalorder %s17, 1
    %p127 = por %p125, %p126
    %p128 = scmp.ne.s32.totalorder %s117, %s118
    %p129 = scmp.eq.s32.totalorder %s17, 0
    %p130 = por %p128, %p129
    %p131 = scmp.ne.s32.totalorder %s117, %s118
    %p132 = scmp.eq.s32.totalorder %s18, 1
    %p133 = por %p131, %p132
    %p135 = scmp.ne.s32.totalorder %s118, %s134
    %p136 = scmp.eq.s32.totalorder %s18, 0
    %p137 = por %p135, %p136
    %s138 = ssub.s32 %s20, %s27
    %s139 = ssub.s32 %s19, %s31
    %s140 = sor.u32 %s138, %s139
    %p141 = scmp.eq.s32.totalorder %s140, 0
    %s143 = sadd.s32 %s142, 1
    %s144 = scalar_select %p141, %s142, %s143
    %p147 = pneg %p141
    %p148 = scmp.eq.s32.totalorder %s12, 1
    %p149 = por %p147, %p148
    %p150 = scmp.ne.s32.totalorder %s142, %s145
    %p151 = scmp.eq.s32.totalorder %s12, 0
    %p152 = por %p150, %p151
    %p153 = scmp.ne.s32.totalorder %s142, %s145
    %p154 = scmp.eq.s32.totalorder %s17, 1
    %p155 = por %p153, %p154
    %p156 = scmp.ne.s32.totalorder %s145, %s146
    %p157 = scmp.eq.s32.totalorder %s17, 0
    %p158 = por %p156, %p157
    %p159 = scmp.ne.s32.totalorder %s145, %s146
    %p160 = scmp.eq.s32.totalorder %s18, 1
    %p161 = por %p159, %p160
    %p163 = scmp.ne.s32.totalorder %s146, %s162
    %p164 = scmp.eq.s32.totalorder %s18, 0
    %p165 = por %p163, %p164
    %s166 = ssub.s32 %s20, %s27
    %s167 = ssub.s32 %s19, %s31
    %s168 = sor.u32 %s166, %s167
    %p169 = scmp.eq.s32.totalorder %s168, 0
    %s171 = sadd.s32 %s170, 1
    %s172 = scalar_select %p169, %s170, %s171
    %p175 = pneg %p169
    %p176 = scmp.eq.s32.totalorder %s12, 1
    %p177 = por %p175, %p176
    %p178 = scmp.ne.s32.totalorder %s170, %s173
    %p179 = scmp.eq.s32.totalorder %s12, 0
    %p180 = por %p178, %p179
    %p181 = scmp.ne.s32.totalorder %s170, %s173
    %p182 = scmp.eq.s32.totalorder %s17, 1
    %p183 = por %p181, %p182
    %p184 = scmp.ne.s32.totalorder %s173, %s174
    %p185 = scmp.eq.s32.totalorder %s17, 0
    %p186 = por %p184, %p185
    %p187 = scmp.ne.s32.totalorder %s173, %s174
    %p188 = scmp.eq.s32.totalorder %s18, 1
    %p189 = por %p187, %p188
    %p191 = scmp.ne.s32.totalorder %s174, %s190
    %p192 = scmp.eq.s32.totalorder %s18, 0
    %p193 = por %p191, %p192
    %p194 = scmp.le.s32.totalorder 1, %s12
    %p195 = scmp.lt.s32.totalorder %s12, 3
    %p196 = pnand %p194, %p195
    %p197 = pneg %p196
    // Predicated region
    $region9: #{conv2d_bn_relu.2} parent=5 // pred_check
      _
    $region10: #{conv2d_bn_relu.2} parent=5 // pred_check_branch
      %199 = sbr.rel (%p196) target = $region12
    $region11: #{conv2d_bn_relu.2} parent=5 // pred_region
      %s200 = ssub.s32 %s12, 1
      // Predicated region
      $region13: #{conv2d_bn_relu.2} parent=11 // pred_check
        %p201 = pneg %p130
      $region14: #{conv2d_bn_relu.2} parent=11 // pred_check_branch
        %203 = sbr.rel (%p201) target = $region16
      $region15: #{conv2d_bn_relu.2} parent=11 // pred_region
        %p204 = scmp.lt.s32.totalorder %s21, 0
        %s205 = scalar_select %p204, %s21, 0
        %s206 = smul.addr %s205, 2
        %s207 = scalar_lea.vmem %s3, %s206
      $region16: #{conv2d_bn_relu.2} parent=11 // pred_fallthru
        _
    $region12: #{conv2d_bn_relu.2} parent=5 // pred_fallthru
      _
    %p208 = scmp.lt.s32.totalorder %s12, 2
    // Predicated region
    $region17: #{conv2d_bn_relu.2} parent=5 // pred_check
      %p209 = pneg %p208
    $region18: #{conv2d_bn_relu.2} parent=5 // pred_check_branch
      %211 = sbr.rel (%p209) target = $region20
    $region19: #{conv2d_bn_relu.2} parent=5 // pred_region
      // Predicated region
      $region21: #{conv2d_bn_relu.2} parent=19 // pred_check
        %p212 = pneg %p44
      $region22: #{conv2d_bn_relu.2} parent=19 // pred_check_branch
        %214 = sbr.rel (%p212) target = $region24
      $region23: #{conv2d_bn_relu.2} parent=19 // pred_region
        %s215 = smul.u32 32, %s20
        %p216 = scmp.lt.s32.totalorder %s215, 95
        %s217 = scalar_select %p216, %s215, 95
        %s218 = smul.addr %s217, 4
        %s219 = scalar_lea.vmem %s0, %s218
        %s220 = smul.u32 32, %s20
      $region24: #{conv2d_bn_relu.2} parent=19 // pred_fallthru
        _
      // Predicated region
      $region25: #{conv2d_bn_relu.2} parent=19 // pred_check
        %p221 = pneg %p72
      $region26: #{conv2d_bn_relu.2} parent=19 // pred_check_branch
        %223 = sbr.rel (%p221) target = $region28
      $region27: #{conv2d_bn_relu.2} parent=19 // pred_region
        %s224 = sadd.s32 %s20, 1
        %s225 = smul.u32 32, %s224
        %p226 = scmp.lt.s32.totalorder %s225, 95
        %s227 = scalar_select %p226, %s225, 95
        %s228 = smul.addr %s227, 4
        %s229 = scalar_lea.vmem %s1, %s228
        %s230 = sadd.s32 %s20, 1
        %s231 = smul.u32 32, %s230
      $region28: #{conv2d_bn_relu.2} parent=19 // pred_fallthru
        _
      // Predicated region
      $region29: #{conv2d_bn_relu.2} parent=19 // pred_check
        %p232 = pneg %p98
      $region30: #{conv2d_bn_relu.2} parent=19 // pred_check_branch
        %234 = sbr.rel (%p232) target = $region32
      $region31: #{conv2d_bn_relu.2} parent=19 // pred_region
        %s235 = smul.u32 32, %s20
        %p236 = scmp.lt.s32.totalorder %s235, 63
        %s237 = scalar_select %p236, %s235, 63
        %s238 = smul.addr %s237, 8
        %s239 = scalar_lea.vmem %s2, %s238
        %s240 = smul.u32 32, %s20
      $region32: #{conv2d_bn_relu.2} parent=19 // pred_fallthru
        _
    $region20: #{conv2d_bn_relu.2} parent=5 // pred_fallthru
      _
    %p241 = scmp.le.s32.totalorder 1, %s12
    %p242 = scmp.lt.s32.totalorder %s12, 3
    %p243 = pnand %p241, %p242
    %p244 = pneg %p243
    // Predicated region
    $region33: #{conv2d_bn_relu.2} parent=5 // pred_check
      _
    $region34: #{conv2d_bn_relu.2} parent=5 // pred_check_branch
      %246 = sbr.rel (%p243) target = $region36
    $region35: #{conv2d_bn_relu.2} parent=5 // pred_region
      %s247 = ssub.s32 %s12, 1
      %s248 = smul.u32 32, %s22
      %p249 = scmp.lt.s32.totalorder %s248, 95
      %s250 = scalar_select %p249, %s248, 95
      %s251 = smul.addr %s250, 4
      %s252 = scalar_lea.vmem %s0, %s251
      %p253 = pneg %p50
      %p254 = pneg %p47
      %s255 = sadd.s32 %s22, 1
      %s256 = smul.u32 32, %s255
      %p257 = scmp.lt.s32.totalorder %s256, 95
      %s258 = scalar_select %p257, %s256, 95
      %s259 = smul.addr %s258, 4
      %s260 = scalar_lea.vmem %s1, %s259
      %p261 = pneg %p78
      %p262 = pneg %p75
      %s263 = smul.u32 32, %s22
      %p264 = scmp.lt.s32.totalorder %s263, 63
      %s265 = scalar_select %p264, %s263, 63
      %s266 = smul.addr %s265, 8
      %s267 = scalar_lea.vmem %s2, %s266
      %p268 = pneg %p104
      %p269 = pneg %p101
      %p270 = scmp.lt.s32.totalorder %s21, 0
      %s271 = scalar_select %p270, %s21, 0
      %s272 = smul.addr %s271, 2
      %s273 = scalar_lea.vmem %s3, %s272
      %p274 = pneg %p130
      %p275 = pneg %p127
      %p276 = pneg %p158
      %p277 = pneg %p155
      %s278 = smul.u32 32, %s22
      %p279 = scmp.lt.s32.totalorder %s278, 63
      %s280 = scalar_select %p279, %s278, 63
      %p281 = scmp.lt.s32.totalorder %s21, 0
      %s282 = scalar_select %p281, %s21, 0
      %s283 = sadd.s32 %s282, %s280
      %s284 = smul.addr %s283, 4
      %s285 = scalar_lea.vmem %s4, %s284
      %p286 = pneg %p186
      %p287 = pneg %p183
      %p288 = scmp.lt.s32.totalorder %s22, 1
      %s289 = scalar_select %p288, %s22, 1
      %p290 = scmp.lt.s32.totalorder %s21, 0
      %s291 = scalar_select %p290, %s21, 0
      %s292 = sadd.s32 %s291, %s289
      %s293 = smul.addr %s292, 8
      %s294 = scalar_lea.vmem %s5, %s293
      %s295 = smul.u32 32, %s22
      %p296 = scmp.lt.s32.totalorder %s295, 95
      %s297 = scalar_select %p296, %s295, 95
      %s298 = smul.addr %s297, 4
      %s299 = scalar_lea.vmem %s0, %s298
      %s300 = smul.u32 32, %s22
      %s301 = sadd.s32 %s22, 1
      %s302 = smul.u32 32, %s301
      %p303 = scmp.lt.s32.totalorder %s302, 95
      %s304 = scalar_select %p303, %s302, 95
      %s305 = smul.addr %s304, 4
      %s306 = scalar_lea.vmem %s1, %s305
      %s307 = sadd.s32 %s22, 1
      %s308 = smul.u32 32, %s307
      %s309 = smul.u32 32, %s22
      %p310 = scmp.lt.s32.totalorder %s309, 63
      %s311 = scalar_select %p310, %s309, 63
      %s312 = smul.addr %s311, 8
      %s313 = scalar_lea.vmem %s2, %s312
      %s314 = smul.u32 32, %s22
      %p315 = scmp.lt.s32.totalorder %s21, 0
      %s316 = scalar_select %p315, %s21, 0
      %s317 = smul.addr %s316, 2
      %s318 = scalar_lea.vmem %s3, %s317
      %s319 = smul.u32 32, %s22
      %p320 = scmp.lt.s32.totalorder %s319, 63
      %s321 = scalar_select %p320, %s319, 63
      %p322 = scmp.lt.s32.totalorder %s21, 0
      %s323 = scalar_select %p322, %s21, 0
      %s324 = sadd.s32 %s323, %s321
      %s325 = smul.addr %s324, 4
      %s326 = scalar_lea.vmem %s4, %s325
      %s327 = smul.u32 32, %s22
      %p328 = scmp.lt.s32.totalorder %s22, 1
      %s329 = scalar_select %p328, %s22, 1
      %p330 = scmp.lt.s32.totalorder %s21, 0
      %s331 = scalar_select %p330, %s21, 0
      %s332 = sadd.s32 %s331, %s329
      %s333 = smul.addr %s332, 8
      %s334 = scalar_lea.vmem %s5, %s333
      %v336 = vld [vmem:[%s299] sm:$0xf]
      %v337 = vld [vmem:[%s299 + $0x4] sm:$0xf]
      %v338 = vld [vmem:[%s299 + $0x8] sm:$0xf]
      %v339 = vld [vmem:[%s299 + $0xc] sm:$0xf]
      %v340 = vld [vmem:[%s299 + $0x10] sm:$0xf]
      %v341 = vld [vmem:[%s299 + $0x14] sm:$0xf]
      %v342 = vld [vmem:[%s299 + $0x18] sm:$0xf]
      %v343 = vld [vmem:[%s299 + $0x1c] sm:$0xf]
      %v344 = vld [vmem:[%s299 + $0x20] sm:$0xf]
      %v345 = vld [vmem:[%s299 + $0x24] sm:$0xf]
      %v346 = vld [vmem:[%s299 + $0x28] sm:$0xf]
      %v347 = vld [vmem:[%s299 + $0x2c] sm:$0xf]
      %v348 = vld [vmem:[%s299 + $0x30] sm:$0xf]
      %v349 = vld [vmem:[%s299 + $0x34] sm:$0xf]
      %v350 = vld [vmem:[%s299 + $0x38] sm:$0xf]
      %v351 = vld [vmem:[%s299 + $0x3c] sm:$0xf]
      %v352 = vld [vmem:[%s299 + $0x40] sm:$0xf]
      %v353 = vld [vmem:[%s299 + $0x44] sm:$0xf]
      %v354 = vld [vmem:[%s299 + $0x48] sm:$0xf]
      %v355 = vld [vmem:[%s299 + $0x4c] sm:$0xf]
      %v356 = vld [vmem:[%s299 + $0x50] sm:$0xf]
      %v357 = vld [vmem:[%s299 + $0x54] sm:$0xf]
      %v358 = vld [vmem:[%s299 + $0x58] sm:$0xf]
      %v359 = vld [vmem:[%s299 + $0x5c] sm:$0xf]
      %v360 = vld [vmem:[%s299 + $0x60] sm:$0xf]
      %v361 = vld [vmem:[%s299 + $0x64] sm:$0xf]
      %v362 = vld [vmem:[%s299 + $0x68] sm:$0xf]
      %v363 = vld [vmem:[%s299 + $0x6c] sm:$0xf]
      %v364 = vld [vmem:[%s299 + $0x70] sm:$0xf]
      %v365 = vld [vmem:[%s299 + $0x74] sm:$0xf]
      %v366 = vld [vmem:[%s299 + $0x78] sm:$0xf]
      %v367 = vld [vmem:[%s299 + $0x7c] sm:$0xf]
      %v368 = vunpack.c.l.bf16 %v336
      %v369 = vunpack.c.l.bf16 %v337
      %v370 = vunpack.c.l.bf16 %v338
      %v371 = vunpack.c.l.bf16 %v339
      %v372 = vunpack.c.l.bf16 %v340
      %v373 = vunpack.c.l.bf16 %v341
      %v374 = vunpack.c.l.bf16 %v342
      %v375 = vunpack.c.l.bf16 %v343
      %v376 = vunpack.c.l.bf16 %v344
      %v377 = vunpack.c.l.bf16 %v345
      %v378 = vunpack.c.l.bf16 %v346
      %v379 = vunpack.c.l.bf16 %v347
      %v380 = vunpack.c.l.bf16 %v348
      %v381 = vunpack.c.l.bf16 %v349
      %v382 = vunpack.c.l.bf16 %v350
      %v383 = vunpack.c.l.bf16 %v351
      %v384 = vunpack.c.l.bf16 %v352
      %v385 = vunpack.c.l.bf16 %v353
      %v386 = vunpack.c.l.bf16 %v354
      %v387 = vunpack.c.l.bf16 %v355
      %v388 = vunpack.c.l.bf16 %v356
      %v389 = vunpack.c.l.bf16 %v357
      %v390 = vunpack.c.l.bf16 %v358
      %v391 = vunpack.c.l.bf16 %v359
      %v392 = vunpack.c.l.bf16 %v360
      %v393 = vunpack.c.l.bf16 %v361
      %v394 = vunpack.c.l.bf16 %v362
      %v395 = vunpack.c.l.bf16 %v363
      %v396 = vunpack.c.l.bf16 %v364
      %v397 = vunpack.c.l.bf16 %v365
      %v398 = vunpack.c.l.bf16 %v366
      %v399 = vunpack.c.l.bf16 %v367
      %v400 = vld [vmem:[%s306] sm:$0xf]
      %v401 = vld [vmem:[%s306 + $0x4] sm:$0xf]
      %v402 = vld [vmem:[%s306 + $0x8] sm:$0xf]
      %v403 = vld [vmem:[%s306 + $0xc] sm:$0xf]
      %v404 = vld [vmem:[%s306 + $0x10] sm:$0xf]
      %v405 = vunpack.c.l.bf16 %v400
      %v406 = vunpack.c.l.bf16 %v401
      %v407 = vunpack.c.l.bf16 %v402
      %v408 = vunpack.c.l.bf16 %v403
      %v409 = vunpack.c.l.bf16 %v404
      %v410 = vpack.c.bf16 %v369, %v368
      %v411 = vpack.c.bf16 %v371, %v370
      %v412 = vpack.c.bf16 %v373, %v372
      %v413 = vpack.c.bf16 %v375, %v374
      %v414 = vpack.c.bf16 %v377, %v376
      %v415 = vpack.c.bf16 %v379, %v378
      %v416 = vpack.c.bf16 %v381, %v380
      %v417 = vpack.c.bf16 %v383, %v382
      %v418 = vpack.c.bf16 %v385, %v384
      %v419 = vpack.c.bf16 %v387, %v386
      %v420 = vpack.c.bf16 %v389, %v388
      %v421 = vpack.c.bf16 %v391, %v390
      %v422 = vpack.c.bf16 %v393, %v392
      %v423 = vpack.c.bf16 %v395, %v394
      %v424 = vpack.c.bf16 %v397, %v396
      %v425 = vpack.c.bf16 %v399, %v398
      %v426 = vld [vmem:[%s318] sm:$0x3]
      %v427 = vpack.c.bf16 %v405, %v405
      %s428 = scalar_lea.vmem %s318, 2
      %v429 = vld [vmem:[%s428] sm:$0x3]
      %vm430 = vsmask.f32 7424
      %v432 = vshrl.u32 %v410, 16
      %v434 = vshll.u32 %v410, 16
      %v436 = vrot.slane %v434, 1
      %v437 = vor.u32 %v432, %v436
      %v439 = vshll.u32 %v411, 16
      %v441 = vrot.slane %v439, 1
      %v442 = vsel %vm430, %v437, %v441
      %v443 = vshrl.u32 %v411, 16
      %v445 = vor.u32 %v443, %v441
      %v447 = vshll.u32 %v412, 16
      %v449 = vrot.slane %v447, 1
      %v450 = vsel %vm430, %v445, %v449
      %v451 = vshrl.u32 %v412, 16
      %v453 = vor.u32 %v451, %v449
      %v455 = vshll.u32 %v413, 16
      %v457 = vrot.slane %v455, 1
      %v458 = vsel %vm430, %v453, %v457
      %v459 = vshrl.u32 %v413, 16
      %v461 = vor.u32 %v459, %v457
      %v463 = vshll.u32 %v414, 16
      %v465 = vrot.slane %v463, 1
      %v466 = vsel %vm430, %v461, %v465
      %v467 = vshrl.u32 %v414, 16
      %v469 = vor.u32 %v467, %v465
      %v471 = vshll.u32 %v415, 16
      %v473 = vrot.slane %v471, 1
      %v474 = vsel %vm430, %v469, %v473
      %v475 = vshrl.u32 %v415, 16
      %v477 = vor.u32 %v475, %v473
      %v479 = vshll.u32 %v416, 16
      %v481 = vrot.slane %v479, 1
      %v482 = vsel %vm430, %v477, %v481
      %v483 = vshrl.u32 %v416, 16
      %v485 = vor.u32 %v483, %v481
      %v487 = vshll.u32 %v417, 16
      %v489 = vrot.slane %v487, 1
      %v490 = vsel %vm430, %v485, %v489
      %v491 = vshrl.u32 %v417, 16
      %v493 = vor.u32 %v491, %v489
      %v495 = vshll.u32 %v418, 16
      %v497 = vrot.slane %v495, 1
      %v498 = vsel %vm430, %v493, %v497
      %v499 = vshrl.u32 %v418, 16
      %v501 = vor.u32 %v499, %v497
      %v503 = vshll.u32 %v419, 16
      %v505 = vrot.slane %v503, 1
      %v506 = vsel %vm430, %v501, %v505
      %v507 = vshrl.u32 %v419, 16
      %v509 = vor.u32 %v507, %v505
      %v511 = vshll.u32 %v420, 16
      %v513 = vrot.slane %v511, 1
      %v514 = vsel %vm430, %v509, %v513
      %v515 = vshrl.u32 %v420, 16
      %v517 = vor.u32 %v515, %v513
      %v519 = vshll.u32 %v421, 16
      %v521 = vrot.slane %v519, 1
      %v522 = vsel %vm430, %v517, %v521
      %v523 = vshrl.u32 %v421, 16
      %v525 = vor.u32 %v523, %v521
      %v527 = vshll.u32 %v422, 16
      %v529 = vrot.slane %v527, 1
      %v530 = vsel %vm430, %v525, %v529
      %v531 = vshrl.u32 %v422, 16
      %v533 = vor.u32 %v531, %v529
      %v535 = vshll.u32 %v423, 16
      %v537 = vrot.slane %v535, 1
      %v538 = vsel %vm430, %v533, %v537
      %v539 = vshrl.u32 %v423, 16
      %v541 = vor.u32 %v539, %v537
      %v543 = vshll.u32 %v424, 16
      %v545 = vrot.slane %v543, 1
      %v546 = vsel %vm430, %v541, %v545
      %v547 = vshrl.u32 %v424, 16
      %v549 = vor.u32 %v547, %v545
      %v551 = vshll.u32 %v425, 16
      %v553 = vrot.slane %v551, 1
      %v554 = vsel %vm430, %v549, %v553
      %v555 = vshrl.u32 %v425, 16
      %v557 = vor.u32 %v555, %v553
      %v559 = vshll.u32 %v427, 16
      %v561 = vrot.slane %v559, 1
      %v562 = vsel %vm430, %v557, %v561
      %vm563 = vcmask 31744
      %v565 = vsel %vm563, %v442, 0
      %v568 = vsel %vm563, %v450, 0
      %v571 = vsel %vm563, %v458, 0
      %v574 = vsel %vm563, %v466, 0
      %v577 = vsel %vm563, %v474, 0
      %v580 = vsel %vm563, %v482, 0
      %v583 = vsel %vm563, %v490, 0
      %v586 = vsel %vm563, %v498, 0
      %v589 = vsel %vm563, %v506, 0
      %v592 = vsel %vm563, %v514, 0
      %v595 = vsel %vm563, %v522, 0
      %v598 = vsel %vm563, %v530, 0
      %v601 = vsel %vm563, %v538, 0
      %v604 = vsel %vm563, %v546, 0
      %v607 = vsel %vm563, %v554, 0
      %v610 = vsel %vm563, %v562, 0
      %vm612 = vcmask 1041408
      %v614 = vsel %vm612, %v429, 0
      %616 = vmatprep.subr.bf16.mxu0 0
      %617 = vmatpush1.bf16.msra.mxu0 0
      %618 = vmatprep.subr.bf16.mxu0 0
      %619 = vmatpush1.bf16.msra.mxu0 0
      %620 = vmatprep.subr.bf16.mxu0 0
      %621 = vmatpush1.bf16.msra.mxu0 0
      %622 = vmatprep.subr.bf16.mxu0 0
      %623 = vmatpush1.bf16.msra.mxu0 0
      %624 = vmatprep.subr.bf16.mxu0 0
      %625 = vmatpush1.bf16.msra.mxu0 0
      %626 = vmatprep.subr.bf16.mxu0 0
      %627 = vmatpush1.bf16.msra.mxu0 0
      %628 = vmatprep.subr.bf16.mxu0 0
      %629 = vmatpush1.bf16.msra.mxu0 0
      %630 = vmatprep.subr.bf16.mxu0 0
      %631 = vmatpush1.bf16.msra.mxu0 %v614
      %632 = vmatprep.subr.bf16.mxu0 0
      %633 = vmatpush2.bf16.msra.mxu0 0
      %634 = vmatprep.subr.bf16.mxu0 0
      %635 = vmatpush2.bf16.msra.mxu0 0
      %636 = vmatprep.subr.bf16.mxu0 0
      %637 = vmatpush2.bf16.msra.mxu0 0
      %638 = vmatprep.subr.bf16.mxu0 0
      %639 = vmatpush2.bf16.msra.mxu0 0
      %640 = vmatprep.subr.bf16.mxu0 0
      %641 = vmatpush2.bf16.msra.mxu0 0
      %642 = vmatprep.subr.bf16.mxu0 0
      %643 = vmatpush2.bf16.msra.mxu0 0
      %644 = vmatprep.subr.bf16.mxu0 0
      %645 = vmatpush2.bf16.msra.mxu0 0
      %646 = vmatprep.subr.bf16.mxu0 0
      %647 = vmatpush2.bf16.msra.mxu0 0
      %648 = vmatprep.mubr.bf16.mxu0 0
      %649 = vmatmul.mubr.bf16.gmra.mxu0 %v565
      %v650 = vpop.f32.mrf.mxu0
      %v651 = vadd.f32 0.0, %v650
      %v652 = vpop.f32.mrf.mxu0
      %v653 = vpop.f32.mrf.mxu0
      %v654 = vadd.f32 0.0, %v653
      %v655 = vpop.f32.mrf.mxu0
      %656 = vmatprep.mubr.bf16.mxu0 0
      %657 = vmatmul.mubr.bf16.gmra.mxu0 %v568
      %v658 = vpop.f32.mrf.mxu0
      %v659 = vadd.f32 0.0, %v658
      %v660 = vpop.f32.mrf.mxu0
      %v661 = vpop.f32.mrf.mxu0
      %v662 = vadd.f32 0.0, %v661
      %v663 = vpop.f32.mrf.mxu0
      %664 = vmatprep.mubr.bf16.mxu0 0
      %665 = vmatmul.mubr.bf16.gmra.mxu0 %v571
      %v666 = vpop.f32.mrf.mxu0
      %v667 = vadd.f32 0.0, %v666
      %v668 = vpop.f32.mrf.mxu0
      %v669 = vpop.f32.mrf.mxu0
      %v670 = vadd.f32 0.0, %v669
      %v671 = vpop.f32.mrf.mxu0
      %672 = vmatprep.mubr.bf16.mxu0 0
      %673 = vmatmul.mubr.bf16.gmra.mxu0 %v574
      %v674 = vpop.f32.mrf.mxu0
      %v675 = vadd.f32 0.0, %v674
      %v676 = vpop.f32.mrf.mxu0
      %v677 = vpop.f32.mrf.mxu0
      %v678 = vadd.f32 0.0, %v677
      %v679 = vpop.f32.mrf.mxu0
      %680 = vmatprep.mubr.bf16.mxu0 0
      %681 = vmatmul.mubr.bf16.gmra.mxu0 %v577
      %v682 = vpop.f32.mrf.mxu0
      %v683 = vadd.f32 0.0, %v682
      %v684 = vpop.f32.mrf.mxu0
      %v685 = vpop.f32.mrf.mxu0
      %v686 = vadd.f32 0.0, %v685
      %v687 = vpop.f32.mrf.mxu0
      %688 = vmatprep.mubr.bf16.mxu0 0
      %689 = vmatmul.mubr.bf16.gmra.mxu0 %v580
      %v690 = vpop.f32.mrf.mxu0
      %v691 = vadd.f32 0.0, %v690
      %v692 = vpop.f32.mrf.mxu0
      %v693 = vpop.f32.mrf.mxu0
      %v694 = vadd.f32 0.0, %v693
      %v695 = vpop.f32.mrf.mxu0
      %696 = vmatprep.mubr.bf16.mxu0 0
      %697 = vmatmul.mubr.bf16.gmra.mxu0 %v583
      %v698 = vpop.f32.mrf.mxu0
      %v699 = vadd.f32 0.0, %v698
      %v700 = vpop.f32.mrf.mxu0
      %v701 = vpop.f32.mrf.mxu0
      %v702 = vadd.f32 0.0, %v701
      %v703 = vpop.f32.mrf.mxu0
      %704 = vmatprep.mubr.bf16.mxu0 0
      %705 = vmatmul.mubr.bf16.gmra.mxu0 %v586
      %v706 = vpop.f32.mrf.mxu0
      %v707 = vadd.f32 0.0, %v706
      %v708 = vpop.f32.mrf.mxu0
      %v709 = vpop.f32.mrf.mxu0
      %v710 = vadd.f32 0.0, %v709
      %v711 = vpop.f32.mrf.mxu0
      %712 = vmatprep.mubr.bf16.mxu0 0
      %713 = vmatmul.mubr.bf16.gmra.mxu0 %v589
      %v714 = vpop.f32.mrf.mxu0
      %v715 = vadd.f32 0.0, %v714
      %v716 = vpop.f32.mrf.mxu0
      %v717 = vpop.f32.mrf.mxu0
      %v718 = vadd.f32 0.0, %v717
      %v719 = vpop.f32.mrf.mxu0
      %720 = vmatprep.mubr.bf16.mxu0 0
      %721 = vmatmul.mubr.bf16.gmra.mxu0 %v592
      %v722 = vpop.f32.mrf.mxu0
      %v723 = vadd.f32 0.0, %v722
      %v724 = vpop.f32.mrf.mxu0
      %v725 = vpop.f32.mrf.mxu0
      %v726 = vadd.f32 0.0, %v725
      %v727 = vpop.f32.mrf.mxu0
      %728 = vmatprep.mubr.bf16.mxu0 0
      %729 = vmatmul.mubr.bf16.gmra.mxu0 %v595
      %v730 = vpop.f32.mrf.mxu0
      %v731 = vadd.f32 0.0, %v730
      %v732 = vpop.f32.mrf.mxu0
      %v733 = vpop.f32.mrf.mxu0
      %v734 = vadd.f32 0.0, %v733
      %v735 = vpop.f32.mrf.mxu0
      %736 = vmatprep.mubr.bf16.mxu0 0
      %737 = vmatmul.mubr.bf16.gmra.mxu0 %v598
      %v738 = vpop.f32.mrf.mxu0
      %v739 = vadd.f32 0.0, %v738
      %v740 = vpop.f32.mrf.mxu0
      %v741 = vpop.f32.mrf.mxu0
      %v742 = vadd.f32 0.0, %v741
      %v743 = vpop.f32.mrf.mxu0
      %744 = vmatprep.mubr.bf16.mxu0 0
      %745 = vmatmul.mubr.bf16.gmra.mxu0 %v601
      %v746 = vpop.f32.mrf.mxu0
      %v747 = vadd.f32 0.0, %v746
      %v748 = vpop.f32.mrf.mxu0
      %v749 = vpop.f32.mrf.mxu0
      %v750 = vadd.f32 0.0, %v749
      %v751 = vpop.f32.mrf.mxu0
      %752 = vmatprep.mubr.bf16.mxu0 0
      %753 = vmatmul.mubr.bf16.gmra.mxu0 %v604
      %v754 = vpop.f32.mrf.mxu0
      %v755 = vadd.f32 0.0, %v754
      %v756 = vpop.f32.mrf.mxu0
      %v757 = vpop.f32.mrf.mxu0
      %v758 = vadd.f32 0.0, %v757
      %v759 = vpop.f32.mrf.mxu0
      %760 = vmatprep.mubr.bf16.mxu0 0
      %761 = vmatmul.mubr.bf16.gmra.mxu0 %v607
      %v762 = vpop.f32.mrf.mxu0
      %v763 = vadd.f32 0.0, %v762
      %v764 = vpop.f32.mrf.mxu0
      %v765 = vpop.f32.mrf.mxu0
      %v766 = vadd.f32 0.0, %v765
      %v767 = vpop.f32.mrf.mxu0
      %768 = vmatprep.mubr.bf16.mxu0 0
      %769 = vmatmul.mubr.bf16.gmra.mxu0 %v610
      %v770 = vpop.f32.mrf.mxu0
      %v771 = vadd.f32 0.0, %v770
      %v772 = vpop.f32.mrf.mxu0
      %v773 = vpop.f32.mrf.mxu0
      %v774 = vadd.f32 0.0, %v773
      %v775 = vpop.f32.mrf.mxu0
      %776 = vdwg.mxu0
      %v777 = vsel %vm563, %v410, 0
      %v779 = vsel %vm563, %v411, 0
      %v781 = vsel %vm563, %v412, 0
      %v783 = vsel %vm563, %v413, 0
      %v785 = vsel %vm563, %v414, 0
      %v787 = vsel %vm563, %v415, 0
      %v789 = vsel %vm563, %v416, 0
      %v791 = vsel %vm563, %v417, 0
      %v793 = vsel %vm563, %v418, 0
      %v795 = vsel %vm563, %v419, 0
      %v797 = vsel %vm563, %v420, 0
      %v799 = vsel %vm563, %v421, 0
      %v801 = vsel %vm563, %v422, 0
      %v803 = vsel %vm563, %v423, 0
      %v805 = vsel %vm563, %v424, 0
      %v807 = vsel %vm563, %v425, 0
      %v810 = vsel %vm612, %v426, 0
      %812 = vmatprep.subr.bf16.mxu0 0
      %813 = vmatpush1.bf16.msra.mxu0 0
      %814 = vmatprep.subr.bf16.mxu0 0
      %815 = vmatpush1.bf16.msra.mxu0 0
      %816 = vmatprep.subr.bf16.mxu0 0
      %817 = vmatpush1.bf16.msra.mxu0 0
      %818 = vmatprep.subr.bf16.mxu0 0
      %819 = vmatpush1.bf16.msra.mxu0 0
      %820 = vmatprep.subr.bf16.mxu0 0
      %821 = vmatpush1.bf16.msra.mxu0 0
      %822 = vmatprep.subr.bf16.mxu0 0
      %823 = vmatpush1.bf16.msra.mxu0 0
      %824 = vmatprep.subr.bf16.mxu0 0
      %825 = vmatpush1.bf16.msra.mxu0 0
      %826 = vmatprep.subr.bf16.mxu0 0
      %827 = vmatpush1.bf16.msra.mxu0 %v810
      %828 = vmatprep.subr.bf16.mxu0 0
      %829 = vmatpush2.bf16.msra.mxu0 0
      %830 = vmatprep.subr.bf16.mxu0 0
      %831 = vmatpush2.bf16.msra.mxu0 0
      %832 = vmatprep.subr.bf16.mxu0 0
      %833 = vmatpush2.bf16.msra.mxu0 0
      %834 = vmatprep.subr.bf16.mxu0 0
      %835 = vmatpush2.bf16.msra.mxu0 0
      %836 = vmatprep.subr.bf16.mxu0 0
      %837 = vmatpush2.bf16.msra.mxu0 0
      %838 = vmatprep.subr.bf16.mxu0 0
      %839 = vmatpush2.bf16.msra.mxu0 0
      %840 = vmatprep.subr.bf16.mxu0 0
      %841 = vmatpush2.bf16.msra.mxu0 0
      %842 = vmatprep.subr.bf16.mxu0 0
      %843 = vmatpush2.bf16.msra.mxu0 0
      %844 = vmatprep.mubr.bf16.mxu0 0
      %845 = vmatmul.mubr.bf16.gmra.mxu0 %v777
      %v846 = vpop.f32.mrf.mxu0
      %v847 = vadd.f32 %v651, %v846
      %v848 = vpop.f32.mrf.mxu0
      %v849 = vpop.f32.mrf.mxu0
      %v850 = vadd.f32 %v654, %v849
      %v851 = vpop.f32.mrf.mxu0
      %852 = vmatprep.mubr.bf16.mxu0 0
      %853 = vmatmul.mubr.bf16.gmra.mxu0 %v779
      %v854 = vpop.f32.mrf.mxu0
      %v855 = vadd.f32 %v659, %v854
      %v856 = vpop.f32.mrf.mxu0
      %v857 = vpop.f32.mrf.mxu0
      %v858 = vadd.f32 %v662, %v857
      %v859 = vpop.f32.mrf.mxu0
      %860 = vmatprep.mubr.bf16.mxu0 0
      %861 = vmatmul.mubr.bf16.gmra.mxu0 %v781
      %v862 = vpop.f32.mrf.mxu0
      %v863 = vadd.f32 %v667, %v862
      %v864 = vpop.f32.mrf.mxu0
      %v865 = vpop.f32.mrf.mxu0
      %v866 = vadd.f32 %v670, %v865
      %v867 = vpop.f32.mrf.mxu0
      %868 = vmatprep.mubr.bf16.mxu0 0
      %869 = vmatmul.mubr.bf16.gmra.mxu0 %v783
      %v870 = vpop.f32.mrf.mxu0
      %v871 = vadd.f32 %v675, %v870
      %v872 = vpop.f32.mrf.mxu0
      %v873 = vpop.f32.mrf.mxu0
      %v874 = vadd.f32 %v678, %v873
      %v875 = vpop.f32.mrf.mxu0
      %876 = vmatprep.mubr.bf16.mxu0 0
      %877 = vmatmul.mubr.bf16.gmra.mxu0 %v785
      %v878 = vpop.f32.mrf.mxu0
      %v879 = vadd.f32 %v683, %v878
      %v880 = vpop.f32.mrf.mxu0
      %v881 = vpop.f32.mrf.mxu0
      %v882 = vadd.f32 %v686, %v881
      %v883 = vpop.f32.mrf.mxu0
      %884 = vmatprep.mubr.bf16.mxu0 0
      %885 = vmatmul.mubr.bf16.gmra.mxu0 %v787
      %v886 = vpop.f32.mrf.mxu0
      %v887 = vadd.f32 %v691, %v886
      %v888 = vpop.f32.mrf.mxu0
      %v889 = vpop.f32.mrf.mxu0
      %v890 = vadd.f32 %v694, %v889
      %v891 = vpop.f32.mrf.mxu0
      %892 = vmatprep.mubr.bf16.mxu0 0
      %893 = vmatmul.mubr.bf16.gmra.mxu0 %v789
      %v894 = vpop.f32.mrf.mxu0
      %v895 = vadd.f32 %v699, %v894
      %v896 = vpop.f32.mrf.mxu0
      %v897 = vpop.f32.mrf.mxu0
      %v898 = vadd.f32 %v702, %v897
      %v899 = vpop.f32.mrf.mxu0
      %900 = vmatprep.mubr.bf16.mxu0 0
      %901 = vmatmul.mubr.bf16.gmra.mxu0 %v791
      %v902 = vpop.f32.mrf.mxu0
      %v903 = vadd.f32 %v707, %v902
      %v904 = vpop.f32.mrf.mxu0
      %v905 = vpop.f32.mrf.mxu0
      %v906 = vadd.f32 %v710, %v905
      %v907 = vpop.f32.mrf.mxu0
      %908 = vmatprep.mubr.bf16.mxu0 0
      %909 = vmatmul.mubr.bf16.gmra.mxu0 %v793
      %v910 = vpop.f32.mrf.mxu0
      %v911 = vadd.f32 %v715, %v910
      %v912 = vpop.f32.mrf.mxu0
      %v913 = vpop.f32.mrf.mxu0
      %v914 = vadd.f32 %v718, %v913
      %v915 = vpop.f32.mrf.mxu0
      %916 = vmatprep.mubr.bf16.mxu0 0
      %917 = vmatmul.mubr.bf16.gmra.mxu0 %v795
      %v918 = vpop.f32.mrf.mxu0
      %v919 = vadd.f32 %v723, %v918
      %v920 = vpop.f32.mrf.mxu0
      %v921 = vpop.f32.mrf.mxu0
      %v922 = vadd.f32 %v726, %v921
      %v923 = vpop.f32.mrf.mxu0
      %924 = vmatprep.mubr.bf16.mxu0 0
      %925 = vmatmul.mubr.bf16.gmra.mxu0 %v797
      %v926 = vpop.f32.mrf.mxu0
      %v927 = vadd.f32 %v731, %v926
      %v928 = vpop.f32.mrf.mxu0
      %v929 = vpop.f32.mrf.mxu0
      %v930 = vadd.f32 %v734, %v929
      %v931 = vpop.f32.mrf.mxu0
      %932 = vmatprep.mubr.bf16.mxu0 0
      %933 = vmatmul.mubr.bf16.gmra.mxu0 %v799
      %v934 = vpop.f32.mrf.mxu0
      %v935 = vadd.f32 %v739, %v934
      %v936 = vpop.f32.mrf.mxu0
      %v937 = vpop.f32.mrf.mxu0
      %v938 = vadd.f32 %v742, %v937
      %v939 = vpop.f32.mrf.mxu0
      %940 = vmatprep.mubr.bf16.mxu0 0
      %941 = vmatmul.mubr.bf16.gmra.mxu0 %v801
      %v942 = vpop.f32.mrf.mxu0
      %v943 = vadd.f32 %v747, %v942
      %v944 = vpop.f32.mrf.mxu0
      %v945 = vpop.f32.mrf.mxu0
      %v946 = vadd.f32 %v750, %v945
      %v947 = vpop.f32.mrf.mxu0
      %948 = vmatprep.mubr.bf16.mxu0 0
      %949 = vmatmul.mubr.bf16.gmra.mxu0 %v803
      %v950 = vpop.f32.mrf.mxu0
      %v951 = vadd.f32 %v755, %v950
      %v952 = vpop.f32.mrf.mxu0
      %v953 = vpop.f32.mrf.mxu0
      %v954 = vadd.f32 %v758, %v953
      %v955 = vpop.f32.mrf.mxu0
      %956 = vmatprep.mubr.bf16.mxu0 0
      %957 = vmatmul.mubr.bf16.gmra.mxu0 %v805
      %v958 = vpop.f32.mrf.mxu0
      %v959 = vadd.f32 %v763, %v958
      %v960 = vpop.f32.mrf.mxu0
      %v961 = vpop.f32.mrf.mxu0
      %v962 = vadd.f32 %v766, %v961
      %v963 = vpop.f32.mrf.mxu0
      %964 = vmatprep.mubr.bf16.mxu0 0
      %965 = vmatmul.mubr.bf16.gmra.mxu0 %v807
      %v966 = vpop.f32.mrf.mxu0
      %v967 = vadd.f32 %v771, %v966
      %v968 = vpop.f32.mrf.mxu0
      %v969 = vpop.f32.mrf.mxu0
      %v970 = vadd.f32 %v774, %v969
      %v971 = vpop.f32.mrf.mxu0
      %972 = vdwg.mxu0
      %s973 = scalar_lea.vmem %s318, 4
      %v974 = vld [vmem:[%s973] sm:$0x3]
      %vm992 = vcmask 1046528
      %v993 = vrot.slane %v410, 1
      %v994 = vrot.slane %v411, 1
      %v995 = vsel %vm992, %v993, %v994
      %v996 = vrot.slane %v412, 1
      %v997 = vsel %vm992, %v994, %v996
      %v998 = vrot.slane %v413, 1
      %v999 = vsel %vm992, %v996, %v998
      %v1000 = vrot.slane %v414, 1
      %v1001 = vsel %vm992, %v998, %v1000
      %v1002 = vrot.slane %v415, 1
      %v1003 = vsel %vm992, %v1000, %v1002
      %v1004 = vrot.slane %v416, 1
      %v1005 = vsel %vm992, %v1002, %v1004
      %v1006 = vrot.slane %v417, 1
      %v1007 = vsel %vm992, %v1004, %v1006
      %v1008 = vrot.slane %v418, 1
      %v1009 = vsel %vm992, %v1006, %v1008
      %v1010 = vrot.slane %v419, 1
      %v1011 = vsel %vm992, %v1008, %v1010
      %v1012 = vrot.slane %v420, 1
      %v1013 = vsel %vm992, %v1010, %v1012
      %v1014 = vrot.slane %v421, 1
      %v1015 = vsel %vm992, %v1012, %v1014
      %v1016 = vrot.slane %v422, 1
      %v1017 = vsel %vm992, %v1014, %v1016
      %v1018 = vrot.slane %v423, 1
      %v1019 = vsel %vm992, %v1016, %v1018
      %v1020 = vrot.slane %v424, 1
      %v1021 = vsel %vm992, %v1018, %v1020
      %v1022 = vrot.slane %v425, 1
      %v1023 = vsel %vm992, %v1020, %v1022
      %v1024 = vrot.slane %v427, 1
      %v1025 = vsel %vm992, %v1022, %v1024
      %v1027 = vsel %vm563, %v995, 0
      %v1030 = vsel %vm563, %v997, 0
      %v1033 = vsel %vm563, %v999, 0
      %v1036 = vsel %vm563, %v1001, 0
      %v1039 = vsel %vm563, %v1003, 0
      %v1042 = vsel %vm563, %v1005, 0
      %v1045 = vsel %vm563, %v1007, 0
      %v1048 = vsel %vm563, %v1009, 0
      %v1051 = vsel %vm563, %v1011, 0
      %v1054 = vsel %vm563, %v1013, 0
      %v1057 = vsel %vm563, %v1015, 0
      %v1060 = vsel %vm563, %v1017, 0
      %v1063 = vsel %vm563, %v1019, 0
      %v1066 = vsel %vm563, %v1021, 0
      %v1069 = vsel %vm563, %v1023, 0
      %v1072 = vsel %vm563, %v1025, 0
      %v1075 = vsel %vm612, %v974, 0
      %1077 = vmatprep.subr.bf16.mxu0 0
      %1078 = vmatpush1.bf16.msra.mxu0 0
      %1079 = vmatprep.subr.bf16.mxu0 0
      %1080 = vmatpush1.bf16.msra.mxu0 0
      %1081 = vmatprep.subr.bf16.mxu0 0
      %1082 = vmatpush1.bf16.msra.mxu0 0
      %1083 = vmatprep.subr.bf16.mxu0 0
      %1084 = vmatpush1.bf16.msra.mxu0 0
      %1085 = vmatprep.subr.bf16.mxu0 0
      %1086 = vmatpush1.bf16.msra.mxu0 0
      %1087 = vmatprep.subr.bf16.mxu0 0
      %1088 = vmatpush1.bf16.msra.mxu0 0
      %1089 = vmatprep.subr.bf16.mxu0 0
      %1090 = vmatpush1.bf16.msra.mxu0 0
      %1091 = vmatprep.subr.bf16.mxu0 0
      %1092 = vmatpush1.bf16.msra.mxu0 %v1075
      %1093 = vmatprep.subr.bf16.mxu0 0
      %1094 = vmatpush2.bf16.msra.mxu0 0
      %1095 = vmatprep.subr.bf16.mxu0 0
      %1096 = vmatpush2.bf16.msra.mxu0 0
      %1097 = vmatprep.subr.bf16.mxu0 0
      %1098 = vmatpush2.bf16.msra.mxu0 0
      %1099 = vmatprep.subr.bf16.mxu0 0
      %1100 = vmatpush2.bf16.msra.mxu0 0
      %1101 = vmatprep.subr.bf16.mxu0 0
      %1102 = vmatpush2.bf16.msra.mxu0 0
      %1103 = vmatprep.subr.bf16.mxu0 0
      %1104 = vmatpush2.bf16.msra.mxu0 0
      %1105 = vmatprep.subr.bf16.mxu0 0
      %1106 = vmatpush2.bf16.msra.mxu0 0
      %1107 = vmatprep.subr.bf16.mxu0 0
      %1108 = vmatpush2.bf16.msra.mxu0 0
      %1109 = vmatprep.mubr.bf16.mxu0 0
      %1110 = vmatmul.mubr.bf16.gmra.mxu0 %v1027
      %v1111 = vpop.f32.mrf.mxu0
      %v1112 = vadd.f32 0.0, %v1111
      %v1113 = vpop.f32.mrf.mxu0
      %v1114 = vpop.f32.mrf.mxu0
      %v1115 = vadd.f32 0.0, %v1114
      %v1116 = vpop.f32.mrf.mxu0
      %1117 = vmatprep.mubr.bf16.mxu0 0
      %1118 = vmatmul.mubr.bf16.gmra.mxu0 %v1030
      %v1119 = vpop.f32.mrf.mxu0
      %v1120 = vadd.f32 0.0, %v1119
      %v1121 = vpop.f32.mrf.mxu0
      %v1122 = vpop.f32.mrf.mxu0
      %v1123 = vadd.f32 0.0, %v1122
      %v1124 = vpop.f32.mrf.mxu0
      %1125 = vmatprep.mubr.bf16.mxu0 0
      %1126 = vmatmul.mubr.bf16.gmra.mxu0 %v1033
      %v1127 = vpop.f32.mrf.mxu0
      %v1128 = vadd.f32 0.0, %v1127
      %v1129 = vpop.f32.mrf.mxu0
      %v1130 = vpop.f32.mrf.mxu0
      %v1131 = vadd.f32 0.0, %v1130
      %v1132 = vpop.f32.mrf.mxu0
      %1133 = vmatprep.mubr.bf16.mxu0 0
      %1134 = vmatmul.mubr.bf16.gmra.mxu0 %v1036
      %v1135 = vpop.f32.mrf.mxu0
      %v1136 = vadd.f32 0.0, %v1135
      %v1137 = vpop.f32.mrf.mxu0
      %v1138 = vpop.f32.mrf.mxu0
      %v1139 = vadd.f32 0.0, %v1138
      %v1140 = vpop.f32.mrf.mxu0
      %1141 = vmatprep.mubr.bf16.mxu0 0
      %1142 = vmatmul.mubr.bf16.gmra.mxu0 %v1039
      %v1143 = vpop.f32.mrf.mxu0
      %v1144 = vadd.f32 0.0, %v1143
      %v1145 = vpop.f32.mrf.mxu0
      %v1146 = vpop.f32.mrf.mxu0
      %v1147 = vadd.f32 0.0, %v1146
      %v1148 = vpop.f32.mrf.mxu0
      %1149 = vmatprep.mubr.bf16.mxu0 0
      %1150 = vmatmul.mubr.bf16.gmra.mxu0 %v1042
      %v1151 = vpop.f32.mrf.mxu0
      %v1152 = vadd.f32 0.0, %v1151
      %v1153 = vpop.f32.mrf.mxu0
      %v1154 = vpop.f32.mrf.mxu0
      %v1155 = vadd.f32 0.0, %v1154
      %v1156 = vpop.f32.mrf.mxu0
      %1157 = vmatprep.mubr.bf16.mxu0 0
      %1158 = vmatmul.mubr.bf16.gmra.mxu0 %v1045
      %v1159 = vpop.f32.mrf.mxu0
      %v1160 = vadd.f32 0.0, %v1159
      %v1161 = vpop.f32.mrf.mxu0
      %v1162 = vpop.f32.mrf.mxu0
      %v1163 = vadd.f32 0.0, %v1162
      %v1164 = vpop.f32.mrf.mxu0
      %1165 = vmatprep.mubr.bf16.mxu0 0
      %1166 = vmatmul.mubr.bf16.gmra.mxu0 %v1048
      %v1167 = vpop.f32.mrf.mxu0
      %v1168 = vadd.f32 0.0, %v1167
      %v1169 = vpop.f32.mrf.mxu0
      %v1170 = vpop.f32.mrf.mxu0
      %v1171 = vadd.f32 0.0, %v1170
      %v1172 = vpop.f32.mrf.mxu0
      %1173 = vmatprep.mubr.bf16.mxu0 0
      %1174 = vmatmul.mubr.bf16.gmra.mxu0 %v1051
      %v1175 = vpop.f32.mrf.mxu0
      %v1176 = vadd.f32 0.0, %v1175
      %v1177 = vpop.f32.mrf.mxu0
      %v1178 = vpop.f32.mrf.mxu0
      %v1179 = vadd.f32 0.0, %v1178
      %v1180 = vpop.f32.mrf.mxu0
      %1181 = vmatprep.mubr.bf16.mxu0 0
      %1182 = vmatmul.mubr.bf16.gmra.mxu0 %v1054
      %v1183 = vpop.f32.mrf.mxu0
      %v1184 = vadd.f32 0.0, %v1183
      %v1185 = vpop.f32.mrf.mxu0
      %v1186 = vpop.f32.mrf.mxu0
      %v1187 = vadd.f32 0.0, %v1186
      %v1188 = vpop.f32.mrf.mxu0
      %1189 = vmatprep.mubr.bf16.mxu0 0
      %1190 = vmatmul.mubr.bf16.gmra.mxu0 %v1057
      %v1191 = vpop.f32.mrf.mxu0
      %v1192 = vadd.f32 0.0, %v1191
      %v1193 = vpop.f32.mrf.mxu0
      %v1194 = vpop.f32.mrf.mxu0
      %v1195 = vadd.f32 0.0, %v1194
      %v1196 = vpop.f32.mrf.mxu0
      %1197 = vmatprep.mubr.bf16.mxu0 0
      %1198 = vmatmul.mubr.bf16.gmra.mxu0 %v1060
      %v1199 = vpop.f32.mrf.mxu0
      %v1200 = vadd.f32 0.0, %v1199
      %v1201 = vpop.f32.mrf.mxu0
      %v1202 = vpop.f32.mrf.mxu0
      %v1203 = vadd.f32 0.0, %v1202
      %v1204 = vpop.f32.mrf.mxu0
      %1205 = vmatprep.mubr.bf16.mxu0 0
      %1206 = vmatmul.mubr.bf16.gmra.mxu0 %v1063
      %v1207 = vpop.f32.mrf.mxu0
      %v1208 = vadd.f32 0.0, %v1207
      %v1209 = vpop.f32.mrf.mxu0
      %v1210 = vpop.f32.mrf.mxu0
      %v1211 = vadd.f32 0.0, %v1210
      %v1212 = vpop.f32.mrf.mxu0
      %1213 = vmatprep.mubr.bf16.mxu0 0
      %1214 = vmatmul.mubr.bf16.gmra.mxu0 %v1066
      %v1215 = vpop.f32.mrf.mxu0
      %v1216 = vadd.f32 0.0, %v1215
      %v1217 = vpop.f32.mrf.mxu0
      %v1218 = vpop.f32.mrf.mxu0
      %v1219 = vadd.f32 0.0, %v1218
      %v1220 = vpop.f32.mrf.mxu0
      %1221 = vmatprep.mubr.bf16.mxu0 0
      %1222 = vmatmul.mubr.bf16.gmra.mxu0 %v1069
      %v1223 = vpop.f32.mrf.mxu0
      %v1224 = vadd.f32 0.0, %v1223
      %v1225 = vpop.f32.mrf.mxu0
      %v1226 = vpop.f32.mrf.mxu0
      %v1227 = vadd.f32 0.0, %v1226
      %v1228 = vpop.f32.mrf.mxu0
      %1229 = vmatprep.mubr.bf16.mxu0 0
      %1230 = vmatmul.mubr.bf16.gmra.mxu0 %v1072
      %v1231 = vpop.f32.mrf.mxu0
      %v1232 = vadd.f32 0.0, %v1231
      %v1233 = vpop.f32.mrf.mxu0
      %v1234 = vpop.f32.mrf.mxu0
      %v1235 = vadd.f32 0.0, %v1234
      %v1236 = vpop.f32.mrf.mxu0
      %1237 = vdwg.mxu0
      %v1238 = vadd.f32 %v847, %v1112
      %v1239 = vadd.f32 %v850, %v1115
      %v1240 = vadd.f32 %v855, %v1120
      %v1241 = vadd.f32 %v858, %v1123
      %v1242 = vadd.f32 %v863, %v1128
      %v1243 = vadd.f32 %v866, %v1131
      %v1244 = vadd.f32 %v871, %v1136
      %v1245 = vadd.f32 %v874, %v1139
      %v1246 = vadd.f32 %v879, %v1144
      %v1247 = vadd.f32 %v882, %v1147
      %v1248 = vadd.f32 %v887, %v1152
      %v1249 = vadd.f32 %v890, %v1155
      %v1250 = vadd.f32 %v895, %v1160
      %v1251 = vadd.f32 %v898, %v1163
      %v1252 = vadd.f32 %v903, %v1168
      %v1253 = vadd.f32 %v906, %v1171
      %v1254 = vadd.f32 %v911, %v1176
      %v1255 = vadd.f32 %v914, %v1179
      %v1256 = vadd.f32 %v919, %v1184
      %v1257 = vadd.f32 %v922, %v1187
      %v1258 = vadd.f32 %v927, %v1192
      %v1259 = vadd.f32 %v930, %v1195
      %v1260 = vadd.f32 %v935, %v1200
      %v1261 = vadd.f32 %v938, %v1203
      %v1262 = vadd.f32 %v943, %v1208
      %v1263 = vadd.f32 %v946, %v1211
      %v1264 = vadd.f32 %v951, %v1216
      %v1265 = vadd.f32 %v954, %v1219
      %v1266 = vadd.f32 %v959, %v1224
      %v1267 = vadd.f32 %v962, %v1227
      %v1268 = vadd.f32 %v967, %v1232
      %v1269 = vadd.f32 %v970, %v1235
      %v1270 = vpack.c.bf16 %v406, %v405
      %s1271 = scalar_lea.vmem %s318, 6
      %v1272 = vld [vmem:[%s1271] sm:$0x3]
      %v1274 = vsel %vm563, %v1270, 0
      %v1277 = vsel %vm612, %v1272, 0
      %1279 = vmatprep.subr.bf16.mxu0 0
      %1280 = vmatpush1.bf16.msra.mxu0 0
      %1281 = vmatprep.subr.bf16.mxu0 0
      %1282 = vmatpush1.bf16.msra.mxu0 0
      %1283 = vmatprep.subr.bf16.mxu0 0
      %1284 = vmatpush1.bf16.msra.mxu0 0
      %1285 = vmatprep.subr.bf16.mxu0 0
      %1286 = vmatpush1.bf16.msra.mxu0 0
      %1287 = vmatprep.subr.bf16.mxu0 0
      %1288 = vmatpush1.bf16.msra.mxu0 0
      %1289 = vmatprep.subr.bf16.mxu0 0
      %1290 = vmatpush1.bf16.msra.mxu0 0
      %1291 = vmatprep.subr.bf16.mxu0 0
      %1292 = vmatpush1.bf16.msra.mxu0 0
      %1293 = vmatprep.subr.bf16.mxu0 0
      %1294 = vmatpush1.bf16.msra.mxu0 %v1277
      %1295 = vmatprep.subr.bf16.mxu0 0
      %1296 = vmatpush2.bf16.msra.mxu0 0
      %1297 = vmatprep.subr.bf16.mxu0 0
      %1298 = vmatpush2.bf16.msra.mxu0 0
      %1299 = vmatprep.subr.bf16.mxu0 0
      %1300 = vmatpush2.bf16.msra.mxu0 0
      %1301 = vmatprep.subr.bf16.mxu0 0
      %1302 = vmatpush2.bf16.msra.mxu0 0
      %1303 = vmatprep.subr.bf16.mxu0 0
      %1304 = vmatpush2.bf16.msra.mxu0 0
      %1305 = vmatprep.subr.bf16.mxu0 0
      %1306 = vmatpush2.bf16.msra.mxu0 0
      %1307 = vmatprep.subr.bf16.mxu0 0
      %1308 = vmatpush2.bf16.msra.mxu0 0
      %1309 = vmatprep.subr.bf16.mxu0 0
      %1310 = vmatpush2.bf16.msra.mxu0 0
      %1311 = vmatprep.mubr.bf16.mxu0 0
      %1312 = vmatmul.mubr.bf16.gmra.mxu0 %v779
      %v1313 = vpop.f32.mrf.mxu0
      %v1314 = vadd.f32 0.0, %v1313
      %v1315 = vpop.f32.mrf.mxu0
      %v1316 = vpop.f32.mrf.mxu0
      %v1317 = vadd.f32 0.0, %v1316
      %v1318 = vpop.f32.mrf.mxu0
      %1319 = vmatprep.mubr.bf16.mxu0 0
      %1320 = vmatmul.mubr.bf16.gmra.mxu0 %v781
      %v1321 = vpop.f32.mrf.mxu0
      %v1322 = vadd.f32 0.0, %v1321
      %v1323 = vpop.f32.mrf.mxu0
      %v1324 = vpop.f32.mrf.mxu0
      %v1325 = vadd.f32 0.0, %v1324
      %v1326 = vpop.f32.mrf.mxu0
      %1327 = vmatprep.mubr.bf16.mxu0 0
      %1328 = vmatmul.mubr.bf16.gmra.mxu0 %v783
      %v1329 = vpop.f32.mrf.mxu0
      %v1330 = vadd.f32 0.0, %v1329
      %v1331 = vpop.f32.mrf.mxu0
      %v1332 = vpop.f32.mrf.mxu0
      %v1333 = vadd.f32 0.0, %v1332
      %v1334 = vpop.f32.mrf.mxu0
      %1335 = vmatprep.mubr.bf16.mxu0 0
      %1336 = vmatmul.mubr.bf16.gmra.mxu0 %v785
      %v1337 = vpop.f32.mrf.mxu0
      %v1338 = vadd.f32 0.0, %v1337
      %v1339 = vpop.f32.mrf.mxu0
      %v1340 = vpop.f32.mrf.mxu0
      %v1341 = vadd.f32 0.0, %v1340
      %v1342 = vpop.f32.mrf.mxu0
      %1343 = vmatprep.mubr.bf16.mxu0 0
      %1344 = vmatmul.mubr.bf16.gmra.mxu0 %v787
      %v1345 = vpop.f32.mrf.mxu0
      %v1346 = vadd.f32 0.0, %v1345
      %v1347 = vpop.f32.mrf.mxu0
      %v1348 = vpop.f32.mrf.mxu0
      %v1349 = vadd.f32 0.0, %v1348
      %v1350 = vpop.f32.mrf.mxu0
      %1351 = vmatprep.mubr.bf16.mxu0 0
      %1352 = vmatmul.mubr.bf16.gmra.mxu0 %v789
      %v1353 = vpop.f32.mrf.mxu0
      %v1354 = vadd.f32 0.0, %v1353
      %v1355 = vpop.f32.mrf.mxu0
      %v1356 = vpop.f32.mrf.mxu0
      %v1357 = vadd.f32 0.0, %v1356
      %v1358 = vpop.f32.mrf.mxu0
      %1359 = vmatprep.mubr.bf16.mxu0 0
      %1360 = vmatmul.mubr.bf16.gmra.mxu0 %v791
      %v1361 = vpop.f32.mrf.mxu0
      %v1362 = vadd.f32 0.0, %v1361
      %v1363 = vpop.f32.mrf.mxu0
      %v1364 = vpop.f32.mrf.mxu0
      %v1365 = vadd.f32 0.0, %v1364
      %v1366 = vpop.f32.mrf.mxu0
      %1367 = vmatprep.mubr.bf16.mxu0 0
      %1368 = vmatmul.mubr.bf16.gmra.mxu0 %v793
      %v1369 = vpop.f32.mrf.mxu0
      %v1370 = vadd.f32 0.0, %v1369
      %v1371 = vpop.f32.mrf.mxu0
      %v1372 = vpop.f32.mrf.mxu0
      %v1373 = vadd.f32 0.0, %v1372
      %v1374 = vpop.f32.mrf.mxu0
      %1375 = vmatprep.mubr.bf16.mxu0 0
      %1376 = vmatmul.mubr.bf16.gmra.mxu0 %v795
      %v1377 = vpop.f32.mrf.mxu0
      %v1378 = vadd.f32 0.0, %v1377
      %v1379 = vpop.f32.mrf.mxu0
      %v1380 = vpop.f32.mrf.mxu0
      %v1381 = vadd.f32 0.0, %v1380
      %v1382 = vpop.f32.mrf.mxu0
      %1383 = vmatprep.mubr.bf16.mxu0 0
      %1384 = vmatmul.mubr.bf16.gmra.mxu0 %v797
      %v1385 = vpop.f32.mrf.mxu0
      %v1386 = vadd.f32 0.0, %v1385
      %v1387 = vpop.f32.mrf.mxu0
      %v1388 = vpop.f32.mrf.mxu0
      %v1389 = vadd.f32 0.0, %v1388
      %v1390 = vpop.f32.mrf.mxu0
      %1391 = vmatprep.mubr.bf16.mxu0 0
      %1392 = vmatmul.mubr.bf16.gmra.mxu0 %v799
      %v1393 = vpop.f32.mrf.mxu0
      %v1394 = vadd.f32 0.0, %v1393
      %v1395 = vpop.f32.mrf.mxu0
      %v1396 = vpop.f32.mrf.mxu0
      %v1397 = vadd.f32 0.0, %v1396
      %v1398 = vpop.f32.mrf.mxu0
      %1399 = vmatprep.mubr.bf16.mxu0 0
      %1400 = vmatmul.mubr.bf16.gmra.mxu0 %v801
      %v1401 = vpop.f32.mrf.mxu0
      %v1402 = vadd.f32 0.0, %v1401
      %v1403 = vpop.f32.mrf.mxu0
      %v1404 = vpop.f32.mrf.mxu0
      %v1405 = vadd.f32 0.0, %v1404
      %v1406 = vpop.f32.mrf.mxu0
      %1407 = vmatprep.mubr.bf16.mxu0 0
      %1408 = vmatmul.mubr.bf16.gmra.mxu0 %v803
      %v1409 = vpop.f32.mrf.mxu0
      %v1410 = vadd.f32 0.0, %v1409
      %v1411 = vpop.f32.mrf.mxu0
      %v1412 = vpop.f32.mrf.mxu0
      %v1413 = vadd.f32 0.0, %v1412
      %v1414 = vpop.f32.mrf.mxu0
      %1415 = vmatprep.mubr.bf16.mxu0 0
      %1416 = vmatmul.mubr.bf16.gmra.mxu0 %v805
      %v1417 = vpop.f32.mrf.mxu0
      %v1418 = vadd.f32 0.0, %v1417
      %v1419 = vpop.f32.mrf.mxu0
      %v1420 = vpop.f32.mrf.mxu0
      %v1421 = vadd.f32 0.0, %v1420
      %v1422 = vpop.f32.mrf.mxu0
      %1423 = vmatprep.mubr.bf16.mxu0 0
      %1424 = vmatmul.mubr.bf16.gmra.mxu0 %v807
      %v1425 = vpop.f32.mrf.mxu0
      %v1426 = vadd.f32 0.0, %v1425
      %v1427 = vpop.f32.mrf.mxu0
      %v1428 = vpop.f32.mrf.mxu0
      %v1429 = vadd.f32 0.0, %v1428
      %v1430 = vpop.f32.mrf.mxu0
      %1431 = vmatprep.mubr.bf16.mxu0 0
      %1432 = vmatmul.mubr.bf16.gmra.mxu0 %v1274
      %v1433 = vpop.f32.mrf.mxu0
      %v1434 = vadd.f32 0.0, %v1433
      %v1435 = vpop.f32.mrf.mxu0
      %v1436 = vpop.f32.mrf.mxu0
      %v1437 = vadd.f32 0.0, %v1436
      %v1438 = vpop.f32.mrf.mxu0
      %1439 = vdwg.mxu0
      %v1440 = vadd.f32 %v1238, %v1314
      %v1441 = vadd.f32 %v1239, %v1317
      %v1442 = vadd.f32 %v1240, %v1322
      %v1443 = vadd.f32 %v1241, %v1325
      %v1444 = vadd.f32 %v1242, %v1330
      %v1445 = vadd.f32 %v1243, %v1333
      %v1446 = vadd.f32 %v1244, %v1338
      %v1447 = vadd.f32 %v1245, %v1341
      %v1448 = vadd.f32 %v1246, %v1346
      %v1449 = vadd.f32 %v1247, %v1349
      %v1450 = vadd.f32 %v1248, %v1354
      %v1451 = vadd.f32 %v1249, %v1357
      %v1452 = vadd.f32 %v1250, %v1362
      %v1453 = vadd.f32 %v1251, %v1365
      %v1454 = vadd.f32 %v1252, %v1370
      %v1455 = vadd.f32 %v1253, %v1373
      %v1456 = vadd.f32 %v1254, %v1378
      %v1457 = vadd.f32 %v1255, %v1381
      %v1458 = vadd.f32 %v1256, %v1386
      %v1459 = vadd.f32 %v1257, %v1389
      %v1460 = vadd.f32 %v1258, %v1394
      %v1461 = vadd.f32 %v1259, %v1397
      %v1462 = vadd.f32 %v1260, %v1402
      %v1463 = vadd.f32 %v1261, %v1405
      %v1464 = vadd.f32 %v1262, %v1410
      %v1465 = vadd.f32 %v1263, %v1413
      %v1466 = vadd.f32 %v1264, %v1418
      %v1467 = vadd.f32 %v1265, %v1421
      %v1468 = vadd.f32 %v1266, %v1426
      %v1469 = vadd.f32 %v1267, %v1429
      %v1470 = vadd.f32 %v1268, %v1434
      %v1471 = vadd.f32 %v1269, %v1437
      %v1472 = vpack.c.bf16 %v407, %v407
      %s1473 = scalar_lea.vmem %s318, 8
      %v1474 = vld [vmem:[%s1473] sm:$0x3]
      %v1475 = vshll.u32 %v1270, 16
      %v1477 = vrot.slane %v1475, 1
      %v1478 = vsel %vm430, %v557, %v1477
      %v1479 = vshrl.u32 %v1270, 16
      %v1481 = vor.u32 %v1479, %v1477
      %v1483 = vshll.u32 %v1472, 16
      %v1485 = vrot.slane %v1483, 1
      %v1486 = vsel %vm430, %v1481, %v1485
      %v1488 = vsel %vm563, %v1478, 0
      %v1491 = vsel %vm563, %v1486, 0
      %v1494 = vsel %vm612, %v1474, 0
      %1496 = vmatprep.subr.bf16.mxu0 0
      %1497 = vmatpush1.bf16.msra.mxu0 0
      %1498 = vmatprep.subr.bf16.mxu0 0
      %1499 = vmatpush1.bf16.msra.mxu0 0
      %1500 = vmatprep.subr.bf16.mxu0 0
      %1501 = vmatpush1.bf16.msra.mxu0 0
      %1502 = vmatprep.subr.bf16.mxu0 0
      %1503 = vmatpush1.bf16.msra.mxu0 0
      %1504 = vmatprep.subr.bf16.mxu0 0
      %1505 = vmatpush1.bf16.msra.mxu0 0
      %1506 = vmatprep.subr.bf16.mxu0 0
      %1507 = vmatpush1.bf16.msra.mxu0 0
      %1508 = vmatprep.subr.bf16.mxu0 0
      %1509 = vmatpush1.bf16.msra.mxu0 0
      %1510 = vmatprep.subr.bf16.mxu0 0
      %1511 = vmatpush1.bf16.msra.mxu0 %v1494
      %1512 = vmatprep.subr.bf16.mxu0 0
      %1513 = vmatpush2.bf16.msra.mxu0 0
      %1514 = vmatprep.subr.bf16.mxu0 0
      %1515 = vmatpush2.bf16.msra.mxu0 0
      %1516 = vmatprep.subr.bf16.mxu0 0
      %1517 = vmatpush2.bf16.msra.mxu0 0
      %1518 = vmatprep.subr.bf16.mxu0 0
      %1519 = vmatpush2.bf16.msra.mxu0 0
      %1520 = vmatprep.subr.bf16.mxu0 0
      %1521 = vmatpush2.bf16.msra.mxu0 0
      %1522 = vmatprep.subr.bf16.mxu0 0
      %1523 = vmatpush2.bf16.msra.mxu0 0
      %1524 = vmatprep.subr.bf16.mxu0 0
      %1525 = vmatpush2.bf16.msra.mxu0 0
      %1526 = vmatprep.subr.bf16.mxu0 0
      %1527 = vmatpush2.bf16.msra.mxu0 0
      %1528 = vmatprep.mubr.bf16.mxu0 0
      %1529 = vmatmul.mubr.bf16.gmra.mxu0 %v568
      %v1530 = vpop.f32.mrf.mxu0
      %v1531 = vadd.f32 0.0, %v1530
      %v1532 = vpop.f32.mrf.mxu0
      %v1533 = vpop.f32.mrf.mxu0
      %v1534 = vadd.f32 0.0, %v1533
      %v1535 = vpop.f32.mrf.mxu0
      %1536 = vmatprep.mubr.bf16.mxu0 0
      %1537 = vmatmul.mubr.bf16.gmra.mxu0 %v571
      %v1538 = vpop.f32.mrf.mxu0
      %v1539 = vadd.f32 0.0, %v1538
      %v1540 = vpop.f32.mrf.mxu0
      %v1541 = vpop.f32.mrf.mxu0
      %v1542 = vadd.f32 0.0, %v1541
      %v1543 = vpop.f32.mrf.mxu0
      %1544 = vmatprep.mubr.bf16.mxu0 0
      %1545 = vmatmul.mubr.bf16.gmra.mxu0 %v574
      %v1546 = vpop.f32.mrf.mxu0
      %v1547 = vadd.f32 0.0, %v1546
      %v1548 = vpop.f32.mrf.mxu0
      %v1549 = vpop.f32.mrf.mxu0
      %v1550 = vadd.f32 0.0, %v1549
      %v1551 = vpop.f32.mrf.mxu0
      %1552 = vmatprep.mubr.bf16.mxu0 0
      %1553 = vmatmul.mubr.bf16.gmra.mxu0 %v577
      %v1554 = vpop.f32.mrf.mxu0
      %v1555 = vadd.f32 0.0, %v1554
      %v1556 = vpop.f32.mrf.mxu0
      %v1557 = vpop.f32.mrf.mxu0
      %v1558 = vadd.f32 0.0, %v1557
      %v1559 = vpop.f32.mrf.mxu0
      %1560 = vmatprep.mubr.bf16.mxu0 0
      %1561 = vmatmul.mubr.bf16.gmra.mxu0 %v580
      %v1562 = vpop.f32.mrf.mxu0
      %v1563 = vadd.f32 0.0, %v1562
      %v1564 = vpop.f32.mrf.mxu0
      %v1565 = vpop.f32.mrf.mxu0
      %v1566 = vadd.f32 0.0, %v1565
      %v1567 = vpop.f32.mrf.mxu0
      %1568 = vmatprep.mubr.bf16.mxu0 0
      %1569 = vmatmul.mubr.bf16.gmra.mxu0 %v583
      %v1570 = vpop.f32.mrf.mxu0
      %v1571 = vadd.f32 0.0, %v1570
      %v1572 = vpop.f32.mrf.mxu0
      %v1573 = vpop.f32.mrf.mxu0
      %v1574 = vadd.f32 0.0, %v1573
      %v1575 = vpop.f32.mrf.mxu0
      %1576 = vmatprep.mubr.bf16.mxu0 0
      %1577 = vmatmul.mubr.bf16.gmra.mxu0 %v586
      %v1578 = vpop.f32.mrf.mxu0
      %v1579 = vadd.f32 0.0, %v1578
      %v1580 = vpop.f32.mrf.mxu0
      %v1581 = vpop.f32.mrf.mxu0
      %v1582 = vadd.f32 0.0, %v1581
      %v1583 = vpop.f32.mrf.mxu0
      %1584 = vmatprep.mubr.bf16.mxu0 0
      %1585 = vmatmul.mubr.bf16.gmra.mxu0 %v589
      %v1586 = vpop.f32.mrf.mxu0
      %v1587 = vadd.f32 0.0, %v1586
      %v1588 = vpop.f32.mrf.mxu0
      %v1589 = vpop.f32.mrf.mxu0
      %v1590 = vadd.f32 0.0, %v1589
      %v1591 = vpop.f32.mrf.mxu0
      %1592 = vmatprep.mubr.bf16.mxu0 0
      %1593 = vmatmul.mubr.bf16.gmra.mxu0 %v592
      %v1594 = vpop.f32.mrf.mxu0
      %v1595 = vadd.f32 0.0, %v1594
      %v1596 = vpop.f32.mrf.mxu0
      %v1597 = vpop.f32.mrf.mxu0
      %v1598 = vadd.f32 0.0, %v1597
      %v1599 = vpop.f32.mrf.mxu0
      %1600 = vmatprep.mubr.bf16.mxu0 0
      %1601 = vmatmul.mubr.bf16.gmra.mxu0 %v595
      %v1602 = vpop.f32.mrf.mxu0
      %v1603 = vadd.f32 0.0, %v1602
      %v1604 = vpop.f32.mrf.mxu0
      %v1605 = vpop.f32.mrf.mxu0
      %v1606 = vadd.f32 0.0, %v1605
      %v1607 = vpop.f32.mrf.mxu0
      %1608 = vmatprep.mubr.bf16.mxu0 0
      %1609 = vmatmul.mubr.bf16.gmra.mxu0 %v598
      %v1610 = vpop.f32.mrf.mxu0
      %v1611 = vadd.f32 0.0, %v1610
      %v1612 = vpop.f32.mrf.mxu0
      %v1613 = vpop.f32.mrf.mxu0
      %v1614 = vadd.f32 0.0, %v1613
      %v1615 = vpop.f32.mrf.mxu0
      %1616 = vmatprep.mubr.bf16.mxu0 0
      %1617 = vmatmul.mubr.bf16.gmra.mxu0 %v601
      %v1618 = vpop.f32.mrf.mxu0
      %v1619 = vadd.f32 0.0, %v1618
      %v1620 = vpop.f32.mrf.mxu0
      %v1621 = vpop.f32.mrf.mxu0
      %v1622 = vadd.f32 0.0, %v1621
      %v1623 = vpop.f32.mrf.mxu0
      %1624 = vmatprep.mubr.bf16.mxu0 0
      %1625 = vmatmul.mubr.bf16.gmra.mxu0 %v604
      %v1626 = vpop.f32.mrf.mxu0
      %v1627 = vadd.f32 0.0, %v1626
      %v1628 = vpop.f32.mrf.mxu0
      %v1629 = vpop.f32.mrf.mxu0
      %v1630 = vadd.f32 0.0, %v1629
      %v1631 = vpop.f32.mrf.mxu0
      %1632 = vmatprep.mubr.bf16.mxu0 0
      %1633 = vmatmul.mubr.bf16.gmra.mxu0 %v607
      %v1634 = vpop.f32.mrf.mxu0
      %v1635 = vadd.f32 0.0, %v1634
      %v1636 = vpop.f32.mrf.mxu0
      %v1637 = vpop.f32.mrf.mxu0
      %v1638 = vadd.f32 0.0, %v1637
      %v1639 = vpop.f32.mrf.mxu0
      %1640 = vmatprep.mubr.bf16.mxu0 0
      %1641 = vmatmul.mubr.bf16.gmra.mxu0 %v1488
      %v1642 = vpop.f32.mrf.mxu0
      %v1643 = vadd.f32 0.0, %v1642
      %v1644 = vpop.f32.mrf.mxu0
      %v1645 = vpop.f32.mrf.mxu0
      %v1646 = vadd.f32 0.0, %v1645
      %v1647 = vpop.f32.mrf.mxu0
      %1648 = vmatprep.mubr.bf16.mxu0 0
      %1649 = vmatmul.mubr.bf16.gmra.mxu0 %v1491
      %v1650 = vpop.f32.mrf.mxu0
      %v1651 = vadd.f32 0.0, %v1650
      %v1652 = vpop.f32.mrf.mxu0
      %v1653 = vpop.f32.mrf.mxu0
      %v1654 = vadd.f32 0.0, %v1653
      %v1655 = vpop.f32.mrf.mxu0
      %1656 = vdwg.mxu0
      %v1657 = vadd.f32 %v1440, %v1531
      %v1658 = vadd.f32 %v1441, %v1534
      %v1659 = vadd.f32 %v1442, %v1539
      %v1660 = vadd.f32 %v1443, %v1542
      %v1661 = vadd.f32 %v1444, %v1547
      %v1662 = vadd.f32 %v1445, %v1550
      %v1663 = vadd.f32 %v1446, %v1555
      %v1664 = vadd.f32 %v1447, %v1558
      %v1665 = vadd.f32 %v1448, %v1563
      %v1666 = vadd.f32 %v1449, %v1566
      %v1667 = vadd.f32 %v1450, %v1571
      %v1668 = vadd.f32 %v1451, %v1574
      %v1669 = vadd.f32 %v1452, %v1579
      %v1670 = vadd.f32 %v1453, %v1582
      %v1671 = vadd.f32 %v1454, %v1587
      %v1672 = vadd.f32 %v1455, %v1590
      %v1673 = vadd.f32 %v1456, %v1595
      %v1674 = vadd.f32 %v1457, %v1598
      %v1675 = vadd.f32 %v1458, %v1603
      %v1676 = vadd.f32 %v1459, %v1606
      %v1677 = vadd.f32 %v1460, %v1611
      %v1678 = vadd.f32 %v1461, %v1614
      %v1679 = vadd.f32 %v1462, %v1619
      %v1680 = vadd.f32 %v1463, %v1622
      %v1681 = vadd.f32 %v1464, %v1627
      %v1682 = vadd.f32 %v1465, %v1630
      %v1683 = vadd.f32 %v1466, %v1635
      %v1684 = vadd.f32 %v1467, %v1638
      %v1685 = vadd.f32 %v1468, %v1643
      %v1686 = vadd.f32 %v1469, %v1646
      %v1687 = vadd.f32 %v1470, %v1651
      %v1688 = vadd.f32 %v1471, %v1654
      %s1689 = scalar_lea.vmem %s318, 10
      %v1690 = vld [vmem:[%s1689] sm:$0x3]
      %v1693 = vrot.slane %v1270, 1
      %v1694 = vsel %vm992, %v1022, %v1693
      %v1695 = vrot.slane %v1472, 1
      %v1696 = vsel %vm992, %v1693, %v1695
      %v1698 = vsel %vm563, %v1694, 0
      %v1701 = vsel %vm563, %v1696, 0
      %v1704 = vsel %vm612, %v1690, 0
      %1706 = vmatprep.subr.bf16.mxu0 0
      %1707 = vmatpush1.bf16.msra.mxu0 0
      %1708 = vmatprep.subr.bf16.mxu0 0
      %1709 = vmatpush1.bf16.msra.mxu0 0
      %1710 = vmatprep.subr.bf16.mxu0 0
      %1711 = vmatpush1.bf16.msra.mxu0 0
      %1712 = vmatprep.subr.bf16.mxu0 0
      %1713 = vmatpush1.bf16.msra.mxu0 0
      %1714 = vmatprep.subr.bf16.mxu0 0
      %1715 = vmatpush1.bf16.msra.mxu0 0
      %1716 = vmatprep.subr.bf16.mxu0 0
      %1717 = vmatpush1.bf16.msra.mxu0 0
      %1718 = vmatprep.subr.bf16.mxu0 0
      %1719 = vmatpush1.bf16.msra.mxu0 0
      %1720 = vmatprep.subr.bf16.mxu0 0
      %1721 = vmatpush1.bf16.msra.mxu0 %v1704
      %1722 = vmatprep.subr.bf16.mxu0 0
      %1723 = vmatpush2.bf16.msra.mxu0 0
      %1724 = vmatprep.subr.bf16.mxu0 0
      %1725 = vmatpush2.bf16.msra.mxu0 0
      %1726 = vmatprep.subr.bf16.mxu0 0
      %1727 = vmatpush2.bf16.msra.mxu0 0
      %1728 = vmatprep.subr.bf16.mxu0 0
      %1729 = vmatpush2.bf16.msra.mxu0 0
      %1730 = vmatprep.subr.bf16.mxu0 0
      %1731 = vmatpush2.bf16.msra.mxu0 0
      %1732 = vmatprep.subr.bf16.mxu0 0
      %1733 = vmatpush2.bf16.msra.mxu0 0
      %1734 = vmatprep.subr.bf16.mxu0 0
      %1735 = vmatpush2.bf16.msra.mxu0 0
      %1736 = vmatprep.subr.bf16.mxu0 0
      %1737 = vmatpush2.bf16.msra.mxu0 0
      %1738 = vmatprep.mubr.bf16.mxu0 0
      %1739 = vmatmul.mubr.bf16.gmra.mxu0 %v1030
      %v1740 = vpop.f32.mrf.mxu0
      %v1741 = vadd.f32 0.0, %v1740
      %v1742 = vpop.f32.mrf.mxu0
      %v1743 = vpop.f32.mrf.mxu0
      %v1744 = vadd.f32 0.0, %v1743
      %v1745 = vpop.f32.mrf.mxu0
      %1746 = vmatprep.mubr.bf16.mxu0 0
      %1747 = vmatmul.mubr.bf16.gmra.mxu0 %v1033
      %v1748 = vpop.f32.mrf.mxu0
      %v1749 = vadd.f32 0.0, %v1748
      %v1750 = vpop.f32.mrf.mxu0
      %v1751 = vpop.f32.mrf.mxu0
      %v1752 = vadd.f32 0.0, %v1751
      %v1753 = vpop.f32.mrf.mxu0
      %1754 = vmatprep.mubr.bf16.mxu0 0
      %1755 = vmatmul.mubr.bf16.gmra.mxu0 %v1036
      %v1756 = vpop.f32.mrf.mxu0
      %v1757 = vadd.f32 0.0, %v1756
      %v1758 = vpop.f32.mrf.mxu0
      %v1759 = vpop.f32.mrf.mxu0
      %v1760 = vadd.f32 0.0, %v1759
      %v1761 = vpop.f32.mrf.mxu0
      %1762 = vmatprep.mubr.bf16.mxu0 0
      %1763 = vmatmul.mubr.bf16.gmra.mxu0 %v1039
      %v1764 = vpop.f32.mrf.mxu0
      %v1765 = vadd.f32 0.0, %v1764
      %v1766 = vpop.f32.mrf.mxu0
      %v1767 = vpop.f32.mrf.mxu0
      %v1768 = vadd.f32 0.0, %v1767
      %v1769 = vpop.f32.mrf.mxu0
      %1770 = vmatprep.mubr.bf16.mxu0 0
      %1771 = vmatmul.mubr.bf16.gmra.mxu0 %v1042
      %v1772 = vpop.f32.mrf.mxu0
      %v1773 = vadd.f32 0.0, %v1772
      %v1774 = vpop.f32.mrf.mxu0
      %v1775 = vpop.f32.mrf.mxu0
      %v1776 = vadd.f32 0.0, %v1775
      %v1777 = vpop.f32.mrf.mxu0
      %1778 = vmatprep.mubr.bf16.mxu0 0
      %1779 = vmatmul.mubr.bf16.gmra.mxu0 %v1045
      %v1780 = vpop.f32.mrf.mxu0
      %v1781 = vadd.f32 0.0, %v1780
      %v1782 = vpop.f32.mrf.mxu0
      %v1783 = vpop.f32.mrf.mxu0
      %v1784 = vadd.f32 0.0, %v1783
      %v1785 = vpop.f32.mrf.mxu0
      %1786 = vmatprep.mubr.bf16.mxu0 0
      %1787 = vmatmul.mubr.bf16.gmra.mxu0 %v1048
      %v1788 = vpop.f32.mrf.mxu0
      %v1789 = vadd.f32 0.0, %v1788
      %v1790 = vpop.f32.mrf.mxu0
      %v1791 = vpop.f32.mrf.mxu0
      %v1792 = vadd.f32 0.0, %v1791
      %v1793 = vpop.f32.mrf.mxu0
      %1794 = vmatprep.mubr.bf16.mxu0 0
      %1795 = vmatmul.mubr.bf16.gmra.mxu0 %v1051
      %v1796 = vpop.f32.mrf.mxu0
      %v1797 = vadd.f32 0.0, %v1796
      %v1798 = vpop.f32.mrf.mxu0
      %v1799 = vpop.f32.mrf.mxu0
      %v1800 = vadd.f32 0.0, %v1799
      %v1801 = vpop.f32.mrf.mxu0
      %1802 = vmatprep.mubr.bf16.mxu0 0
      %1803 = vmatmul.mubr.bf16.gmra.mxu0 %v1054
      %v1804 = vpop.f32.mrf.mxu0
      %v1805 = vadd.f32 0.0, %v1804
      %v1806 = vpop.f32.mrf.mxu0
      %v1807 = vpop.f32.mrf.mxu0
      %v1808 = vadd.f32 0.0, %v1807
      %v1809 = vpop.f32.mrf.mxu0
      %1810 = vmatprep.mubr.bf16.mxu0 0
      %1811 = vmatmul.mubr.bf16.gmra.mxu0 %v1057
      %v1812 = vpop.f32.mrf.mxu0
      %v1813 = vadd.f32 0.0, %v1812
      %v1814 = vpop.f32.mrf.mxu0
      %v1815 = vpop.f32.mrf.mxu0
      %v1816 = vadd.f32 0.0, %v1815
      %v1817 = vpop.f32.mrf.mxu0
      %1818 = vmatprep.mubr.bf16.mxu0 0
      %1819 = vmatmul.mubr.bf16.gmra.mxu0 %v1060
      %v1820 = vpop.f32.mrf.mxu0
      %v1821 = vadd.f32 0.0, %v1820
      %v1822 = vpop.f32.mrf.mxu0
      %v1823 = vpop.f32.mrf.mxu0
      %v1824 = vadd.f32 0.0, %v1823
      %v1825 = vpop.f32.mrf.mxu0
      %1826 = vmatprep.mubr.bf16.mxu0 0
      %1827 = vmatmul.mubr.bf16.gmra.mxu0 %v1063
      %v1828 = vpop.f32.mrf.mxu0
      %v1829 = vadd.f32 0.0, %v1828
      %v1830 = vpop.f32.mrf.mxu0
      %v1831 = vpop.f32.mrf.mxu0
      %v1832 = vadd.f32 0.0, %v1831
      %v1833 = vpop.f32.mrf.mxu0
      %1834 = vmatprep.mubr.bf16.mxu0 0
      %1835 = vmatmul.mubr.bf16.gmra.mxu0 %v1066
      %v1836 = vpop.f32.mrf.mxu0
      %v1837 = vadd.f32 0.0, %v1836
      %v1838 = vpop.f32.mrf.mxu0
      %v1839 = vpop.f32.mrf.mxu0
      %v1840 = vadd.f32 0.0, %v1839
      %v1841 = vpop.f32.mrf.mxu0
      %1842 = vmatprep.mubr.bf16.mxu0 0
      %1843 = vmatmul.mubr.bf16.gmra.mxu0 %v1069
      %v1844 = vpop.f32.mrf.mxu0
      %v1845 = vadd.f32 0.0, %v1844
      %v1846 = vpop.f32.mrf.mxu0
      %v1847 = vpop.f32.mrf.mxu0
      %v1848 = vadd.f32 0.0, %v1847
      %v1849 = vpop.f32.mrf.mxu0
      %1850 = vmatprep.mubr.bf16.mxu0 0
      %1851 = vmatmul.mubr.bf16.gmra.mxu0 %v1698
      %v1852 = vpop.f32.mrf.mxu0
      %v1853 = vadd.f32 0.0, %v1852
      %v1854 = vpop.f32.mrf.mxu0
      %v1855 = vpop.f32.mrf.mxu0
      %v1856 = vadd.f32 0.0, %v1855
      %v1857 = vpop.f32.mrf.mxu0
      %1858 = vmatprep.mubr.bf16.mxu0 0
      %1859 = vmatmul.mubr.bf16.gmra.mxu0 %v1701
      %v1860 = vpop.f32.mrf.mxu0
      %v1861 = vadd.f32 0.0, %v1860
      %v1862 = vpop.f32.mrf.mxu0
      %v1863 = vpop.f32.mrf.mxu0
      %v1864 = vadd.f32 0.0, %v1863
      %v1865 = vpop.f32.mrf.mxu0
      %1866 = vdwg.mxu0
      %v1867 = vadd.f32 %v1657, %v1741
      %v1868 = vadd.f32 %v1658, %v1744
      %v1869 = vadd.f32 %v1659, %v1749
      %v1870 = vadd.f32 %v1660, %v1752
      %v1871 = vadd.f32 %v1661, %v1757
      %v1872 = vadd.f32 %v1662, %v1760
      %v1873 = vadd.f32 %v1663, %v1765
      %v1874 = vadd.f32 %v1664, %v1768
      %v1875 = vadd.f32 %v1665, %v1773
      %v1876 = vadd.f32 %v1666, %v1776
      %v1877 = vadd.f32 %v1667, %v1781
      %v1878 = vadd.f32 %v1668, %v1784
      %v1879 = vadd.f32 %v1669, %v1789
      %v1880 = vadd.f32 %v1670, %v1792
      %v1881 = vadd.f32 %v1671, %v1797
      %v1882 = vadd.f32 %v1672, %v1800
      %v1883 = vadd.f32 %v1673, %v1805
      %v1884 = vadd.f32 %v1674, %v1808
      %v1885 = vadd.f32 %v1675, %v1813
      %v1886 = vadd.f32 %v1676, %v1816
      %v1887 = vadd.f32 %v1677, %v1821
      %v1888 = vadd.f32 %v1678, %v1824
      %v1889 = vadd.f32 %v1679, %v1829
      %v1890 = vadd.f32 %v1680, %v1832
      %v1891 = vadd.f32 %v1681, %v1837
      %v1892 = vadd.f32 %v1682, %v1840
      %v1893 = vadd.f32 %v1683, %v1845
      %v1894 = vadd.f32 %v1684, %v1848
      %v1895 = vadd.f32 %v1685, %v1853
      %v1896 = vadd.f32 %v1686, %v1856
      %v1897 = vadd.f32 %v1687, %v1861
      %v1898 = vadd.f32 %v1688, %v1864
      %v1899 = vpack.c.bf16 %v408, %v407
      %s1900 = scalar_lea.vmem %s318, 12
      %v1901 = vld [vmem:[%s1900] sm:$0x3]
      %v1903 = vsel %vm563, %v1899, 0
      %v1906 = vsel %vm612, %v1901, 0
      %1908 = vmatprep.subr.bf16.mxu0 0
      %1909 = vmatpush1.bf16.msra.mxu0 0
      %1910 = vmatprep.subr.bf16.mxu0 0
      %1911 = vmatpush1.bf16.msra.mxu0 0
      %1912 = vmatprep.subr.bf16.mxu0 0
      %1913 = vmatpush1.bf16.msra.mxu0 0
      %1914 = vmatprep.subr.bf16.mxu0 0
      %1915 = vmatpush1.bf16.msra.mxu0 0
      %1916 = vmatprep.subr.bf16.mxu0 0
      %1917 = vmatpush1.bf16.msra.mxu0 0
      %1918 = vmatprep.subr.bf16.mxu0 0
      %1919 = vmatpush1.bf16.msra.mxu0 0
      %1920 = vmatprep.subr.bf16.mxu0 0
      %1921 = vmatpush1.bf16.msra.mxu0 0
      %1922 = vmatprep.subr.bf16.mxu0 0
      %1923 = vmatpush1.bf16.msra.mxu0 %v1906
      %1924 = vmatprep.subr.bf16.mxu0 0
      %1925 = vmatpush2.bf16.msra.mxu0 0
      %1926 = vmatprep.subr.bf16.mxu0 0
      %1927 = vmatpush2.bf16.msra.mxu0 0
      %1928 = vmatprep.subr.bf16.mxu0 0
      %1929 = vmatpush2.bf16.msra.mxu0 0
      %1930 = vmatprep.subr.bf16.mxu0 0
      %1931 = vmatpush2.bf16.msra.mxu0 0
      %1932 = vmatprep.subr.bf16.mxu0 0
      %1933 = vmatpush2.bf16.msra.mxu0 0
      %1934 = vmatprep.subr.bf16.mxu0 0
      %1935 = vmatpush2.bf16.msra.mxu0 0
      %1936 = vmatprep.subr.bf16.mxu0 0
      %1937 = vmatpush2.bf16.msra.mxu0 0
      %1938 = vmatprep.subr.bf16.mxu0 0
      %1939 = vmatpush2.bf16.msra.mxu0 0
      %1940 = vmatprep.mubr.bf16.mxu0 0
      %1941 = vmatmul.mubr.bf16.gmra.mxu0 %v781
      %v1942 = vpop.f32.mrf.mxu0
      %v1943 = vadd.f32 0.0, %v1942
      %v1944 = vpop.f32.mrf.mxu0
      %v1945 = vpop.f32.mrf.mxu0
      %v1946 = vadd.f32 0.0, %v1945
      %v1947 = vpop.f32.mrf.mxu0
      %1948 = vmatprep.mubr.bf16.mxu0 0
      %1949 = vmatmul.mubr.bf16.gmra.mxu0 %v783
      %v1950 = vpop.f32.mrf.mxu0
      %v1951 = vadd.f32 0.0, %v1950
      %v1952 = vpop.f32.mrf.mxu0
      %v1953 = vpop.f32.mrf.mxu0
      %v1954 = vadd.f32 0.0, %v1953
      %v1955 = vpop.f32.mrf.mxu0
      %1956 = vmatprep.mubr.bf16.mxu0 0
      %1957 = vmatmul.mubr.bf16.gmra.mxu0 %v785
      %v1958 = vpop.f32.mrf.mxu0
      %v1959 = vadd.f32 0.0, %v1958
      %v1960 = vpop.f32.mrf.mxu0
      %v1961 = vpop.f32.mrf.mxu0
      %v1962 = vadd.f32 0.0, %v1961
      %v1963 = vpop.f32.mrf.mxu0
      %1964 = vmatprep.mubr.bf16.mxu0 0
      %1965 = vmatmul.mubr.bf16.gmra.mxu0 %v787
      %v1966 = vpop.f32.mrf.mxu0
      %v1967 = vadd.f32 0.0, %v1966
      %v1968 = vpop.f32.mrf.mxu0
      %v1969 = vpop.f32.mrf.mxu0
      %v1970 = vadd.f32 0.0, %v1969
      %v1971 = vpop.f32.mrf.mxu0
      %1972 = vmatprep.mubr.bf16.mxu0 0
      %1973 = vmatmul.mubr.bf16.gmra.mxu0 %v789
      %v1974 = vpop.f32.mrf.mxu0
      %v1975 = vadd.f32 0.0, %v1974
      %v1976 = vpop.f32.mrf.mxu0
      %v1977 = vpop.f32.mrf.mxu0
      %v1978 = vadd.f32 0.0, %v1977
      %v1979 = vpop.f32.mrf.mxu0
      %1980 = vmatprep.mubr.bf16.mxu0 0
      %1981 = vmatmul.mubr.bf16.gmra.mxu0 %v791
      %v1982 = vpop.f32.mrf.mxu0
      %v1983 = vadd.f32 0.0, %v1982
      %v1984 = vpop.f32.mrf.mxu0
      %v1985 = vpop.f32.mrf.mxu0
      %v1986 = vadd.f32 0.0, %v1985
      %v1987 = vpop.f32.mrf.mxu0
      %1988 = vmatprep.mubr.bf16.mxu0 0
      %1989 = vmatmul.mubr.bf16.gmra.mxu0 %v793
      %v1990 = vpop.f32.mrf.mxu0
      %v1991 = vadd.f32 0.0, %v1990
      %v1992 = vpop.f32.mrf.mxu0
      %v1993 = vpop.f32.mrf.mxu0
      %v1994 = vadd.f32 0.0, %v1993
      %v1995 = vpop.f32.mrf.mxu0
      %1996 = vmatprep.mubr.bf16.mxu0 0
      %1997 = vmatmul.mubr.bf16.gmra.mxu0 %v795
      %v1998 = vpop.f32.mrf.mxu0
      %v1999 = vadd.f32 0.0, %v1998
      %v2000 = vpop.f32.mrf.mxu0
      %v2001 = vpop.f32.mrf.mxu0
      %v2002 = vadd.f32 0.0, %v2001
      %v2003 = vpop.f32.mrf.mxu0
      %2004 = vmatprep.mubr.bf16.mxu0 0
      %2005 = vmatmul.mubr.bf16.gmra.mxu0 %v797
      %v2006 = vpop.f32.mrf.mxu0
      %v2007 = vadd.f32 0.0, %v2006
      %v2008 = vpop.f32.mrf.mxu0
      %v2009 = vpop.f32.mrf.mxu0
      %v2010 = vadd.f32 0.0, %v2009
      %v2011 = vpop.f32.mrf.mxu0
      %2012 = vmatprep.mubr.bf16.mxu0 0
      %2013 = vmatmul.mubr.bf16.gmra.mxu0 %v799
      %v2014 = vpop.f32.mrf.mxu0
      %v2015 = vadd.f32 0.0, %v2014
      %v2016 = vpop.f32.mrf.mxu0
      %v2017 = vpop.f32.mrf.mxu0
      %v2018 = vadd.f32 0.0, %v2017
      %v2019 = vpop.f32.mrf.mxu0
      %2020 = vmatprep.mubr.bf16.mxu0 0
      %2021 = vmatmul.mubr.bf16.gmra.mxu0 %v801
      %v2022 = vpop.f32.mrf.mxu0
      %v2023 = vadd.f32 0.0, %v2022
      %v2024 = vpop.f32.mrf.mxu0
      %v2025 = vpop.f32.mrf.mxu0
      %v2026 = vadd.f32 0.0, %v2025
      %v2027 = vpop.f32.mrf.mxu0
      %2028 = vmatprep.mubr.bf16.mxu0 0
      %2029 = vmatmul.mubr.bf16.gmra.mxu0 %v803
      %v2030 = vpop.f32.mrf.mxu0
      %v2031 = vadd.f32 0.0, %v2030
      %v2032 = vpop.f32.mrf.mxu0
      %v2033 = vpop.f32.mrf.mxu0
      %v2034 = vadd.f32 0.0, %v2033
      %v2035 = vpop.f32.mrf.mxu0
      %2036 = vmatprep.mubr.bf16.mxu0 0
      %2037 = vmatmul.mubr.bf16.gmra.mxu0 %v805
      %v2038 = vpop.f32.mrf.mxu0
      %v2039 = vadd.f32 0.0, %v2038
      %v2040 = vpop.f32.mrf.mxu0
      %v2041 = vpop.f32.mrf.mxu0
      %v2042 = vadd.f32 0.0, %v2041
      %v2043 = vpop.f32.mrf.mxu0
      %2044 = vmatprep.mubr.bf16.mxu0 0
      %2045 = vmatmul.mubr.bf16.gmra.mxu0 %v807
      %v2046 = vpop.f32.mrf.mxu0
      %v2047 = vadd.f32 0.0, %v2046
      %v2048 = vpop.f32.mrf.mxu0
      %v2049 = vpop.f32.mrf.mxu0
      %v2050 = vadd.f32 0.0, %v2049
      %v2051 = vpop.f32.mrf.mxu0
      %2052 = vmatprep.mubr.bf16.mxu0 0
      %2053 = vmatmul.mubr.bf16.gmra.mxu0 %v1274
      %v2054 = vpop.f32.mrf.mxu0
      %v2055 = vadd.f32 0.0, %v2054
      %v2056 = vpop.f32.mrf.mxu0
      %v2057 = vpop.f32.mrf.mxu0
      %v2058 = vadd.f32 0.0, %v2057
      %v2059 = vpop.f32.mrf.mxu0
      %2060 = vmatprep.mubr.bf16.mxu0 0
      %2061 = vmatmul.mubr.bf16.gmra.mxu0 %v1903
      %v2062 = vpop.f32.mrf.mxu0
      %v2063 = vadd.f32 0.0, %v2062
      %v2064 = vpop.f32.mrf.mxu0
      %v2065 = vpop.f32.mrf.mxu0
      %v2066 = vadd.f32 0.0, %v2065
      %v2067 = vpop.f32.mrf.mxu0
      %2068 = vdwg.mxu0
      %v2069 = vadd.f32 %v1867, %v1943
      %v2070 = vadd.f32 %v1868, %v1946
      %v2071 = vadd.f32 %v1869, %v1951
      %v2072 = vadd.f32 %v1870, %v1954
      %v2073 = vadd.f32 %v1871, %v1959
      %v2074 = vadd.f32 %v1872, %v1962
      %v2075 = vadd.f32 %v1873, %v1967
      %v2076 = vadd.f32 %v1874, %v1970
      %v2077 = vadd.f32 %v1875, %v1975
      %v2078 = vadd.f32 %v1876, %v1978
      %v2079 = vadd.f32 %v1877, %v1983
      %v2080 = vadd.f32 %v1878, %v1986
      %v2081 = vadd.f32 %v1879, %v1991
      %v2082 = vadd.f32 %v1880, %v1994
      %v2083 = vadd.f32 %v1881, %v1999
      %v2084 = vadd.f32 %v1882, %v2002
      %v2085 = vadd.f32 %v1883, %v2007
      %v2086 = vadd.f32 %v1884, %v2010
      %v2087 = vadd.f32 %v1885, %v2015
      %v2088 = vadd.f32 %v1886, %v2018
      %v2089 = vadd.f32 %v1887, %v2023
      %v2090 = vadd.f32 %v1888, %v2026
      %v2091 = vadd.f32 %v1889, %v2031
      %v2092 = vadd.f32 %v1890, %v2034
      %v2093 = vadd.f32 %v1891, %v2039
      %v2094 = vadd.f32 %v1892, %v2042
      %v2095 = vadd.f32 %v1893, %v2047
      %v2096 = vadd.f32 %v1894, %v2050
      %v2097 = vadd.f32 %v1895, %v2055
      %v2098 = vadd.f32 %v1896, %v2058
      %v2099 = vadd.f32 %v1897, %v2063
      %v2100 = vadd.f32 %v1898, %v2066
      %v2101 = vpack.c.bf16 %v409, %v409
      %s2102 = scalar_lea.vmem %s318, 14
      %v2103 = vld [vmem:[%s2102] sm:$0x3]
      %v2104 = vshll.u32 %v1899, 16
      %v2106 = vrot.slane %v2104, 1
      %v2107 = vsel %vm430, %v1481, %v2106
      %v2108 = vshrl.u32 %v1899, 16
      %v2110 = vor.u32 %v2108, %v2106
      %v2112 = vshll.u32 %v2101, 16
      %v2114 = vrot.slane %v2112, 1
      %v2115 = vsel %vm430, %v2110, %v2114
      %v2117 = vsel %vm563, %v2107, 0
      %v2120 = vsel %vm563, %v2115, 0
      %v2123 = vsel %vm612, %v2103, 0
      %2125 = vmatprep.subr.bf16.mxu0 0
      %2126 = vmatpush1.bf16.msra.mxu0 0
      %2127 = vmatprep.subr.bf16.mxu0 0
      %2128 = vmatpush1.bf16.msra.mxu0 0
      %2129 = vmatprep.subr.bf16.mxu0 0
      %2130 = vmatpush1.bf16.msra.mxu0 0
      %2131 = vmatprep.subr.bf16.mxu0 0
      %2132 = vmatpush1.bf16.msra.mxu0 0
      %2133 = vmatprep.subr.bf16.mxu0 0
      %2134 = vmatpush1.bf16.msra.mxu0 0
      %2135 = vmatprep.subr.bf16.mxu0 0
      %2136 = vmatpush1.bf16.msra.mxu0 0
      %2137 = vmatprep.subr.bf16.mxu0 0
      %2138 = vmatpush1.bf16.msra.mxu0 0
      %2139 = vmatprep.subr.bf16.mxu0 0
      %2140 = vmatpush1.bf16.msra.mxu0 %v2123
      %2141 = vmatprep.subr.bf16.mxu0 0
      %2142 = vmatpush2.bf16.msra.mxu0 0
      %2143 = vmatprep.subr.bf16.mxu0 0
      %2144 = vmatpush2.bf16.msra.mxu0 0
      %2145 = vmatprep.subr.bf16.mxu0 0
      %2146 = vmatpush2.bf16.msra.mxu0 0
      %2147 = vmatprep.subr.bf16.mxu0 0
      %2148 = vmatpush2.bf16.msra.mxu0 0
      %2149 = vmatprep.subr.bf16.mxu0 0
      %2150 = vmatpush2.bf16.msra.mxu0 0
      %2151 = vmatprep.subr.bf16.mxu0 0
      %2152 = vmatpush2.bf16.msra.mxu0 0
      %2153 = vmatprep.subr.bf16.mxu0 0
      %2154 = vmatpush2.bf16.msra.mxu0 0
      %2155 = vmatprep.subr.bf16.mxu0 0
      %2156 = vmatpush2.bf16.msra.mxu0 0
      %2157 = vmatprep.mubr.bf16.mxu0 0
      %2158 = vmatmul.mubr.bf16.gmra.mxu0 %v571
      %v2159 = vpop.f32.mrf.mxu0
      %v2160 = vadd.f32 0.0, %v2159
      %v2161 = vpop.f32.mrf.mxu0
      %v2162 = vpop.f32.mrf.mxu0
      %v2163 = vadd.f32 0.0, %v2162
      %v2164 = vpop.f32.mrf.mxu0
      %2165 = vmatprep.mubr.bf16.mxu0 0
      %2166 = vmatmul.mubr.bf16.gmra.mxu0 %v574
      %v2167 = vpop.f32.mrf.mxu0
      %v2168 = vadd.f32 0.0, %v2167
      %v2169 = vpop.f32.mrf.mxu0
      %v2170 = vpop.f32.mrf.mxu0
      %v2171 = vadd.f32 0.0, %v2170
      %v2172 = vpop.f32.mrf.mxu0
      %2173 = vmatprep.mubr.bf16.mxu0 0
      %2174 = vmatmul.mubr.bf16.gmra.mxu0 %v577
      %v2175 = vpop.f32.mrf.mxu0
      %v2176 = vadd.f32 0.0, %v2175
      %v2177 = vpop.f32.mrf.mxu0
      %v2178 = vpop.f32.mrf.mxu0
      %v2179 = vadd.f32 0.0, %v2178
      %v2180 = vpop.f32.mrf.mxu0
      %2181 = vmatprep.mubr.bf16.mxu0 0
      %2182 = vmatmul.mubr.bf16.gmra.mxu0 %v580
      %v2183 = vpop.f32.mrf.mxu0
      %v2184 = vadd.f32 0.0, %v2183
      %v2185 = vpop.f32.mrf.mxu0
      %v2186 = vpop.f32.mrf.mxu0
      %v2187 = vadd.f32 0.0, %v2186
      %v2188 = vpop.f32.mrf.mxu0
      %2189 = vmatprep.mubr.bf16.mxu0 0
      %2190 = vmatmul.mubr.bf16.gmra.mxu0 %v583
      %v2191 = vpop.f32.mrf.mxu0
      %v2192 = vadd.f32 0.0, %v2191
      %v2193 = vpop.f32.mrf.mxu0
      %v2194 = vpop.f32.mrf.mxu0
      %v2195 = vadd.f32 0.0, %v2194
      %v2196 = vpop.f32.mrf.mxu0
      %2197 = vmatprep.mubr.bf16.mxu0 0
      %2198 = vmatmul.mubr.bf16.gmra.mxu0 %v586
      %v2199 = vpop.f32.mrf.mxu0
      %v2200 = vadd.f32 0.0, %v2199
      %v2201 = vpop.f32.mrf.mxu0
      %v2202 = vpop.f32.mrf.mxu0
      %v2203 = vadd.f32 0.0, %v2202
      %v2204 = vpop.f32.mrf.mxu0
      %2205 = vmatprep.mubr.bf16.mxu0 0
      %2206 = vmatmul.mubr.bf16.gmra.mxu0 %v589
      %v2207 = vpop.f32.mrf.mxu0
      %v2208 = vadd.f32 0.0, %v2207
      %v2209 = vpop.f32.mrf.mxu0
      %v2210 = vpop.f32.mrf.mxu0
      %v2211 = vadd.f32 0.0, %v2210
      %v2212 = vpop.f32.mrf.mxu0
      %2213 = vmatprep.mubr.bf16.mxu0 0
      %2214 = vmatmul.mubr.bf16.gmra.mxu0 %v592
      %v2215 = vpop.f32.mrf.mxu0
      %v2216 = vadd.f32 0.0, %v2215
      %v2217 = vpop.f32.mrf.mxu0
      %v2218 = vpop.f32.mrf.mxu0
      %v2219 = vadd.f32 0.0, %v2218
      %v2220 = vpop.f32.mrf.mxu0
      %2221 = vmatprep.mubr.bf16.mxu0 0
      %2222 = vmatmul.mubr.bf16.gmra.mxu0 %v595
      %v2223 = vpop.f32.mrf.mxu0
      %v2224 = vadd.f32 0.0, %v2223
      %v2225 = vpop.f32.mrf.mxu0
      %v2226 = vpop.f32.mrf.mxu0
      %v2227 = vadd.f32 0.0, %v2226
      %v2228 = vpop.f32.mrf.mxu0
      %2229 = vmatprep.mubr.bf16.mxu0 0
      %2230 = vmatmul.mubr.bf16.gmra.mxu0 %v598
      %v2231 = vpop.f32.mrf.mxu0
      %v2232 = vadd.f32 0.0, %v2231
      %v2233 = vpop.f32.mrf.mxu0
      %v2234 = vpop.f32.mrf.mxu0
      %v2235 = vadd.f32 0.0, %v2234
      %v2236 = vpop.f32.mrf.mxu0
      %2237 = vmatprep.mubr.bf16.mxu0 0
      %2238 = vmatmul.mubr.bf16.gmra.mxu0 %v601
      %v2239 = vpop.f32.mrf.mxu0
      %v2240 = vadd.f32 0.0, %v2239
      %v2241 = vpop.f32.mrf.mxu0
      %v2242 = vpop.f32.mrf.mxu0
      %v2243 = vadd.f32 0.0, %v2242
      %v2244 = vpop.f32.mrf.mxu0
      %2245 = vmatprep.mubr.bf16.mxu0 0
      %2246 = vmatmul.mubr.bf16.gmra.mxu0 %v604
      %v2247 = vpop.f32.mrf.mxu0
      %v2248 = vadd.f32 0.0, %v2247
      %v2249 = vpop.f32.mrf.mxu0
      %v2250 = vpop.f32.mrf.mxu0
      %v2251 = vadd.f32 0.0, %v2250
      %v2252 = vpop.f32.mrf.mxu0
      %2253 = vmatprep.mubr.bf16.mxu0 0
      %2254 = vmatmul.mubr.bf16.gmra.mxu0 %v607
      %v2255 = vpop.f32.mrf.mxu0
      %v2256 = vadd.f32 0.0, %v2255
      %v2257 = vpop.f32.mrf.mxu0
      %v2258 = vpop.f32.mrf.mxu0
      %v2259 = vadd.f32 0.0, %v2258
      %v2260 = vpop.f32.mrf.mxu0
      %2261 = vmatprep.mubr.bf16.mxu0 0
      %2262 = vmatmul.mubr.bf16.gmra.mxu0 %v1488
      %v2263 = vpop.f32.mrf.mxu0
      %v2264 = vadd.f32 0.0, %v2263
      %v2265 = vpop.f32.mrf.mxu0
      %v2266 = vpop.f32.mrf.mxu0
      %v2267 = vadd.f32 0.0, %v2266
      %v2268 = vpop.f32.mrf.mxu0
      %2269 = vmatprep.mubr.bf16.mxu0 0
      %2270 = vmatmul.mubr.bf16.gmra.mxu0 %v2117
      %v2271 = vpop.f32.mrf.mxu0
      %v2272 = vadd.f32 0.0, %v2271
      %v2273 = vpop.f32.mrf.mxu0
      %v2274 = vpop.f32.mrf.mxu0
      %v2275 = vadd.f32 0.0, %v2274
      %v2276 = vpop.f32.mrf.mxu0
      %2277 = vmatprep.mubr.bf16.mxu0 0
      %2278 = vmatmul.mubr.bf16.gmra.mxu0 %v2120
      %v2279 = vpop.f32.mrf.mxu0
      %v2280 = vadd.f32 0.0, %v2279
      %v2281 = vpop.f32.mrf.mxu0
      %v2282 = vpop.f32.mrf.mxu0
      %v2283 = vadd.f32 0.0, %v2282
      %v2284 = vpop.f32.mrf.mxu0
      %2285 = vdwg.mxu0
      %v2286 = vadd.f32 %v2069, %v2160
      %v2287 = vadd.f32 %v2070, %v2163
      %v2288 = vadd.f32 %v2071, %v2168
      %v2289 = vadd.f32 %v2072, %v2171
      %v2290 = vadd.f32 %v2073, %v2176
      %v2291 = vadd.f32 %v2074, %v2179
      %v2292 = vadd.f32 %v2075, %v2184
      %v2293 = vadd.f32 %v2076, %v2187
      %v2294 = vadd.f32 %v2077, %v2192
      %v2295 = vadd.f32 %v2078, %v2195
      %v2296 = vadd.f32 %v2079, %v2200
      %v2297 = vadd.f32 %v2080, %v2203
      %v2298 = vadd.f32 %v2081, %v2208
      %v2299 = vadd.f32 %v2082, %v2211
      %v2300 = vadd.f32 %v2083, %v2216
      %v2301 = vadd.f32 %v2084, %v2219
      %v2302 = vadd.f32 %v2085, %v2224
      %v2303 = vadd.f32 %v2086, %v2227
      %v2304 = vadd.f32 %v2087, %v2232
      %v2305 = vadd.f32 %v2088, %v2235
      %v2306 = vadd.f32 %v2089, %v2240
      %v2307 = vadd.f32 %v2090, %v2243
      %v2308 = vadd.f32 %v2091, %v2248
      %v2309 = vadd.f32 %v2092, %v2251
      %v2310 = vadd.f32 %v2093, %v2256
      %v2311 = vadd.f32 %v2094, %v2259
      %v2312 = vadd.f32 %v2095, %v2264
      %v2313 = vadd.f32 %v2096, %v2267
      %v2314 = vadd.f32 %v2097, %v2272
      %v2315 = vadd.f32 %v2098, %v2275
      %v2316 = vadd.f32 %v2099, %v2280
      %v2317 = vadd.f32 %v2100, %v2283
      %s2318 = scalar_lea.vmem %s318, 16
      %v2319 = vld [vmem:[%s2318] sm:$0x3]
      %v2322 = vrot.slane %v1899, 1
      %v2323 = vsel %vm992, %v1693, %v2322
      %v2324 = vrot.slane %v2101, 1
      %v2325 = vsel %vm992, %v2322, %v2324
      %v2327 = vsel %vm563, %v2323, 0
      %v2330 = vsel %vm563, %v2325, 0
      %v2333 = vsel %vm612, %v2319, 0
      %2335 = vmatprep.subr.bf16.mxu0 0
      %2336 = vmatpush1.bf16.msra.mxu0 0
      %2337 = vmatprep.subr.bf16.mxu0 0
      %2338 = vmatpush1.bf16.msra.mxu0 0
      %2339 = vmatprep.subr.bf16.mxu0 0
      %2340 = vmatpush1.bf16.msra.mxu0 0
      %2341 = vmatprep.subr.bf16.mxu0 0
      %2342 = vmatpush1.bf16.msra.mxu0 0
      %2343 = vmatprep.subr.bf16.mxu0 0
      %2344 = vmatpush1.bf16.msra.mxu0 0
      %2345 = vmatprep.subr.bf16.mxu0 0
      %2346 = vmatpush1.bf16.msra.mxu0 0
      %2347 = vmatprep.subr.bf16.mxu0 0
      %2348 = vmatpush1.bf16.msra.mxu0 0
      %2349 = vmatprep.subr.bf16.mxu0 0
      %2350 = vmatpush1.bf16.msra.mxu0 %v2333
      %2351 = vmatprep.subr.bf16.mxu0 0
      %2352 = vmatpush2.bf16.msra.mxu0 0
      %2353 = vmatprep.subr.bf16.mxu0 0
      %2354 = vmatpush2.bf16.msra.mxu0 0
      %2355 = vmatprep.subr.bf16.mxu0 0
      %2356 = vmatpush2.bf16.msra.mxu0 0
      %2357 = vmatprep.subr.bf16.mxu0 0
      %2358 = vmatpush2.bf16.msra.mxu0 0
      %2359 = vmatprep.subr.bf16.mxu0 0
      %2360 = vmatpush2.bf16.msra.mxu0 0
      %2361 = vmatprep.subr.bf16.mxu0 0
      %2362 = vmatpush2.bf16.msra.mxu0 0
      %2363 = vmatprep.subr.bf16.mxu0 0
      %2364 = vmatpush2.bf16.msra.mxu0 0
      %2365 = vmatprep.subr.bf16.mxu0 0
      %2366 = vmatpush2.bf16.msra.mxu0 0
      %2367 = vmatprep.mubr.bf16.mxu0 0
      %2368 = vmatmul.mubr.bf16.gmra.mxu0 %v1033
      %v2369 = vpop.f32.mrf.mxu0
      %v2370 = vadd.f32 0.0, %v2369
      %v2371 = vpop.f32.mrf.mxu0
      %v2372 = vpop.f32.mrf.mxu0
      %v2373 = vadd.f32 0.0, %v2372
      %v2374 = vpop.f32.mrf.mxu0
      %2375 = vmatprep.mubr.bf16.mxu0 0
      %2376 = vmatmul.mubr.bf16.gmra.mxu0 %v1036
      %v2377 = vpop.f32.mrf.mxu0
      %v2378 = vadd.f32 0.0, %v2377
      %v2379 = vpop.f32.mrf.mxu0
      %v2380 = vpop.f32.mrf.mxu0
      %v2381 = vadd.f32 0.0, %v2380
      %v2382 = vpop.f32.mrf.mxu0
      %2383 = vmatprep.mubr.bf16.mxu0 0
      %2384 = vmatmul.mubr.bf16.gmra.mxu0 %v1039
      %v2385 = vpop.f32.mrf.mxu0
      %v2386 = vadd.f32 0.0, %v2385
      %v2387 = vpop.f32.mrf.mxu0
      %v2388 = vpop.f32.mrf.mxu0
      %v2389 = vadd.f32 0.0, %v2388
      %v2390 = vpop.f32.mrf.mxu0
      %2391 = vmatprep.mubr.bf16.mxu0 0
      %2392 = vmatmul.mubr.bf16.gmra.mxu0 %v1042
      %v2393 = vpop.f32.mrf.mxu0
      %v2394 = vadd.f32 0.0, %v2393
      %v2395 = vpop.f32.mrf.mxu0
      %v2396 = vpop.f32.mrf.mxu0
      %v2397 = vadd.f32 0.0, %v2396
      %v2398 = vpop.f32.mrf.mxu0
      %2399 = vmatprep.mubr.bf16.mxu0 0
      %2400 = vmatmul.mubr.bf16.gmra.mxu0 %v1045
      %v2401 = vpop.f32.mrf.mxu0
      %v2402 = vadd.f32 0.0, %v2401
      %v2403 = vpop.f32.mrf.mxu0
      %v2404 = vpop.f32.mrf.mxu0
      %v2405 = vadd.f32 0.0, %v2404
      %v2406 = vpop.f32.mrf.mxu0
      %2407 = vmatprep.mubr.bf16.mxu0 0
      %2408 = vmatmul.mubr.bf16.gmra.mxu0 %v1048
      %v2409 = vpop.f32.mrf.mxu0
      %v2410 = vadd.f32 0.0, %v2409
      %v2411 = vpop.f32.mrf.mxu0
      %v2412 = vpop.f32.mrf.mxu0
      %v2413 = vadd.f32 0.0, %v2412
      %v2414 = vpop.f32.mrf.mxu0
      %2415 = vmatprep.mubr.bf16.mxu0 0
      %2416 = vmatmul.mubr.bf16.gmra.mxu0 %v1051
      %v2417 = vpop.f32.mrf.mxu0
      %v2418 = vadd.f32 0.0, %v2417
      %v2419 = vpop.f32.mrf.mxu0
      %v2420 = vpop.f32.mrf.mxu0
      %v2421 = vadd.f32 0.0, %v2420
      %v2422 = vpop.f32.mrf.mxu0
      %2423 = vmatprep.mubr.bf16.mxu0 0
      %2424 = vmatmul.mubr.bf16.gmra.mxu0 %v1054
      %v2425 = vpop.f32.mrf.mxu0
      %v2426 = vadd.f32 0.0, %v2425
      %v2427 = vpop.f32.mrf.mxu0
      %v2428 = vpop.f32.mrf.mxu0
      %v2429 = vadd.f32 0.0, %v2428
      %v2430 = vpop.f32.mrf.mxu0
      %2431 = vmatprep.mubr.bf16.mxu0 0
      %2432 = vmatmul.mubr.bf16.gmra.mxu0 %v1057
      %v2433 = vpop.f32.mrf.mxu0
      %v2434 = vadd.f32 0.0, %v2433
      %v2435 = vpop.f32.mrf.mxu0
      %v2436 = vpop.f32.mrf.mxu0
      %v2437 = vadd.f32 0.0, %v2436
      %v2438 = vpop.f32.mrf.mxu0
      %2439 = vmatprep.mubr.bf16.mxu0 0
      %2440 = vmatmul.mubr.bf16.gmra.mxu0 %v1060
      %v2441 = vpop.f32.mrf.mxu0
      %v2442 = vadd.f32 0.0, %v2441
      %v2443 = vpop.f32.mrf.mxu0
      %v2444 = vpop.f32.mrf.mxu0
      %v2445 = vadd.f32 0.0, %v2444
      %v2446 = vpop.f32.mrf.mxu0
      %2447 = vmatprep.mubr.bf16.mxu0 0
      %2448 = vmatmul.mubr.bf16.gmra.mxu0 %v1063
      %v2449 = vpop.f32.mrf.mxu0
      %v2450 = vadd.f32 0.0, %v2449
      %v2451 = vpop.f32.mrf.mxu0
      %v2452 = vpop.f32.mrf.mxu0
      %v2453 = vadd.f32 0.0, %v2452
      %v2454 = vpop.f32.mrf.mxu0
      %2455 = vmatprep.mubr.bf16.mxu0 0
      %2456 = vmatmul.mubr.bf16.gmra.mxu0 %v1066
      %v2457 = vpop.f32.mrf.mxu0
      %v2458 = vadd.f32 0.0, %v2457
      %v2459 = vpop.f32.mrf.mxu0
      %v2460 = vpop.f32.mrf.mxu0
      %v2461 = vadd.f32 0.0, %v2460
      %v2462 = vpop.f32.mrf.mxu0
      %2463 = vmatprep.mubr.bf16.mxu0 0
      %2464 = vmatmul.mubr.bf16.gmra.mxu0 %v1069
      %v2465 = vpop.f32.mrf.mxu0
      %v2466 = vadd.f32 0.0, %v2465
      %v2467 = vpop.f32.mrf.mxu0
      %v2468 = vpop.f32.mrf.mxu0
      %v2469 = vadd.f32 0.0, %v2468
      %v2470 = vpop.f32.mrf.mxu0
      %2471 = vmatprep.mubr.bf16.mxu0 0
      %2472 = vmatmul.mubr.bf16.gmra.mxu0 %v1698
      %v2473 = vpop.f32.mrf.mxu0
      %v2474 = vadd.f32 0.0, %v2473
      %v2475 = vpop.f32.mrf.mxu0
      %v2476 = vpop.f32.mrf.mxu0
      %v2477 = vadd.f32 0.0, %v2476
      %v2478 = vpop.f32.mrf.mxu0
      %2479 = vmatprep.mubr.bf16.mxu0 0
      %2480 = vmatmul.mubr.bf16.gmra.mxu0 %v2327
      %v2481 = vpop.f32.mrf.mxu0
      %v2482 = vadd.f32 0.0, %v2481
      %v2483 = vpop.f32.mrf.mxu0
      %v2484 = vpop.f32.mrf.mxu0
      %v2485 = vadd.f32 0.0, %v2484
      %v2486 = vpop.f32.mrf.mxu0
      %2487 = vmatprep.mubr.bf16.mxu0 0
      %2488 = vmatmul.mubr.bf16.gmra.mxu0 %v2330
      %v2489 = vpop.f32.mrf.mxu0
      %v2490 = vadd.f32 0.0, %v2489
      %v2491 = vpop.f32.mrf.mxu0
      %v2492 = vpop.f32.mrf.mxu0
      %v2493 = vadd.f32 0.0, %v2492
      %v2494 = vpop.f32.mrf.mxu0
      %2495 = vdwg.mxu0
      %v2496 = vadd.f32 %v2286, %v2370
      %v2497 = vadd.f32 %v2287, %v2373
      %v2498 = vadd.f32 %v2288, %v2378
      %v2499 = vadd.f32 %v2289, %v2381
      %v2500 = vadd.f32 %v2290, %v2386
      %v2501 = vadd.f32 %v2291, %v2389
      %v2502 = vadd.f32 %v2292, %v2394
      %v2503 = vadd.f32 %v2293, %v2397
      %v2504 = vadd.f32 %v2294, %v2402
      %v2505 = vadd.f32 %v2295, %v2405
      %v2506 = vadd.f32 %v2296, %v2410
      %v2507 = vadd.f32 %v2297, %v2413
      %v2508 = vadd.f32 %v2298, %v2418
      %v2509 = vadd.f32 %v2299, %v2421
      %v2510 = vadd.f32 %v2300, %v2426
      %v2511 = vadd.f32 %v2301, %v2429
      %v2512 = vadd.f32 %v2302, %v2434
      %v2513 = vadd.f32 %v2303, %v2437
      %v2514 = vadd.f32 %v2304, %v2442
      %v2515 = vadd.f32 %v2305, %v2445
      %v2516 = vadd.f32 %v2306, %v2450
      %v2517 = vadd.f32 %v2307, %v2453
      %v2518 = vadd.f32 %v2308, %v2458
      %v2519 = vadd.f32 %v2309, %v2461
      %v2520 = vadd.f32 %v2310, %v2466
      %v2521 = vadd.f32 %v2311, %v2469
      %v2522 = vadd.f32 %v2312, %v2474
      %v2523 = vadd.f32 %v2313, %v2477
      %v2524 = vadd.f32 %v2314, %v2482
      %v2525 = vadd.f32 %v2315, %v2485
      %v2526 = vadd.f32 %v2316, %v2490
      %v2527 = vadd.f32 %v2317, %v2493
      %v2528 = vpack.c.bf16 %v2497, %v2496
      %v2529 = vpack.c.bf16 %v2499, %v2498
      %v2530 = vpack.c.bf16 %v2501, %v2500
      %v2531 = vpack.c.bf16 %v2503, %v2502
      %v2532 = vpack.c.bf16 %v2505, %v2504
      %v2533 = vpack.c.bf16 %v2507, %v2506
      %v2534 = vpack.c.bf16 %v2509, %v2508
      %v2535 = vpack.c.bf16 %v2511, %v2510
      %v2536 = vpack.c.bf16 %v2513, %v2512
      %v2537 = vpack.c.bf16 %v2515, %v2514
      %v2538 = vpack.c.bf16 %v2517, %v2516
      %v2539 = vpack.c.bf16 %v2519, %v2518
      %v2540 = vpack.c.bf16 %v2521, %v2520
      %v2541 = vpack.c.bf16 %v2523, %v2522
      %v2542 = vpack.c.bf16 %v2525, %v2524
      %v2543 = vpack.c.bf16 %v2527, %v2526
      %v2560 = vunpack.c.l.b16 %v2528
      %v2561 = vunpack.c.h.b16 %v2528
      %v2562 = vunpack.c.l.b16 %v2529
      %v2563 = vunpack.c.h.b16 %v2529
      %v2564 = vunpack.c.l.b16 %v2530
      %v2565 = vunpack.c.h.b16 %v2530
      %v2566 = vunpack.c.l.b16 %v2531
      %v2567 = vunpack.c.h.b16 %v2531
      %v2568 = vunpack.c.l.b16 %v2532
      %v2569 = vunpack.c.h.b16 %v2532
      %v2570 = vunpack.c.l.b16 %v2533
      %v2571 = vunpack.c.h.b16 %v2533
      %v2572 = vunpack.c.l.b16 %v2534
      %v2573 = vunpack.c.h.b16 %v2534
      %v2574 = vunpack.c.l.b16 %v2535
      %v2575 = vunpack.c.h.b16 %v2535
      %v2576 = vunpack.c.l.b16 %v2536
      %v2577 = vunpack.c.h.b16 %v2536
      %v2578 = vunpack.c.l.b16 %v2537
      %v2579 = vunpack.c.h.b16 %v2537
      %v2580 = vunpack.c.l.b16 %v2538
      %v2581 = vunpack.c.h.b16 %v2538
      %v2582 = vunpack.c.l.b16 %v2539
      %v2583 = vunpack.c.h.b16 %v2539
      %v2584 = vunpack.c.l.b16 %v2540
      %v2585 = vunpack.c.h.b16 %v2540
      %v2586 = vunpack.c.l.b16 %v2541
      %v2587 = vunpack.c.h.b16 %v2541
      %v2588 = vunpack.c.l.b16 %v2542
      %v2589 = vunpack.c.h.b16 %v2542
      %v2590 = vunpack.c.l.b16 %v2543
      %v2591 = vunpack.c.h.b16 %v2543
      %v2592 = vpack.c.b16 %v2560, %v2560
      %v2593 = vpack.c.b16 %v2561, %v2561
      %v2594 = vpack.c.b16 %v2562, %v2562
      %v2595 = vpack.c.b16 %v2563, %v2563
      %v2596 = vpack.c.b16 %v2564, %v2564
      %v2597 = vpack.c.b16 %v2565, %v2565
      %v2598 = vpack.c.b16 %v2566, %v2566
      %v2599 = vpack.c.b16 %v2567, %v2567
      %v2600 = vpack.c.b16 %v2568, %v2568
      %v2601 = vpack.c.b16 %v2569, %v2569
      %v2602 = vpack.c.b16 %v2570, %v2570
      %v2603 = vpack.c.b16 %v2571, %v2571
      %v2604 = vpack.c.b16 %v2572, %v2572
      %v2605 = vpack.c.b16 %v2573, %v2573
      %v2606 = vpack.c.b16 %v2574, %v2574
      %v2607 = vpack.c.b16 %v2575, %v2575
      %v2608 = vpack.c.b16 %v2576, %v2576
      %v2609 = vpack.c.b16 %v2577, %v2577
      %v2610 = vpack.c.b16 %v2578, %v2578
      %v2611 = vpack.c.b16 %v2579, %v2579
      %v2612 = vpack.c.b16 %v2580, %v2580
      %v2613 = vpack.c.b16 %v2581, %v2581
      %v2614 = vpack.c.b16 %v2582, %v2582
      %v2615 = vpack.c.b16 %v2583, %v2583
      %v2616 = vpack.c.b16 %v2584, %v2584
      %v2617 = vpack.c.b16 %v2585, %v2585
      %v2618 = vpack.c.b16 %v2586, %v2586
      %v2619 = vpack.c.b16 %v2587, %v2587
      %v2620 = vpack.c.b16 %v2588, %v2588
      %v2621 = vpack.c.b16 %v2589, %v2589
      %v2622 = vpack.c.b16 %v2590, %v2590
      %v2623 = vpack.c.b16 %v2591, %v2591
      %2656 = vst [vmem:[%s326] sm:$0xf] %v2592
      %2657 = vst [vmem:[%s326 + $0x4] sm:$0xf] %v2593
      %2658 = vst [vmem:[%s326 + $0x8] sm:$0xf] %v2594
      %2659 = vst [vmem:[%s326 + $0xc] sm:$0xf] %v2595
      %2660 = vst [vmem:[%s326 + $0x10] sm:$0xf] %v2596
      %2661 = vst [vmem:[%s326 + $0x14] sm:$0xf] %v2597
      %2662 = vst [vmem:[%s326 + $0x18] sm:$0xf] %v2598
      %2663 = vst [vmem:[%s326 + $0x1c] sm:$0xf] %v2599
      %2664 = vst [vmem:[%s326 + $0x20] sm:$0xf] %v2600
      %2665 = vst [vmem:[%s326 + $0x24] sm:$0xf] %v2601
      %2666 = vst [vmem:[%s326 + $0x28] sm:$0xf] %v2602
      %2667 = vst [vmem:[%s326 + $0x2c] sm:$0xf] %v2603
      %2668 = vst [vmem:[%s326 + $0x30] sm:$0xf] %v2604
      %2669 = vst [vmem:[%s326 + $0x34] sm:$0xf] %v2605
      %2670 = vst [vmem:[%s326 + $0x38] sm:$0xf] %v2606
      %2671 = vst [vmem:[%s326 + $0x3c] sm:$0xf] %v2607
      %2672 = vst [vmem:[%s326 + $0x40] sm:$0xf] %v2608
      %2673 = vst [vmem:[%s326 + $0x44] sm:$0xf] %v2609
      %2674 = vst [vmem:[%s326 + $0x48] sm:$0xf] %v2610
      %2675 = vst [vmem:[%s326 + $0x4c] sm:$0xf] %v2611
      %2676 = vst [vmem:[%s326 + $0x50] sm:$0xf] %v2612
      %2677 = vst [vmem:[%s326 + $0x54] sm:$0xf] %v2613
      %2678 = vst [vmem:[%s326 + $0x58] sm:$0xf] %v2614
      %2679 = vst [vmem:[%s326 + $0x5c] sm:$0xf] %v2615
      %2680 = vst [vmem:[%s326 + $0x60] sm:$0xf] %v2616
      %2681 = vst [vmem:[%s326 + $0x64] sm:$0xf] %v2617
      %2682 = vst [vmem:[%s326 + $0x68] sm:$0xf] %v2618
      %2683 = vst [vmem:[%s326 + $0x6c] sm:$0xf] %v2619
      %2684 = vst [vmem:[%s326 + $0x70] sm:$0xf] %v2620
      %2685 = vst [vmem:[%s326 + $0x74] sm:$0xf] %v2621
      %2686 = vst [vmem:[%s326 + $0x78] sm:$0xf] %v2622
      %2687 = vst [vmem:[%s326 + $0x7c] sm:$0xf] %v2623
      %v2688 = vld [vmem:[%s313] sm:$0xff]
      %v2689 = vld [vmem:[%s313 + $0x8] sm:$0xff]
      %v2690 = vld [vmem:[%s313 + $0x10] sm:$0xff]
      %v2691 = vld [vmem:[%s313 + $0x18] sm:$0xff]
      %v2692 = vld [vmem:[%s313 + $0x20] sm:$0xff]
      %v2693 = vld [vmem:[%s313 + $0x28] sm:$0xff]
      %v2694 = vld [vmem:[%s313 + $0x30] sm:$0xff]
      %v2695 = vld [vmem:[%s313 + $0x38] sm:$0xff]
      %v2696 = vld [vmem:[%s313 + $0x40] sm:$0xff]
      %v2697 = vld [vmem:[%s313 + $0x48] sm:$0xff]
      %v2698 = vld [vmem:[%s313 + $0x50] sm:$0xff]
      %v2699 = vld [vmem:[%s313 + $0x58] sm:$0xff]
      %v2700 = vld [vmem:[%s313 + $0x60] sm:$0xff]
      %v2701 = vld [vmem:[%s313 + $0x68] sm:$0xff]
      %v2702 = vld [vmem:[%s313 + $0x70] sm:$0xff]
      %v2703 = vld [vmem:[%s313 + $0x78] sm:$0xff]
      %v2704 = vld [vmem:[%s313 + $0x80] sm:$0xff]
      %v2705 = vld [vmem:[%s313 + $0x88] sm:$0xff]
      %v2706 = vld [vmem:[%s313 + $0x90] sm:$0xff]
      %v2707 = vld [vmem:[%s313 + $0x98] sm:$0xff]
      %v2708 = vld [vmem:[%s313 + $0xa0] sm:$0xff]
      %v2709 = vld [vmem:[%s313 + $0xa8] sm:$0xff]
      %v2710 = vld [vmem:[%s313 + $0xb0] sm:$0xff]
      %v2711 = vld [vmem:[%s313 + $0xb8] sm:$0xff]
      %v2712 = vld [vmem:[%s313 + $0xc0] sm:$0xff]
      %v2713 = vld [vmem:[%s313 + $0xc8] sm:$0xff]
      %v2714 = vld [vmem:[%s313 + $0xd0] sm:$0xff]
      %v2715 = vld [vmem:[%s313 + $0xd8] sm:$0xff]
      %v2716 = vld [vmem:[%s313 + $0xe0] sm:$0xff]
      %v2717 = vld [vmem:[%s313 + $0xe8] sm:$0xff]
      %v2718 = vld [vmem:[%s313 + $0xf0] sm:$0xff]
      %v2719 = vld [vmem:[%s313 + $0xf8] sm:$0xff]
      %2721 = vset.pattern.permute.xlu0 0
      %2722 = vperm.xlu0 %2721, %v2688
      %v2723 = vpop.permute.xlu0 %2722
      %2726 = vset.pattern.permute.xlu0 0
      %2727 = vperm.xlu0 %2726, %v2689
      %v2728 = vpop.permute.xlu0 %2727
      %2731 = vset.pattern.permute.xlu0 0
      %2732 = vperm.xlu0 %2731, %v2690
      %v2733 = vpop.permute.xlu0 %2732
      %2736 = vset.pattern.permute.xlu0 0
      %2737 = vperm.xlu0 %2736, %v2691
      %v2738 = vpop.permute.xlu0 %2737
      %2741 = vset.pattern.permute.xlu0 0
      %2742 = vperm.xlu0 %2741, %v2692
      %v2743 = vpop.permute.xlu0 %2742
      %2746 = vset.pattern.permute.xlu0 0
      %2747 = vperm.xlu0 %2746, %v2693
      %v2748 = vpop.permute.xlu0 %2747
      %2751 = vset.pattern.permute.xlu0 0
      %2752 = vperm.xlu0 %2751, %v2694
      %v2753 = vpop.permute.xlu0 %2752
      %2756 = vset.pattern.permute.xlu0 0
      %2757 = vperm.xlu0 %2756, %v2695
      %v2758 = vpop.permute.xlu0 %2757
      %2761 = vset.pattern.permute.xlu0 0
      %2762 = vperm.xlu0 %2761, %v2696
      %v2763 = vpop.permute.xlu0 %2762
      %2766 = vset.pattern.permute.xlu0 0
      %2767 = vperm.xlu0 %2766, %v2697
      %v2768 = vpop.permute.xlu0 %2767
      %2771 = vset.pattern.permute.xlu0 0
      %2772 = vperm.xlu0 %2771, %v2698
      %v2773 = vpop.permute.xlu0 %2772
      %2776 = vset.pattern.permute.xlu0 0
      %2777 = vperm.xlu0 %2776, %v2699
      %v2778 = vpop.permute.xlu0 %2777
      %2781 = vset.pattern.permute.xlu0 0
      %2782 = vperm.xlu0 %2781, %v2700
      %v2783 = vpop.permute.xlu0 %2782
      %2786 = vset.pattern.permute.xlu0 0
      %2787 = vperm.xlu0 %2786, %v2701
      %v2788 = vpop.permute.xlu0 %2787
      %2791 = vset.pattern.permute.xlu0 0
      %2792 = vperm.xlu0 %2791, %v2702
      %v2793 = vpop.permute.xlu0 %2792
      %2796 = vset.pattern.permute.xlu0 0
      %2797 = vperm.xlu0 %2796, %v2703
      %v2798 = vpop.permute.xlu0 %2797
      %2801 = vset.pattern.permute.xlu0 0
      %2802 = vperm.xlu0 %2801, %v2704
      %v2803 = vpop.permute.xlu0 %2802
      %2806 = vset.pattern.permute.xlu0 0
      %2807 = vperm.xlu0 %2806, %v2705
      %v2808 = vpop.permute.xlu0 %2807
      %2811 = vset.pattern.permute.xlu0 0
      %2812 = vperm.xlu0 %2811, %v2706
      %v2813 = vpop.permute.xlu0 %2812
      %2816 = vset.pattern.permute.xlu0 0
      %2817 = vperm.xlu0 %2816, %v2707
      %v2818 = vpop.permute.xlu0 %2817
      %2821 = vset.pattern.permute.xlu0 0
      %2822 = vperm.xlu0 %2821, %v2708
      %v2823 = vpop.permute.xlu0 %2822
      %2826 = vset.pattern.permute.xlu0 0
      %2827 = vperm.xlu0 %2826, %v2709
      %v2828 = vpop.permute.xlu0 %2827
      %2831 = vset.pattern.permute.xlu0 0
      %2832 = vperm.xlu0 %2831, %v2710
      %v2833 = vpop.permute.xlu0 %2832
      %2836 = vset.pattern.permute.xlu0 0
      %2837 = vperm.xlu0 %2836, %v2711
      %v2838 = vpop.permute.xlu0 %2837
      %2841 = vset.pattern.permute.xlu0 0
      %2842 = vperm.xlu0 %2841, %v2712
      %v2843 = vpop.permute.xlu0 %2842
      %2846 = vset.pattern.permute.xlu0 0
      %2847 = vperm.xlu0 %2846, %v2713
      %v2848 = vpop.permute.xlu0 %2847
      %2851 = vset.pattern.permute.xlu0 0
      %2852 = vperm.xlu0 %2851, %v2714
      %v2853 = vpop.permute.xlu0 %2852
      %2856 = vset.pattern.permute.xlu0 0
      %2857 = vperm.xlu0 %2856, %v2715
      %v2858 = vpop.permute.xlu0 %2857
      %2861 = vset.pattern.permute.xlu0 0
      %2862 = vperm.xlu0 %2861, %v2716
      %v2863 = vpop.permute.xlu0 %2862
      %2866 = vset.pattern.permute.xlu0 0
      %2867 = vperm.xlu0 %2866, %v2717
      %v2868 = vpop.permute.xlu0 %2867
      %2871 = vset.pattern.permute.xlu0 0
      %2872 = vperm.xlu0 %2871, %v2718
      %v2873 = vpop.permute.xlu0 %2872
      %2876 = vset.pattern.permute.xlu0 0
      %2877 = vperm.xlu0 %2876, %v2719
      %v2878 = vpop.permute.xlu0 %2877
      %v2880 = vmul.f32 %v2496, %v2723
      %v2881 = vmul.f32 %v2497, %v2728
      %v2882 = vmul.f32 %v2498, %v2733
      %v2883 = vmul.f32 %v2499, %v2738
      %v2884 = vmul.f32 %v2500, %v2743
      %v2885 = vmul.f32 %v2501, %v2748
      %v2886 = vmul.f32 %v2502, %v2753
      %v2887 = vmul.f32 %v2503, %v2758
      %v2888 = vmul.f32 %v2504, %v2763
      %v2889 = vmul.f32 %v2505, %v2768
      %v2890 = vmul.f32 %v2506, %v2773
      %v2891 = vmul.f32 %v2507, %v2778
      %v2892 = vmul.f32 %v2508, %v2783
      %v2893 = vmul.f32 %v2509, %v2788
      %v2894 = vmul.f32 %v2510, %v2793
      %v2895 = vmul.f32 %v2511, %v2798
      %v2896 = vmul.f32 %v2512, %v2803
      %v2897 = vmul.f32 %v2513, %v2808
      %v2898 = vmul.f32 %v2514, %v2813
      %v2899 = vmul.f32 %v2515, %v2818
      %v2900 = vmul.f32 %v2516, %v2823
      %v2901 = vmul.f32 %v2517, %v2828
      %v2902 = vmul.f32 %v2518, %v2833
      %v2903 = vmul.f32 %v2519, %v2838
      %v2904 = vmul.f32 %v2520, %v2843
      %v2905 = vmul.f32 %v2521, %v2848
      %v2906 = vmul.f32 %v2522, %v2853
      %v2907 = vmul.f32 %v2523, %v2858
      %v2908 = vmul.f32 %v2524, %v2863
      %v2909 = vmul.f32 %v2525, %v2868
      %v2910 = vmul.f32 %v2526, %v2873
      %v2911 = vmul.f32 %v2527, %v2878
      %v2912 = vadd.f32 %v2880, %v2881
      %v2913 = vadd.f32 %v2912, %v2882
      %v2914 = vadd.f32 %v2913, %v2883
      %v2915 = vadd.f32 %v2914, %v2884
      %v2916 = vadd.f32 %v2915, %v2885
      %v2917 = vadd.f32 %v2916, %v2886
      %v2918 = vadd.f32 %v2917, %v2887
      %v2919 = vadd.f32 %v2918, %v2888
      %v2920 = vadd.f32 %v2919, %v2889
      %v2921 = vadd.f32 %v2920, %v2890
      %v2922 = vadd.f32 %v2921, %v2891
      %v2923 = vadd.f32 %v2922, %v2892
      %v2924 = vadd.f32 %v2923, %v2893
      %v2925 = vadd.f32 %v2924, %v2894
      %v2926 = vadd.f32 %v2925, %v2895
      %v2927 = vadd.f32 %v2926, %v2896
      %v2928 = vadd.f32 %v2927, %v2897
      %v2929 = vadd.f32 %v2928, %v2898
      %v2930 = vadd.f32 %v2929, %v2899
      %v2931 = vadd.f32 %v2930, %v2900
      %v2932 = vadd.f32 %v2931, %v2901
      %v2933 = vadd.f32 %v2932, %v2902
      %v2934 = vadd.f32 %v2933, %v2903
      %v2935 = vadd.f32 %v2934, %v2904
      %v2936 = vadd.f32 %v2935, %v2905
      %v2937 = vadd.f32 %v2936, %v2906
      %v2938 = vadd.f32 %v2937, %v2907
      %v2939 = vadd.f32 %v2938, %v2908
      %v2940 = vadd.f32 %v2939, %v2909
      %v2941 = vadd.f32 %v2940, %v2910
      %v2942 = vadd.f32 %v2941, %v2911
      %v2943 = vrot.slane %v2942, 4
      %v2944 = vadd.f32 %v2942, %v2943
      %v2945 = vrot.slane %v2944, 2
      %v2946 = vadd.f32 %v2944, %v2945
      %v2947 = vrot.slane %v2946, 1
      %v2948 = vadd.f32 %v2946, %v2947
      %v2949 = vsub.f32 %v2496, %v2948
      %v2950 = vsub.f32 %v2497, %v2948
      %v2951 = vsub.f32 %v2498, %v2948
      %v2952 = vsub.f32 %v2499, %v2948
      %v2953 = vsub.f32 %v2500, %v2948
      %v2954 = vsub.f32 %v2501, %v2948
      %v2955 = vsub.f32 %v2502, %v2948
      %v2956 = vsub.f32 %v2503, %v2948
      %v2957 = vsub.f32 %v2504, %v2948
      %v2958 = vsub.f32 %v2505, %v2948
      %v2959 = vsub.f32 %v2506, %v2948
      %v2960 = vsub.f32 %v2507, %v2948
      %v2961 = vsub.f32 %v2508, %v2948
      %v2962 = vsub.f32 %v2509, %v2948
      %v2963 = vsub.f32 %v2510, %v2948
      %v2964 = vsub.f32 %v2511, %v2948
      %v2965 = vsub.f32 %v2512, %v2948
      %v2966 = vsub.f32 %v2513, %v2948
      %v2967 = vsub.f32 %v2514, %v2948
      %v2968 = vsub.f32 %v2515, %v2948
      %v2969 = vsub.f32 %v2516, %v2948
      %v2970 = vsub.f32 %v2517, %v2948
      %v2971 = vsub.f32 %v2518, %v2948
      %v2972 = vsub.f32 %v2519, %v2948
      %v2973 = vsub.f32 %v2520, %v2948
      %v2974 = vsub.f32 %v2521, %v2948
      %v2975 = vsub.f32 %v2522, %v2948
      %v2976 = vsub.f32 %v2523, %v2948
      %v2977 = vsub.f32 %v2524, %v2948
      %v2978 = vsub.f32 %v2525, %v2948
      %v2979 = vsub.f32 %v2526, %v2948
      %v2980 = vsub.f32 %v2527, %v2948
      %v2981 = vmul.f32 %v2949, %v2949
      %v2982 = vmul.f32 %v2950, %v2950
      %v2983 = vmul.f32 %v2951, %v2951
      %v2984 = vmul.f32 %v2952, %v2952
      %v2985 = vmul.f32 %v2953, %v2953
      %v2986 = vmul.f32 %v2954, %v2954
      %v2987 = vmul.f32 %v2955, %v2955
      %v2988 = vmul.f32 %v2956, %v2956
      %v2989 = vmul.f32 %v2957, %v2957
      %v2990 = vmul.f32 %v2958, %v2958
      %v2991 = vmul.f32 %v2959, %v2959
      %v2992 = vmul.f32 %v2960, %v2960
      %v2993 = vmul.f32 %v2961, %v2961
      %v2994 = vmul.f32 %v2962, %v2962
      %v2995 = vmul.f32 %v2963, %v2963
      %v2996 = vmul.f32 %v2964, %v2964
      %v2997 = vmul.f32 %v2965, %v2965
      %v2998 = vmul.f32 %v2966, %v2966
      %v2999 = vmul.f32 %v2967, %v2967
      %v3000 = vmul.f32 %v2968, %v2968
      %v3001 = vmul.f32 %v2969, %v2969
      %v3002 = vmul.f32 %v2970, %v2970
      %v3003 = vmul.f32 %v2971, %v2971
      %v3004 = vmul.f32 %v2972, %v2972
      %v3005 = vmul.f32 %v2973, %v2973
      %v3006 = vmul.f32 %v2974, %v2974
      %v3007 = vmul.f32 %v2975, %v2975
      %v3008 = vmul.f32 %v2976, %v2976
      %v3009 = vmul.f32 %v2977, %v2977
      %v3010 = vmul.f32 %v2978, %v2978
      %v3011 = vmul.f32 %v2979, %v2979
      %v3012 = vmul.f32 %v2980, %v2980
      %v3013 = vmul.f32 %v2723, %v2981
      %v3014 = vmul.f32 %v2728, %v2982
      %v3015 = vmul.f32 %v2733, %v2983
      %v3016 = vmul.f32 %v2738, %v2984
      %v3017 = vmul.f32 %v2743, %v2985
      %v3018 = vmul.f32 %v2748, %v2986
      %v3019 = vmul.f32 %v2753, %v2987
      %v3020 = vmul.f32 %v2758, %v2988
      %v3021 = vmul.f32 %v2763, %v2989
      %v3022 = vmul.f32 %v2768, %v2990
      %v3023 = vmul.f32 %v2773, %v2991
      %v3024 = vmul.f32 %v2778, %v2992
      %v3025 = vmul.f32 %v2783, %v2993
      %v3026 = vmul.f32 %v2788, %v2994
      %v3027 = vmul.f32 %v2793, %v2995
      %v3028 = vmul.f32 %v2798, %v2996
      %v3029 = vmul.f32 %v2803, %v2997
      %v3030 = vmul.f32 %v2808, %v2998
      %v3031 = vmul.f32 %v2813, %v2999
      %v3032 = vmul.f32 %v2818, %v3000
      %v3033 = vmul.f32 %v2823, %v3001
      %v3034 = vmul.f32 %v2828, %v3002
      %v3035 = vmul.f32 %v2833, %v3003
      %v3036 = vmul.f32 %v2838, %v3004
      %v3037 = vmul.f32 %v2843, %v3005
      %v3038 = vmul.f32 %v2848, %v3006
      %v3039 = vmul.f32 %v2853, %v3007
      %v3040 = vmul.f32 %v2858, %v3008
      %v3041 = vmul.f32 %v2863, %v3009
      %v3042 = vmul.f32 %v2868, %v3010
      %v3043 = vmul.f32 %v2873, %v3011
      %v3044 = vmul.f32 %v2878, %v3012
      %v3045 = vadd.f32 %v3013, %v3014
      %v3046 = vadd.f32 %v3045, %v3015
      %v3047 = vadd.f32 %v3046, %v3016
      %v3048 = vadd.f32 %v3047, %v3017
      %v3049 = vadd.f32 %v3048, %v3018
      %v3050 = vadd.f32 %v3049, %v3019
      %v3051 = vadd.f32 %v3050, %v3020
      %v3052 = vadd.f32 %v3051, %v3021
      %v3053 = vadd.f32 %v3052, %v3022
      %v3054 = vadd.f32 %v3053, %v3023
      %v3055 = vadd.f32 %v3054, %v3024
      %v3056 = vadd.f32 %v3055, %v3025
      %v3057 = vadd.f32 %v3056, %v3026
      %v3058 = vadd.f32 %v3057, %v3027
      %v3059 = vadd.f32 %v3058, %v3028
      %v3060 = vadd.f32 %v3059, %v3029
      %v3061 = vadd.f32 %v3060, %v3030
      %v3062 = vadd.f32 %v3061, %v3031
      %v3063 = vadd.f32 %v3062, %v3032
      %v3064 = vadd.f32 %v3063, %v3033
      %v3065 = vadd.f32 %v3064, %v3034
      %v3066 = vadd.f32 %v3065, %v3035
      %v3067 = vadd.f32 %v3066, %v3036
      %v3068 = vadd.f32 %v3067, %v3037
      %v3069 = vadd.f32 %v3068, %v3038
      %v3070 = vadd.f32 %v3069, %v3039
      %v3071 = vadd.f32 %v3070, %v3040
      %v3072 = vadd.f32 %v3071, %v3041
      %v3073 = vadd.f32 %v3072, %v3042
      %v3074 = vadd.f32 %v3073, %v3043
      %v3075 = vadd.f32 %v3074, %v3044
      %v3076 = vrot.slane %v3075, 4
      %v3077 = vadd.f32 %v3075, %v3076
      %v3078 = vrot.slane %v3077, 2
      %v3079 = vadd.f32 %v3077, %v3078
      %v3080 = vrot.slane %v3079, 1
      %v3081 = vadd.f32 %v3079, %v3080
      %vm3082 = vcmask 1040384
      %v3083 = vsel %vm3082, %v2948, %v3081
      %v3084 = vsel %vm612, %v3083, 0.0
      %3085 = vst [vmem:[%s334] sm:$0xff] %v3084
      %s3086 = smul.u32 32, %s22
      %p3087 = scmp.lt.s32.totalorder %s3086, 63
      %s3088 = scalar_select %p3087, %s3086, 63
      %p3089 = scmp.lt.s32.totalorder %s21, 0
      %s3090 = scalar_select %p3089, %s21, 0
      %s3091 = sadd.s32 %s3090, %s3088
      %s3092 = smul.addr %s3091, 4
      %s3093 = scalar_lea.vmem %s4, %s3092
      %p3094 = scmp.lt.s32.totalorder %s22, 1
      %s3095 = scalar_select %p3094, %s22, 1
      %p3096 = scmp.lt.s32.totalorder %s21, 0
      %s3097 = scalar_select %p3096, %s21, 0
      %s3098 = sadd.s32 %s3097, %s3095
      %s3099 = smul.addr %s3098, 8
      %s3100 = scalar_lea.vmem %s5, %s3099
      // Predicated region
      $region37: #{conv2d_bn_relu.2} parent=35 // pred_check
        %p3101 = pneg %p155
      $region38: #{conv2d_bn_relu.2} parent=35 // pred_check_branch
        %3103 = sbr.rel (%p3101) target = $region40
      $region39: #{conv2d_bn_relu.2} parent=35 // pred_region
        %s3104 = smul.u32 32, %s22
      $region40: #{conv2d_bn_relu.2} parent=35 // pred_fallthru
        _
      // Predicated region
      $region41: #{conv2d_bn_relu.2} parent=35 // pred_check
        %p3105 = pneg %p183
      $region42: #{conv2d_bn_relu.2} parent=35 // pred_check_branch
        %3107 = sbr.rel (%p3105) target = $region44
      $region43: #{conv2d_bn_relu.2} parent=35 // pred_region
        _
      $region44: #{conv2d_bn_relu.2} parent=35 // pred_fallthru
        _
    $region36: #{conv2d_bn_relu.2} parent=5 // pred_fallthru
      _
    %p3108 = scmp.le.s32.totalorder 2, %s12
    // Predicated region
    $region45: #{conv2d_bn_relu.2} parent=5 // pred_check
      %p3109 = pneg %p3108
    $region46: #{conv2d_bn_relu.2} parent=5 // pred_check_branch
      %3111 = sbr.rel (%p3109) target = $region48
    $region47: #{conv2d_bn_relu.2} parent=5 // pred_region
      %s3112 = ssub.s32 %s12, 2
      // Predicated region
      $region49: #{conv2d_bn_relu.2} parent=47 // pred_check
        %p3113 = pneg %p161
      $region50: #{conv2d_bn_relu.2} parent=47 // pred_check_branch
        %3115 = sbr.rel (%p3113) target = $region52
      $region51: #{conv2d_bn_relu.2} parent=47 // pred_region
        %s3116 = smul.u32 32, %s24
        %p3117 = scmp.lt.s32.totalorder %s3116, 63
        %s3118 = scalar_select %p3117, %s3116, 63
        %p3119 = scmp.lt.s32.totalorder %s23, 0
        %s3120 = scalar_select %p3119, %s23, 0
        %s3121 = sadd.s32 %s3120, %s3118
        %s3122 = smul.addr %s3121, 4
        %s3123 = scalar_lea.vmem %s4, %s3122
      $region52: #{conv2d_bn_relu.2} parent=47 // pred_fallthru
        _
      // Predicated region
      $region53: #{conv2d_bn_relu.2} parent=47 // pred_check
        %p3124 = pneg %p189
      $region54: #{conv2d_bn_relu.2} parent=47 // pred_check_branch
        %3126 = sbr.rel (%p3124) target = $region56
      $region55: #{conv2d_bn_relu.2} parent=47 // pred_region
        %p3127 = scmp.lt.s32.totalorder %s24, 1
        %s3128 = scalar_select %p3127, %s24, 1
        %p3129 = scmp.lt.s32.totalorder %s23, 0
        %s3130 = scalar_select %p3129, %s23, 0
        %s3131 = sadd.s32 %s3130, %s3128
        %s3132 = smul.addr %s3131, 8
        %s3133 = scalar_lea.vmem %s5, %s3132
      $region56: #{conv2d_bn_relu.2} parent=47 // pred_fallthru
        _
    $region48: #{conv2d_bn_relu.2} parent=5 // pred_fallthru
      _
  $region6: #{conv2d_bn_relu.2} parent=0 // loop_footer
    %s16 = sadd.s32 1, %s12
  $region7: #{conv2d_bn_relu.2} parent=0 // loop_footer_branch
    %11 = sbr.rel target = $region3
  $region8: #{conv2d_bn_relu.2} parent=0 // loop_exit
    _

</llo_original>
